<compile_context>
chip_gen: v7x
topology: tpu7x:2x2x1
jax: 0.10.0
libtpu: 0.0.40
codegen_flags: <defaults>
</compile_context>

<pallas_src>
import jax
import jax.numpy as jnp
from jax.experimental import pallas as pl
from jax.experimental.pallas import tpu as pltpu

EPS = 1e-5
MXU_DTYPE = jnp.bfloat16           # MXU operand dtype (f32 accumulation); jnp.float32 = bit-faithful
VMEM_LIMIT_BYTES = 64 * 1024 * 1024  # raise 16/32 MiB scoped default; retune per generation


# ---------------------------------------------------------------------------
# in-kernel helpers
# ---------------------------------------------------------------------------
def _im2col_patch(flat, H, W):
    """(H*W, C) f32 -> (H*W, 9*C) MXU_DTYPE patch for a 3x3 / pad=1 conv.

    kh shifts: row slices of the flat view at multiples of W (sublane-tile
               aligned when W % 8 == 0 -> no relayout copies).
    kw shifts: pltpu.roll on the sublane axis (XLU slot) + VPU edge mask; the
               roll wrap-around lands exactly on the masked border columns.
    """
    C = flat.shape[-1]
    HW = H * W
    # w-coordinate of every element (iota along the sublane dim, then an
    # aligned reshape) -- avoids vector integer modulo.
    w_coord = jax.lax.broadcasted_iota(jnp.int32, (H, W, C), 1).reshape(HW, C)
    # out[i] = flat[i - 1]  -> x[h, w-1] once the w == 0 border is masked.
    left = jnp.where(w_coord > 0, pltpu.roll(flat, shift=1, axis=0), 0.0)
    # out[i] = flat[i + 1]  -> x[h, w+1] once the w == W-1 border is masked.
    right = jnp.where(w_coord < W - 1, pltpu.roll(flat, shift=HW - 1, axis=0), 0.0)
    zrow = jnp.zeros((W, C), flat.dtype)
    kw_taps = (left, flat, right)                     # kw = 0, 1, 2
    pieces = []
    for kh in range(3):
        for kw in range(3):
            p = kw_taps[kw]
            if kh == 0:                               # x[h-1, w+kw-1]
                p = jnp.concatenate([zrow, p[:-W]], axis=0)
            elif kh == 2:                             # x[h+1, w+kw-1]
                p = jnp.concatenate([p[W:], zrow], axis=0)
            pieces.append(p)
    # Lane-axis concat is aligned at production channel counts (C >= 128).
    return jnp.concatenate(pieces, axis=-1).astype(MXU_DTYPE)   # (H*W, 9C)


def _conv_and_partial_stats(flat, H, W, w_ref, y_ref, stats_ref):
    """One 3x3 conv as a single K=9C MXU matmul + per-block BN partial sums."""
    C = flat.shape[-1]
    patch = _im2col_patch(flat, H, W)                                   # (H*W, 9C) bf16
    y = jnp.dot(patch, w_ref[...], preferred_element_type=jnp.float32)  # (H*W, C) f32
    y_ref[0] = y.reshape(H, W, C)
    s = jnp.sum(y, axis=0, keepdims=True)                               # (1, C)
    ss = jnp.sum(y * y, axis=0, keepdims=True)                          # (1, C)
    stats_ref[0] = jnp.concatenate([s, ss], axis=0)                     # (2, C)


def _conv1_kernel(x_ref, w_ref, y_ref, stats_ref):
    _, H, W, C = x_ref.shape
    _conv_and_partial_stats(x_ref[0].reshape(H * W, C), H, W, w_ref, y_ref, stats_ref)


def _conv2_kernel(y1_ref, scale_ref, shift_ref, w_ref, y2_ref, stats_ref):
    _, H, W, C = y1_ref.shape
    # BN1 apply (global scale/shift computed between pallas_calls) + ReLU, f32 VPU.
    a = jnp.maximum(
        y1_ref[0].reshape(H * W, C) * scale_ref[...] + shift_ref[...], 0.0)
    _conv_and_partial_stats(a, H, W, w_ref, y2_ref, stats_ref)


def _tail_kernel(y2_ref, ident_ref, scale_ref, shift_ref, out_ref):
    # BN2 apply + residual add + ReLU on a lane-dense (rows, W*C) view.
    out_ref[...] = jnp.maximum(
        y2_ref[...] * scale_ref[...] + shift_ref[...] + ident_ref[...], 0.0)


# ---------------------------------------------------------------------------
# wrapper
# ---------------------------------------------------------------------------
def _bn_scale_shift(partial_stats, gamma, beta, m):
    """Fold per-block (sum, sumsq) partials into BN scale/shift (tiny (C,) math).

    One-pass variance is adequate here (conv outputs are near zero-mean); use a
    centered second pass / Welford combine if tolerances ever tighten.
    """
    sums = jnp.sum(partial_stats, axis=0)                      # (2, C)
    mean = sums[0] / m
    var = jnp.maximum(sums[1] / m - mean * mean, 0.0)          # biased variance (train BN)
    scale = gamma * jax.lax.rsqrt(var + EPS)
    shift = beta - mean * scale
    return scale, shift


@jax.jit
def residual_block(x_nchw, w1_oihw, g1, b1, w2_oihw, g2, b2):
    """NCHW in / NCHW out wrapper around the NHWC Pallas kernels."""
    N, Cin, H, W = x_nchw.shape
    C = w1_oihw.shape[0]
    assert Cin == C, "downsample=None requires in_channels == out_channels"
    M = N * H * W

    # TODO(synk): keep activations NHWC end-to-end in the surrounding model so these
    # full-tensor NCHW<->NHWC HBM relayouts (input and output) disappear.
    x = jnp.transpose(x_nchw, (0, 2, 3, 1)).astype(jnp.float32)          # (N, H, W, C)

    def prep_w(w_oihw):
        # (O, I, 3, 3) -> (kh, kw, I, O) -> (9I, O); row order matches patch columns.
        return jnp.transpose(w_oihw, (2, 3, 1, 0)).reshape(9 * C, C).astype(MXU_DTYPE)

    w1k, w2k = prep_w(w1_oihw), prep_w(w2_oihw)
    g1f, b1f = g1.astype(jnp.float32), b1.astype(jnp.float32)
    g2f, b2f = g2.astype(jnp.float32), b2.astype(jnp.float32)

    # One image per grid step: no halo exchange, few-MiB working set per step on all
    # generations (row-band tiling with a 2-row halo would be the next refinement for
    # very large spatial extents).  Batch axis is "parallel" -> v7x megacore sharding.
    img_spec = pl.BlockSpec((1, H, W, C), lambda n: (n, 0, 0, 0))
    w_spec = pl.BlockSpec((9 * C, C), lambda n: (0, 0))
    vec_spec = pl.BlockSpec((1, C), lambda n: (0, 0))
    stats_spec = pl.BlockSpec((1, 2, C), lambda n: (n, 0, 0))
    cparams = pltpu.CompilerParams(dimension_semantics=("parallel",),
                                   vmem_limit_bytes=VMEM_LIMIT_BYTES)
    conv_cost = pl.CostEstimate(
        flops=2 * M * 9 * C * C, transcendentals=0,
        bytes_accessed=2 * M * C * 4 + 9 * C * C * 2 + N * 2 * C * 4)
    conv_out_shape = (jax.ShapeDtypeStruct((N, H, W, C), jnp.float32),
                      jax.ShapeDtypeStruct((N, 2, C), jnp.float32))
    conv_out_specs = (img_spec, stats_spec)

    # ---- phase 1: conv1 per image + BN1 partial (sum, sumsq) -----------------------
    y1, st1 = pl.pallas_call(
        _conv1_kernel, grid=(N,),
        in_specs=[img_spec, w_spec],
        out_specs=conv_out_specs, out_shape=conv_out_shape,
        compiler_params=cparams, cost_estimate=conv_cost,
    )(x, w1k)
    scale1, shift1 = _bn_scale_shift(st1, g1f, b1f, M)

    # ---- phase 2: BN1 apply + ReLU + conv2 per image + BN2 partial stats -----------
    y2, st2 = pl.pallas_call(
        _conv2_kernel, grid=(N,),
        in_specs=[img_spec, vec_spec, vec_spec, w_spec],
        out_specs=conv_out_specs, out_shape=conv_out_shape,
        compiler_params=cparams, cost_estimate=conv_cost,
    )(y1, scale1.reshape(1, C), shift1.reshape(1, C), w2k)
    scale2, shift2 = _bn_scale_shift(st2, g2f, b2f, M)

    # ---- phase 3: BN2 apply + residual + ReLU on a lane-dense (N*H, W*C) view ------
    NH, WC = N * H, W * C
    tr = next((t for t in (512, 256, 128, 64, 32, 16, 8) if NH % t == 0), NH)
    row_spec = pl.BlockSpec((tr, WC), lambda r: (r, 0))
    cvec_spec = pl.BlockSpec((1, WC), lambda r: (0, 0))
    out2d = pl.pallas_call(
        _tail_kernel, grid=(NH // tr,),
        in_specs=[row_spec, row_spec, cvec_spec, cvec_spec],
        out_specs=row_spec,
        out_shape=jax.ShapeDtypeStruct((NH, WC), jnp.float32),
        input_output_aliases={1: 0},          # identity buffer is reused for the output
        compiler_params=cparams,
        cost_estimate=pl.CostEstimate(flops=3 * NH * WC, transcendentals=0,
                                      bytes_accessed=3 * NH * WC * 4),
    )(y2.reshape(NH, WC), x.reshape(NH, WC),
      jnp.tile(scale2, W).reshape(1, WC), jnp.tile(shift2, W).reshape(1, WC))

    return jnp.transpose(out2d.reshape(N, H, W, C), (0, 3, 1, 2))


# ---------------------------------------------------------------------------
# pure-JAX reference (mirrors the PyTorch module in f32, training-mode BN)
# ---------------------------------------------------------------------------
def residual_block_ref(x_nchw, w1, g1, b1, w2, g2, b2):
    dn = ('NCHW', 'OIHW', 'NCHW')

    def conv(x, w):
        return jax.lax.conv_general_dilated(
            x, w, window_strides=(1, 1), padding=((1, 1), (1, 1)),
            dimension_numbers=dn)

    def bn(x, g, b):
        mean = x.mean(axis=(0, 2, 3), keepdims=True)
        var = ((x - mean) ** 2).mean(axis=(0, 2, 3), keepdims=True)
        return ((x - mean) * jax.lax.rsqrt(var + EPS)
                * g.reshape(1, -1, 1, 1) + b.reshape(1, -1, 1, 1))

    out = jax.nn.relu(bn(conv(x_nchw, w1), g1, b1))
    out = bn(conv(out, w2), g2, b2)
    return jax.nn.relu(out + x_nchw)


if __name__ == "__main__":
    N, C, H, W = 2, 8, 16, 16          # in_channels == out_channels (downsample=None)
    key = jax.random.PRNGKey(0)
    kx, kw1, kw2 = jax.random.split(key, 3)

    x = jax.random.normal(kx, (N, C, H, W), dtype=jnp.float32)
    # PyTorch shapes: conv weight (O, I, 3, 3); BN gamma/beta (O,)
    w1 = 0.1 * jax.random.normal(kw1, (C, C, 3, 3), dtype=jnp.float32)
    w2 = 0.1 * jax.random.normal(kw2, (C, C, 3, 3), dtype=jnp.float32)
    g1 = 1.0 + 0.05 * jnp.arange(C, dtype=jnp.float32)
    b1 = 0.02 * jnp.arange(C, dtype=jnp.float32)
    g2 = 1.0 - 0.03 * jnp.arange(C, dtype=jnp.float32)
    b2 = -0.01 * jnp.arange(C, dtype=jnp.float32)

    out = jax.block_until_ready(residual_block(x, w1, g1, b1, w2, g2, b2))
    ref = residual_block_ref(x, w1, g1, b1, w2, g2, b2)

    assert out.shape == (N, C, H, W)
    # bf16 MXU operands with f32 accumulation: expected max abs error ~1e-2 vs the
    # f32 reference at these unit-variance activations; f32 operands keep < 1e-3.
    tol = 5e-2 if MXU_DTYPE == jnp.bfloat16 else 1e-3
    err = float(jnp.max(jnp.abs(out - ref)))
    assert err < tol, f"mismatch vs JAX reference: max abs err = {err}"

    print("KERNEL_OK")
</pallas_src>

<mosaic_0001>
module attributes {stable_mosaic.version = 11 : i64} {
  func.func @_conv1_kernel(%arg0: i32, %arg1: memref<1x16x16x8xf32, #tpu.memory_space<vmem>>, %arg2: memref<72x8xbf16, #tpu.memory_space<vmem>>, %arg3: memref<1x16x16x8xf32, #tpu.memory_space<vmem>>, %arg4: memref<1x2x8xf32, #tpu.memory_space<vmem>>) attributes {dimension_semantics = [#tpu.dimension_semantics<parallel>], iteration_bounds = array<i64: 2>, scalar_prefetch = 0 : i64, scratch_operands = 0 : i64, tpu.core_type = #tpu.core_type<tc>, window_params = [{transform_indices = @transform_0, window_bounds = array<i64: 1, 16, 16, 8>}, {pipeline_mode = #tpu.pipeline_mode<synchronous>, transform_indices = @transform_1, window_bounds = array<i64: 72, 8>}, {transform_indices = @transform_2, window_bounds = array<i64: 1, 16, 16, 8>}, {transform_indices = @transform_3, window_bounds = array<i64: 1, 2, 8>}]} {
    %c0 = arith.constant 0 : index
    %c0_0 = arith.constant 0 : index
    %c0_1 = arith.constant 0 : index
    %c0_2 = arith.constant 0 : index
    %0 = vector.load %arg1[%c0, %c0_0, %c0_1, %c0_2] : memref<1x16x16x8xf32, #tpu.memory_space<vmem>>, vector<1x16x16x8xf32>
    %1 = vector.shape_cast %0 : vector<1x16x16x8xf32> to vector<16x16x8xf32>
    %2 = vector.shape_cast %1 : vector<16x16x8xf32> to vector<256x8xf32>
    %3 = tpu.iota {dimensions = array<i32: 1>} : vector<16x16x8xi32>
    %4 = vector.shape_cast %3 : vector<16x16x8xi32> to vector<256x8xi32>
    %c0_i32 = arith.constant 0 : i32
    %5 = vector.broadcast %c0_i32 : i32 to vector<256x8xi32>
    %6 = arith.cmpi sgt, %4, %5 : vector<256x8xi32>
    %c1_i32 = arith.constant 1 : i32
    %7 = tpu.dynamic_rotate %2 by %c1_i32 dim 0 : vector<256x8xf32>, i32 -> vector<256x8xf32>
    %cst = arith.constant 0.000000e+00 : f32
    %8 = vector.broadcast %cst : f32 to vector<256x8xf32>
    %9 = arith.select %6, %7, %8 : vector<256x8xi1>, vector<256x8xf32>
    %c15_i32 = arith.constant 15 : i32
    %10 = vector.broadcast %c15_i32 : i32 to vector<256x8xi32>
    %11 = arith.cmpi slt, %4, %10 : vector<256x8xi32>
    %c255_i32 = arith.constant 255 : i32
    %12 = tpu.dynamic_rotate %2 by %c255_i32 dim 0 : vector<256x8xf32>, i32 -> vector<256x8xf32>
    %cst_3 = arith.constant 0.000000e+00 : f32
    %13 = vector.broadcast %cst_3 : f32 to vector<256x8xf32>
    %14 = arith.select %11, %12, %13 : vector<256x8xi1>, vector<256x8xf32>
    %cst_4 = arith.constant 0.000000e+00 : f32
    %15 = vector.broadcast %cst_4 : f32 to vector<16x8xf32>
    %16 = vector.extract_strided_slice %9 {offsets = [0, 0], sizes = [240, 8], strides = [1, 1]} : vector<256x8xf32> to vector<240x8xf32>
    %17 = tpu.concatenate %15, %16 in 0 : vector<16x8xf32>, vector<240x8xf32> -> vector<256x8xf32>
    %18 = vector.extract_strided_slice %2 {offsets = [0, 0], sizes = [240, 8], strides = [1, 1]} : vector<256x8xf32> to vector<240x8xf32>
    %19 = tpu.concatenate %15, %18 in 0 : vector<16x8xf32>, vector<240x8xf32> -> vector<256x8xf32>
    %20 = vector.extract_strided_slice %14 {offsets = [0, 0], sizes = [240, 8], strides = [1, 1]} : vector<256x8xf32> to vector<240x8xf32>
    %21 = tpu.concatenate %15, %20 in 0 : vector<16x8xf32>, vector<240x8xf32> -> vector<256x8xf32>
    %22 = vector.extract_strided_slice %9 {offsets = [16, 0], sizes = [240, 8], strides = [1, 1]} : vector<256x8xf32> to vector<240x8xf32>
    %23 = tpu.concatenate %22, %15 in 0 : vector<240x8xf32>, vector<16x8xf32> -> vector<256x8xf32>
    %24 = vector.extract_strided_slice %2 {offsets = [16, 0], sizes = [240, 8], strides = [1, 1]} : vector<256x8xf32> to vector<240x8xf32>
    %25 = tpu.concatenate %24, %15 in 0 : vector<240x8xf32>, vector<16x8xf32> -> vector<256x8xf32>
    %26 = vector.extract_strided_slice %14 {offsets = [16, 0], sizes = [240, 8], strides = [1, 1]} : vector<256x8xf32> to vector<240x8xf32>
    %27 = tpu.concatenate %26, %15 in 0 : vector<240x8xf32>, vector<16x8xf32> -> vector<256x8xf32>
    %28 = tpu.concatenate %17, %19, %21, %9, %2, %14, %23, %25, %27 in 1 : vector<256x8xf32>, vector<256x8xf32>, vector<256x8xf32>, vector<256x8xf32>, vector<256x8xf32>, vector<256x8xf32>, vector<256x8xf32>, vector<256x8xf32>, vector<256x8xf32> -> vector<256x72xf32>
    %29 = arith.truncf %28 : vector<256x72xf32> to vector<256x72xbf16>
    %c0_5 = arith.constant 0 : index
    %c0_6 = arith.constant 0 : index
    %30 = vector.load %arg2[%c0_5, %c0_6] : memref<72x8xbf16, #tpu.memory_space<vmem>>, vector<72x8xbf16>
    %cst_7 = arith.constant dense<0.000000e+00> : vector<256x8xf32>
    %31 = tpu.matmul %29, %30, %cst_7 {dimension_numbers = #tpu.dot_dimension_numbers<[1], [0], [0], [1], [0, 0, 1, 1], [], []>} : vector<256x72xbf16>, vector<72x8xbf16>, vector<256x8xf32> -> vector<256x8xf32>
    %32 = vector.shape_cast %31 : vector<256x8xf32> to vector<16x16x8xf32>
    %c0_8 = arith.constant 0 : index
    %c0_9 = arith.constant 0 : index
    %c0_10 = arith.constant 0 : index
    %c0_11 = arith.constant 0 : index
    %33 = vector.load %arg3[%c0_8, %c0_9, %c0_10, %c0_11] : memref<1x16x16x8xf32, #tpu.memory_space<vmem>>, vector<1x16x16x8xf32>
    %34 = vector.shape_cast %33 : vector<1x16x16x8xf32> to vector<16x16x8xf32>
    %35 = vector.shape_cast %32 : vector<16x16x8xf32> to vector<1x16x16x8xf32>
    tpu.vector_store %arg3[%c0_8, %c0_9, %c0_10, %c0_11], %35 {strides = array<i32>} : memref<1x16x16x8xf32, #tpu.memory_space<vmem>>, vector<1x16x16x8xf32>,
    %cst_12 = arith.constant dense<0.000000e+00> : vector<8xf32>
    %36 = vector.multi_reduction <add>, %31, %cst_12 [0] : vector<256x8xf32> to vector<8xf32>
    %37 = vector.shape_cast %36 : vector<8xf32> to vector<1x8xf32>
    %38 = arith.mulf %31, %31 : vector<256x8xf32>
    %cst_13 = arith.constant dense<0.000000e+00> : vector<8xf32>
    %39 = vector.multi_reduction <add>, %38, %cst_13 [0] : vector<256x8xf32> to vector<8xf32>
    %40 = vector.shape_cast %39 : vector<8xf32> to vector<1x8xf32>
    %41 = tpu.concatenate %37, %40 in 0 : vector<1x8xf32>, vector<1x8xf32> -> vector<2x8xf32>
    %c0_14 = arith.constant 0 : index
    %c0_15 = arith.constant 0 : index
    %c0_16 = arith.constant 0 : index
    %42 = vector.load %arg4[%c0_14, %c0_15, %c0_16] : memref<1x2x8xf32, #tpu.memory_space<vmem>>, vector<1x2x8xf32>
    %43 = vector.shape_cast %42 : vector<1x2x8xf32> to vector<2x8xf32>
    %44 = vector.shape_cast %41 : vector<2x8xf32> to vector<1x2x8xf32>
    tpu.vector_store %arg4[%c0_14, %c0_15, %c0_16], %44 {strides = array<i32>} : memref<1x2x8xf32, #tpu.memory_space<vmem>>, vector<1x2x8xf32>,
    return
  }
  func.func @transform_0(%arg0: i32) -> (i32, i32, i32, i32) {
    %c0_i32 = arith.constant 0 : i32
    %c0_i32_0 = arith.constant 0 : i32
    %c0_i32_1 = arith.constant 0 : i32
    %c0_i32_2 = arith.constant 0 : i32
    return %arg0, %c0_i32, %c0_i32_0, %c0_i32_1 : i32, i32, i32, i32
  }
  func.func @transform_1(%arg0: i32) -> (i32, i32) {
    %c0_i32 = arith.constant 0 : i32
    %c0_i32_0 = arith.constant 0 : i32
    %c0_i32_1 = arith.constant 0 : i32
    return %c0_i32, %c0_i32_0 : i32, i32
  }
  func.func @transform_2(%arg0: i32) -> (i32, i32, i32, i32) {
    %c0_i32 = arith.constant 0 : i32
    %c0_i32_0 = arith.constant 0 : i32
    %c0_i32_1 = arith.constant 0 : i32
    %c0_i32_2 = arith.constant 0 : i32
    return %arg0, %c0_i32, %c0_i32_0, %c0_i32_1 : i32, i32, i32, i32
  }
  func.func @transform_3(%arg0: i32) -> (i32, i32, i32) {
    %c0_i32 = arith.constant 0 : i32
    %c0_i32_0 = arith.constant 0 : i32
    %c0_i32_1 = arith.constant 0 : i32
    return %arg0, %c0_i32, %c0_i32_0 : i32, i32, i32
  }
}

module attributes {stable_mosaic.version = 11 : i64} {
  func.func @_conv2_kernel(%arg0: i32, %arg1: memref<1x16x16x8xf32, #tpu.memory_space<vmem>>, %arg2: memref<1x8xf32, #tpu.memory_space<vmem>>, %arg3: memref<1x8xf32, #tpu.memory_space<vmem>>, %arg4: memref<72x8xbf16, #tpu.memory_space<vmem>>, %arg5: memref<1x16x16x8xf32, #tpu.memory_space<vmem>>, %arg6: memref<1x2x8xf32, #tpu.memory_space<vmem>>) attributes {dimension_semantics = [#tpu.dimension_semantics<parallel>], iteration_bounds = array<i64: 2>, scalar_prefetch = 0 : i64, scratch_operands = 0 : i64, tpu.core_type = #tpu.core_type<tc>, window_params = [{transform_indices = @transform_0, window_bounds = array<i64: 1, 16, 16, 8>}, {pipeline_mode = #tpu.pipeline_mode<synchronous>, transform_indices = @transform_1, window_bounds = array<i64: 1, 8>}, {pipeline_mode = #tpu.pipeline_mode<synchronous>, transform_indices = @transform_2, window_bounds = array<i64: 1, 8>}, {pipeline_mode = #tpu.pipeline_mode<synchronous>, transform_indices = @transform_3, window_bounds = array<i64: 72, 8>}, {transform_indices = @transform_4, window_bounds = array<i64: 1, 16, 16, 8>}, {transform_indices = @transform_5, window_bounds = array<i64: 1, 2, 8>}]} {
    %c0 = arith.constant 0 : index
    %c0_0 = arith.constant 0 : index
    %c0_1 = arith.constant 0 : index
    %c0_2 = arith.constant 0 : index
    %0 = vector.load %arg1[%c0, %c0_0, %c0_1, %c0_2] : memref<1x16x16x8xf32, #tpu.memory_space<vmem>>, vector<1x16x16x8xf32>
    %1 = vector.shape_cast %0 : vector<1x16x16x8xf32> to vector<16x16x8xf32>
    %2 = vector.shape_cast %1 : vector<16x16x8xf32> to vector<256x8xf32>
    %c0_3 = arith.constant 0 : index
    %c0_4 = arith.constant 0 : index
    %3 = vector.load %arg2[%c0_3, %c0_4] : memref<1x8xf32, #tpu.memory_space<vmem>>, vector<1x8xf32>
    %4 = vector.broadcast %3 : vector<1x8xf32> to vector<256x8xf32>
    %5 = arith.mulf %2, %4 : vector<256x8xf32>
    %c0_5 = arith.constant 0 : index
    %c0_6 = arith.constant 0 : index
    %6 = vector.load %arg3[%c0_5, %c0_6] : memref<1x8xf32, #tpu.memory_space<vmem>>, vector<1x8xf32>
    %7 = vector.broadcast %6 : vector<1x8xf32> to vector<256x8xf32>
    %8 = arith.addf %5, %7 : vector<256x8xf32>
    %cst = arith.constant 0.000000e+00 : f32
    %9 = vector.broadcast %cst : f32 to vector<256x8xf32>
    %10 = arith.maximumf %8, %9 : vector<256x8xf32>
    %11 = tpu.iota {dimensions = array<i32: 1>} : vector<16x16x8xi32>
    %12 = vector.shape_cast %11 : vector<16x16x8xi32> to vector<256x8xi32>
    %c0_i32 = arith.constant 0 : i32
    %13 = vector.broadcast %c0_i32 : i32 to vector<256x8xi32>
    %14 = arith.cmpi sgt, %12, %13 : vector<256x8xi32>
    %c1_i32 = arith.constant 1 : i32
    %15 = tpu.dynamic_rotate %10 by %c1_i32 dim 0 : vector<256x8xf32>, i32 -> vector<256x8xf32>
    %cst_7 = arith.constant 0.000000e+00 : f32
    %16 = vector.broadcast %cst_7 : f32 to vector<256x8xf32>
    %17 = arith.select %14, %15, %16 : vector<256x8xi1>, vector<256x8xf32>
    %c15_i32 = arith.constant 15 : i32
    %18 = vector.broadcast %c15_i32 : i32 to vector<256x8xi32>
    %19 = arith.cmpi slt, %12, %18 : vector<256x8xi32>
    %c255_i32 = arith.constant 255 : i32
    %20 = tpu.dynamic_rotate %10 by %c255_i32 dim 0 : vector<256x8xf32>, i32 -> vector<256x8xf32>
    %cst_8 = arith.constant 0.000000e+00 : f32
    %21 = vector.broadcast %cst_8 : f32 to vector<256x8xf32>
    %22 = arith.select %19, %20, %21 : vector<256x8xi1>, vector<256x8xf32>
    %cst_9 = arith.constant 0.000000e+00 : f32
    %23 = vector.broadcast %cst_9 : f32 to vector<16x8xf32>
    %24 = vector.extract_strided_slice %17 {offsets = [0, 0], sizes = [240, 8], strides = [1, 1]} : vector<256x8xf32> to vector<240x8xf32>
    %25 = tpu.concatenate %23, %24 in 0 : vector<16x8xf32>, vector<240x8xf32> -> vector<256x8xf32>
    %26 = vector.extract_strided_slice %10 {offsets = [0, 0], sizes = [240, 8], strides = [1, 1]} : vector<256x8xf32> to vector<240x8xf32>
    %27 = tpu.concatenate %23, %26 in 0 : vector<16x8xf32>, vector<240x8xf32> -> vector<256x8xf32>
    %28 = vector.extract_strided_slice %22 {offsets = [0, 0], sizes = [240, 8], strides = [1, 1]} : vector<256x8xf32> to vector<240x8xf32>
    %29 = tpu.concatenate %23, %28 in 0 : vector<16x8xf32>, vector<240x8xf32> -> vector<256x8xf32>
    %30 = vector.extract_strided_slice %17 {offsets = [16, 0], sizes = [240, 8], strides = [1, 1]} : vector<256x8xf32> to vector<240x8xf32>
    %31 = tpu.concatenate %30, %23 in 0 : vector<240x8xf32>, vector<16x8xf32> -> vector<256x8xf32>
    %32 = vector.extract_strided_slice %10 {offsets = [16, 0], sizes = [240, 8], strides = [1, 1]} : vector<256x8xf32> to vector<240x8xf32>
    %33 = tpu.concatenate %32, %23 in 0 : vector<240x8xf32>, vector<16x8xf32> -> vector<256x8xf32>
    %34 = vector.extract_strided_slice %22 {offsets = [16, 0], sizes = [240, 8], strides = [1, 1]} : vector<256x8xf32> to vector<240x8xf32>
    %35 = tpu.concatenate %34, %23 in 0 : vector<240x8xf32>, vector<16x8xf32> -> vector<256x8xf32>
    %36 = tpu.concatenate %25, %27, %29, %17, %10, %22, %31, %33, %35 in 1 : vector<256x8xf32>, vector<256x8xf32>, vector<256x8xf32>, vector<256x8xf32>, vector<256x8xf32>, vector<256x8xf32>, vector<256x8xf32>, vector<256x8xf32>, vector<256x8xf32> -> vector<256x72xf32>
    %37 = arith.truncf %36 : vector<256x72xf32> to vector<256x72xbf16>
    %c0_10 = arith.constant 0 : index
    %c0_11 = arith.constant 0 : index
    %38 = vector.load %arg4[%c0_10, %c0_11] : memref<72x8xbf16, #tpu.memory_space<vmem>>, vector<72x8xbf16>
    %cst_12 = arith.constant dense<0.000000e+00> : vector<256x8xf32>
    %39 = tpu.matmul %37, %38, %cst_12 {dimension_numbers = #tpu.dot_dimension_numbers<[1], [0], [0], [1], [0, 0, 1, 1], [], []>} : vector<256x72xbf16>, vector<72x8xbf16>, vector<256x8xf32> -> vector<256x8xf32>
    %40 = vector.shape_cast %39 : vector<256x8xf32> to vector<16x16x8xf32>
    %c0_13 = arith.constant 0 : index
    %c0_14 = arith.constant 0 : index
    %c0_15 = arith.constant 0 : index
    %c0_16 = arith.constant 0 : index
    %41 = vector.load %arg5[%c0_13, %c0_14, %c0_15, %c0_16] : memref<1x16x16x8xf32, #tpu.memory_space<vmem>>, vector<1x16x16x8xf32>
    %42 = vector.shape_cast %41 : vector<1x16x16x8xf32> to vector<16x16x8xf32>
    %43 = vector.shape_cast %40 : vector<16x16x8xf32> to vector<1x16x16x8xf32>
    tpu.vector_store %arg5[%c0_13, %c0_14, %c0_15, %c0_16], %43 {strides = array<i32>} : memref<1x16x16x8xf32, #tpu.memory_space<vmem>>, vector<1x16x16x8xf32>,
    %cst_17 = arith.constant dense<0.000000e+00> : vector<8xf32>
    %44 = vector.multi_reduction <add>, %39, %cst_17 [0] : vector<256x8xf32> to vector<8xf32>
    %45 = vector.shape_cast %44 : vector<8xf32> to vector<1x8xf32>
    %46 = arith.mulf %39, %39 : vector<256x8xf32>
    %cst_18 = arith.constant dense<0.000000e+00> : vector<8xf32>
    %47 = vector.multi_reduction <add>, %46, %cst_18 [0] : vector<256x8xf32> to vector<8xf32>
    %48 = vector.shape_cast %47 : vector<8xf32> to vector<1x8xf32>
    %49 = tpu.concatenate %45, %48 in 0 : vector<1x8xf32>, vector<1x8xf32> -> vector<2x8xf32>
    %c0_19 = arith.constant 0 : index
    %c0_20 = arith.constant 0 : index
    %c0_21 = arith.constant 0 : index
    %50 = vector.load %arg6[%c0_19, %c0_20, %c0_21] : memref<1x2x8xf32, #tpu.memory_space<vmem>>, vector<1x2x8xf32>
    %51 = vector.shape_cast %50 : vector<1x2x8xf32> to vector<2x8xf32>
    %52 = vector.shape_cast %49 : vector<2x8xf32> to vector<1x2x8xf32>
    tpu.vector_store %arg6[%c0_19, %c0_20, %c0_21], %52 {strides = array<i32>} : memref<1x2x8xf32, #tpu.memory_space<vmem>>, vector<1x2x8xf32>,
    return
  }
  func.func @transform_0(%arg0: i32) -> (i32, i32, i32, i32) {
    %c0_i32 = arith.constant 0 : i32
    %c0_i32_0 = arith.constant 0 : i32
    %c0_i32_1 = arith.constant 0 : i32
    %c0_i32_2 = arith.constant 0 : i32
    return %arg0, %c0_i32, %c0_i32_0, %c0_i32_1 : i32, i32, i32, i32
  }
  func.func @transform_1(%arg0: i32) -> (i32, i32) {
    %c0_i32 = arith.constant 0 : i32
    %c0_i32_0 = arith.constant 0 : i32
    %c0_i32_1 = arith.constant 0 : i32
    return %c0_i32, %c0_i32_0 : i32, i32
  }
  func.func @transform_2(%arg0: i32) -> (i32, i32) {
    %c0_i32 = arith.constant 0 : i32
    %c0_i32_0 = arith.constant 0 : i32
    %c0_i32_1 = arith.constant 0 : i32
    return %c0_i32, %c0_i32_0 : i32, i32
  }
  func.func @transform_3(%arg0: i32) -> (i32, i32) {
    %c0_i32 = arith.constant 0 : i32
    %c0_i32_0 = arith.constant 0 : i32
    %c0_i32_1 = arith.constant 0 : i32
    return %c0_i32, %c0_i32_0 : i32, i32
  }
  func.func @transform_4(%arg0: i32) -> (i32, i32, i32, i32) {
    %c0_i32 = arith.constant 0 : i32
    %c0_i32_0 = arith.constant 0 : i32
    %c0_i32_1 = arith.constant 0 : i32
    %c0_i32_2 = arith.constant 0 : i32
    return %arg0, %c0_i32, %c0_i32_0, %c0_i32_1 : i32, i32, i32, i32
  }
  func.func @transform_5(%arg0: i32) -> (i32, i32, i32) {
    %c0_i32 = arith.constant 0 : i32
    %c0_i32_0 = arith.constant 0 : i32
    %c0_i32_1 = arith.constant 0 : i32
    return %arg0, %c0_i32, %c0_i32_0 : i32, i32, i32
  }
}

module attributes {stable_mosaic.version = 11 : i64} {
  func.func @_tail_kernel(%arg0: i32, %arg1: memref<32x128xf32, #tpu.memory_space<vmem>>, %arg2: memref<32x128xf32, #tpu.memory_space<vmem>>, %arg3: memref<1x128xf32, #tpu.memory_space<vmem>>, %arg4: memref<1x128xf32, #tpu.memory_space<vmem>>, %arg5: memref<32x128xf32, #tpu.memory_space<vmem>>) attributes {dimension_semantics = [#tpu.dimension_semantics<parallel>], iteration_bounds = array<i64: 1>, scalar_prefetch = 0 : i64, scratch_operands = 0 : i64, tpu.core_type = #tpu.core_type<tc>, window_params = [{transform_indices = @transform_0, window_bounds = array<i64: 32, 128>}, {transform_indices = @transform_1, window_bounds = array<i64: 32, 128>}, {pipeline_mode = #tpu.pipeline_mode<synchronous>, transform_indices = @transform_2, window_bounds = array<i64: 1, 128>}, {pipeline_mode = #tpu.pipeline_mode<synchronous>, transform_indices = @transform_3, window_bounds = array<i64: 1, 128>}, {transform_indices = @transform_4, window_bounds = array<i64: 32, 128>}]} {
    %c0 = arith.constant 0 : index
    %c0_0 = arith.constant 0 : index
    %0 = vector.load %arg1[%c0, %c0_0] : memref<32x128xf32, #tpu.memory_space<vmem>>, vector<32x128xf32>
    %c0_1 = arith.constant 0 : index
    %c0_2 = arith.constant 0 : index
    %1 = vector.load %arg3[%c0_1, %c0_2] : memref<1x128xf32, #tpu.memory_space<vmem>>, vector<1x128xf32>
    %2 = vector.broadcast %1 : vector<1x128xf32> to vector<32x128xf32>
    %3 = arith.mulf %0, %2 : vector<32x128xf32>
    %c0_3 = arith.constant 0 : index
    %c0_4 = arith.constant 0 : index
    %4 = vector.load %arg4[%c0_3, %c0_4] : memref<1x128xf32, #tpu.memory_space<vmem>>, vector<1x128xf32>
    %5 = vector.broadcast %4 : vector<1x128xf32> to vector<32x128xf32>
    %6 = arith.addf %3, %5 : vector<32x128xf32>
    %c0_5 = arith.constant 0 : index
    %c0_6 = arith.constant 0 : index
    %7 = vector.load %arg2[%c0_5, %c0_6] : memref<32x128xf32, #tpu.memory_space<vmem>>, vector<32x128xf32>
    %8 = arith.addf %6, %7 : vector<32x128xf32>
    %cst = arith.constant 0.000000e+00 : f32
    %9 = vector.broadcast %cst : f32 to vector<32x128xf32>
    %10 = arith.maximumf %8, %9 : vector<32x128xf32>
    %c0_7 = arith.constant 0 : index
    %c0_8 = arith.constant 0 : index
    %11 = vector.load %arg5[%c0_7, %c0_8] : memref<32x128xf32, #tpu.memory_space<vmem>>, vector<32x128xf32>
    tpu.vector_store %arg5[%c0_7, %c0_8], %10 {strides = array<i32>} : memref<32x128xf32, #tpu.memory_space<vmem>>, vector<32x128xf32>,
    return
  }
  func.func @transform_0(%arg0: i32) -> (i32, i32) {
    %c0_i32 = arith.constant 0 : i32
    %c0_i32_0 = arith.constant 0 : i32
    return %arg0, %c0_i32 : i32, i32
  }
  func.func @transform_1(%arg0: i32) -> (i32, i32) {
    %c0_i32 = arith.constant 0 : i32
    %c0_i32_0 = arith.constant 0 : i32
    return %arg0, %c0_i32 : i32, i32
  }
  func.func @transform_2(%arg0: i32) -> (i32, i32) {
    %c0_i32 = arith.constant 0 : i32
    %c0_i32_0 = arith.constant 0 : i32
    %c0_i32_1 = arith.constant 0 : i32
    return %c0_i32, %c0_i32_0 : i32, i32
  }
  func.func @transform_3(%arg0: i32) -> (i32, i32) {
    %c0_i32 = arith.constant 0 : i32
    %c0_i32_0 = arith.constant 0 : i32
    %c0_i32_1 = arith.constant 0 : i32
    return %c0_i32, %c0_i32_0 : i32, i32
  }
  func.func @transform_4(%arg0: i32) -> (i32, i32) {
    %c0_i32 = arith.constant 0 : i32
    %c0_i32_0 = arith.constant 0 : i32
    return %arg0, %c0_i32 : i32, i32
  }
}

</mosaic_0001>

<llo_original>
// kernel: tile.13
$region0: #{tile.13}
  #allocation0 [shape = 's32[1]{0}', space=sflag, size = 0x4, scoped, tag = 'scoped memory for tile.13']
  %s0 = inlined_call_operand.vmem [shape: f32[8], index: 0, kind: input, shape index: {}]
  %s1 = inlined_call_operand.vmem [shape: f32[16,8], index: 1, kind: output, shape index: {}]
  // Predicated region
  $region2: #{tile.13} parent=0 // pred_check
    _
  $region3: #{tile.13} parent=0 // pred_check_branch
    %3 = sbr.rel (0) target = $region5
  $region4: #{tile.13} parent=0 // pred_region
    _
  $region5: #{tile.13} parent=0 // pred_fallthru
    _
  %v4 = vld [vmem:[%s0] ss:$0 sm:$0xff]
  %5 = vst [vmem:[%s1] sm:$0xff] %v4
  %s6 = scalar_lea.vmem %s1, 8
  %7 = vst [vmem:[%s6] sm:$0xff] %v4

// kernel: tile.14
$region0: #{tile.14}
  %s0 = inlined_call_operand.vmem [shape: f32[16,8], index: 0, kind: input, shape index: {}]
  %s1 = inlined_call_operand.hbm [shape: f32[1,128], index: 1, kind: output, shape index: {}]
  $region1: #{tile.14} parent=0
    #allocation0 [shape = 'u8[512]{0}', space=vmem, size = 0x400, scoped, tag = 'operand span for operand 1']
    #allocation1 [shape = 's32[1]{0}', space=sflag, size = 0x4, scoped, tag = 'scoped memory for tile.14']
    #allocation2 [shape = 'u8[4096]{0}', space=vmem, size = 0x1000, scoped, tag = 'scoped mem for output reshape']
    %2 = vsyncpa [#allocation1], 0
    %v3 = vld [vmem:[%s0] sm:$0x1]
    %vm4 = vcmask 64512
    %5 = vst.msk [vmem:[#allocation2] sm:$0x1] %vm4, %v3
    %s6 = scalar_lea.vmem %s0, 15
    %v7 = vld [vmem:[%s6] sm:$0x1]
    %8 = vrot.lane.b32.xlu0 %v7, 120
    %v9 = vpop.permute.xlu0 %8
    %vm10 = vcmask 1048512
    %11 = vst.msk [vmem:[#allocation2] sm:$0x1] %vm10, %v9
    %s12 = scalar_lea.vmem %s0, 14
    %v13 = vld [vmem:[%s12] sm:$0x1]
    %14 = vrot.lane.b32.xlu0 %v13, 112
    %v15 = vpop.permute.xlu0 %14
    %vm16 = vcmask 982912
    %17 = vst.msk [vmem:[#allocation2] sm:$0x1] %vm16, %v15
    %s18 = scalar_lea.vmem %s0, 13
    %v19 = vld [vmem:[%s18] sm:$0x1]
    %20 = vrot.lane.b32.xlu0 %v19, 104
    %v21 = vpop.permute.xlu0 %20
    %vm22 = vcmask 917312
    %23 = vst.msk [vmem:[#allocation2] sm:$0x1] %vm22, %v21
    %s24 = scalar_lea.vmem %s0, 12
    %v25 = vld [vmem:[%s24] sm:$0x1]
    %26 = vrot.lane.b32.xlu0 %v25, 96
    %v27 = vpop.permute.xlu0 %26
    %vm28 = vcmask 851712
    %29 = vst.msk [vmem:[#allocation2] sm:$0x1] %vm28, %v27
    %s30 = scalar_lea.vmem %s0, 11
    %v31 = vld [vmem:[%s30] sm:$0x1]
    %32 = vrot.lane.b32.xlu0 %v31, 88
    %v33 = vpop.permute.xlu0 %32
    %vm34 = vcmask 786112
    %35 = vst.msk [vmem:[#allocation2] sm:$0x1] %vm34, %v33
    %s36 = scalar_lea.vmem %s0, 10
    %v37 = vld [vmem:[%s36] sm:$0x1]
    %38 = vrot.lane.b32.xlu0 %v37, 80
    %v39 = vpop.permute.xlu0 %38
    %vm40 = vcmask 720512
    %41 = vst.msk [vmem:[#allocation2] sm:$0x1] %vm40, %v39
    %s42 = scalar_lea.vmem %s0, 9
    %v43 = vld [vmem:[%s42] sm:$0x1]
    %44 = vrot.lane.b32.xlu0 %v43, 72
    %v45 = vpop.permute.xlu0 %44
    %vm46 = vcmask 654912
    %47 = vst.msk [vmem:[#allocation2] sm:$0x1] %vm46, %v45
    %s48 = scalar_lea.vmem %s0, 8
    %v49 = vld [vmem:[%s48] sm:$0x1]
    %50 = vrot.lane.b32.xlu0 %v49, 64
    %v51 = vpop.permute.xlu0 %50
    %vm52 = vcmask 589312
    %53 = vst.msk [vmem:[#allocation2] sm:$0x1] %vm52, %v51
    %s54 = scalar_lea.vmem %s0, 7
    %v55 = vld [vmem:[%s54] sm:$0x1]
    %56 = vrot.lane.b32.xlu0 %v55, 56
    %v57 = vpop.permute.xlu0 %56
    %vm58 = vcmask 523712
    %59 = vst.msk [vmem:[#allocation2] sm:$0x1] %vm58, %v57
    %s60 = scalar_lea.vmem %s0, 6
    %v61 = vld [vmem:[%s60] sm:$0x1]
    %62 = vrot.lane.b32.xlu0 %v61, 48
    %v63 = vpop.permute.xlu0 %62
    %vm64 = vcmask 458112
    %65 = vst.msk [vmem:[#allocation2] sm:$0x1] %vm64, %v63
    %s66 = scalar_lea.vmem %s0, 5
    %v67 = vld [vmem:[%s66] sm:$0x1]
    %68 = vrot.lane.b32.xlu0 %v67, 40
    %v69 = vpop.permute.xlu0 %68
    %vm70 = vcmask 392512
    %71 = vst.msk [vmem:[#allocation2] sm:$0x1] %vm70, %v69
    %s72 = scalar_lea.vmem %s0, 4
    %v73 = vld [vmem:[%s72] sm:$0x1]
    %74 = vrot.lane.b32.xlu0 %v73, 32
    %v75 = vpop.permute.xlu0 %74
    %vm76 = vcmask 326912
    %77 = vst.msk [vmem:[#allocation2] sm:$0x1] %vm76, %v75
    %s78 = scalar_lea.vmem %s0, 3
    %v79 = vld [vmem:[%s78] sm:$0x1]
    %80 = vrot.lane.b32.xlu0 %v79, 24
    %v81 = vpop.permute.xlu0 %80
    %vm82 = vcmask 261312
    %83 = vst.msk [vmem:[#allocation2] sm:$0x1] %vm82, %v81
    %s84 = scalar_lea.vmem %s0, 2
    %v85 = vld [vmem:[%s84] sm:$0x1]
    %86 = vrot.lane.b32.xlu0 %v85, 16
    %v87 = vpop.permute.xlu0 %86
    %vm88 = vcmask 195712
    %89 = vst.msk [vmem:[#allocation2] sm:$0x1] %vm88, %v87
    %s90 = scalar_lea.vmem %s0, 1
    %v91 = vld [vmem:[%s90] sm:$0x1]
    %92 = vrot.lane.b32.xlu0 %v91, 8
    %v93 = vpop.permute.xlu0 %92
    %vm94 = vcmask 130112
    %95 = vst.msk [vmem:[#allocation2] sm:$0x1] %vm94, %v93
    %s97 = sshllo.u32 0, 1
    %v99 = vld [vmem:[#allocation2] sm:%s97]
    %s100 = sshllo.u32 0, 1
    %101 = vst [vmem:[#allocation0] sm:%s100] %v99
    %s103 = ssub.s32 16, 16
    %104 = vsyncadd [#allocation1], %s103
    %s106 = sshll.u32 [#allocation0], 4
    %s107 = int_to_ptr.vmem [resolvable:$true] %s106
    %109 = dma.vmem_to_hbm [thread:$0]  %s107, 16, %s1, [#allocation1]
    %110 = dma.done [#allocation1], 16
    %111 = vsyncpa [#allocation1], 1

// kernel: residual_block.5
$region0: #{residual_block.5}
  #allocation0 [shape = 'u32[]', space=smem, size = 0x4, offset = 0x4, fixed_abs, tag = 'smem constant byte address 0x4 - core index']
  #allocation1 [shape = 'u32[144,128]{1,0:T(1,128)}', space=vmem, size = 0x12000, scoped, tag = 'internal scratch']
  %s0 = inlined_call_operand.hbm [shape: f32[32,128], index: 0, kind: input, shape index: {}]
  %s1 = inlined_call_operand.hbm [shape: f32[32,128], index: 1, kind: input, shape index: {}, may-alias: {1,4}]
  %s2 = inlined_call_operand.hbm [shape: f32[1,128], index: 2, kind: input, shape index: {}]
  %s3 = inlined_call_operand.hbm [shape: f32[1,128], index: 3, kind: input, shape index: {}]
  %s4 = inlined_call_operand.hbm [shape: f32[32,128], index: 4, kind: output, shape index: {}, may-alias: {1,4}]
  %s5 = sld [smem:[#allocation0]]
  $region42: #{residual_block.5} parent=0
    _
  %s7 = ssub.s32 1, %s5
  %s8 = scalar_select 0, %s7, %s5
  $region1: #{residual_block.5} parent=0
    #allocation2 [shape = 'u8[16384]{0}', space=vmem, size = 0x4000, scoped, tag = 'input window, operand 0, single buffered']
    #allocation3 [shape = 's32[1]{0}', space=sflag, size = 0x4, scoped, tag = 'scoped memory for residual_block.5']
    #allocation4 [shape = 's32[1]{0}', space=sflag, size = 0x4, scoped, tag = 'scoped memory for residual_block.5']
    #allocation5 [shape = 'u8[16384]{0}', space=vmem, size = 0x4000, scoped, tag = 'input window, operand 1, single buffered']
    #allocation6 [shape = 's32[1]{0}', space=sflag, size = 0x4, scoped, tag = 'scoped memory for residual_block.5']
    #allocation7 [shape = 'u8[512]{0}', space=vmem, size = 0x400, scoped, tag = 'input window, operand 2, single buffered']
    #allocation8 [shape = 'u8[512]{0}', space=vmem, size = 0x400, scoped, tag = 'input window, operand 3, single buffered']
    #allocation9 [shape = 's32[1]{0}', space=sflag, size = 0x4, scoped, tag = 'scoped memory for residual_block.5']
    #allocation10 [shape = 'u8[16384]{0}', space=vmem, size = 0x4000, scoped, tag = 'output window, operand 0, single buffered']
    %9 = vsyncpa [#allocation3], 0
    %10 = vsyncpa [#allocation6], 0
    %11 = vsyncpa [#allocation9], 0
    %12 = vsyncpa [#allocation4], 0
    // Predicated region
    $region2: #{residual_block.5} parent=1 // pred_check
      _
    $region3: #{residual_block.5} parent=1 // pred_check_branch
      %14 = sbr.rel (0) target = $region5
    $region4: #{residual_block.5} parent=1 // pred_region
      %s16 = ssub.s32 512, 512
      %17 = vsyncadd [#allocation3], %s16
      %s18 = sshll.u32 [#allocation2], 4
      %s19 = int_to_ptr.vmem [resolvable:$true] %s18
      %24 = dma.hbm_to_vmem [thread:$0]  %s0, 512, %s19, [#allocation3], 128, 128, 8
    $region5: #{residual_block.5} parent=1 // pred_fallthru
      _
    // Predicated region
    $region6: #{residual_block.5} parent=1 // pred_check
      _
    $region7: #{residual_block.5} parent=1 // pred_check_branch
      %26 = sbr.rel (0) target = $region9
    $region8: #{residual_block.5} parent=1 // pred_region
      %s28 = ssub.s32 512, 512
      %29 = vsyncadd [#allocation6], %s28
      %s30 = sshll.u32 [#allocation5], 4
      %s31 = int_to_ptr.vmem [resolvable:$true] %s30
      %36 = dma.hbm_to_vmem [thread:$0]  %s1, 512, %s31, [#allocation6], 128, 128, 8
    $region9: #{residual_block.5} parent=1 // pred_fallthru
      _
    // Predicated region
    $region10: #{residual_block.5} parent=1 // pred_check
      _
    $region11: #{residual_block.5} parent=1 // pred_check_branch
      %38 = sbr.rel (0) target = $region13
    $region12: #{residual_block.5} parent=1 // pred_region
      %s40 = ssub.s32 16, 16
      %41 = vsyncadd [#allocation6], %s40
      %s43 = sshll.u32 [#allocation7], 4
      %s44 = int_to_ptr.vmem [resolvable:$true] %s43
      %46 = dma.hbm_to_vmem [thread:$0]  %s2, 16, %s44, [#allocation6]
    $region13: #{residual_block.5} parent=1 // pred_fallthru
      _
    // Predicated region
    $region14: #{residual_block.5} parent=1 // pred_check
      _
    $region15: #{residual_block.5} parent=1 // pred_check_branch
      %48 = sbr.rel (0) target = $region17
    $region16: #{residual_block.5} parent=1 // pred_region
      %s50 = ssub.s32 16, 16
      %51 = vsyncadd [#allocation9], %s50
      %s53 = sshll.u32 [#allocation8], 4
      %s54 = int_to_ptr.vmem [resolvable:$true] %s53
      %56 = dma.hbm_to_vmem [thread:$0]  %s3, 16, %s54, [#allocation9]
    $region17: #{residual_block.5} parent=1 // pred_fallthru
      _
    // Predicated region
    $region18: #{residual_block.5} parent=1 // pred_check
      _
    $region19: #{residual_block.5} parent=1 // pred_check_branch
      %58 = sbr.rel (0) target = $region21
    $region20: #{residual_block.5} parent=1 // pred_region
      %59 = dma.done [#allocation3], 512
    $region21: #{residual_block.5} parent=1 // pred_fallthru
      _
    // Predicated region
    $region22: #{residual_block.5} parent=1 // pred_check
      _
    $region23: #{residual_block.5} parent=1 // pred_check_branch
      %61 = sbr.rel (0) target = $region25
    $region24: #{residual_block.5} parent=1 // pred_region
      %62 = dma.done [#allocation6], 512
    $region25: #{residual_block.5} parent=1 // pred_fallthru
      _
    // Predicated region
    $region26: #{residual_block.5} parent=1 // pred_check
      _
    $region27: #{residual_block.5} parent=1 // pred_check_branch
      %64 = sbr.rel (0) target = $region29
    $region28: #{residual_block.5} parent=1 // pred_region
      %65 = dma.done [#allocation6], 16
    $region29: #{residual_block.5} parent=1 // pred_fallthru
      _
    // Predicated region
    $region30: #{residual_block.5} parent=1 // pred_check
      _
    $region31: #{residual_block.5} parent=1 // pred_check_branch
      %67 = sbr.rel (0) target = $region33
    $region32: #{residual_block.5} parent=1 // pred_region
      %68 = dma.done [#allocation9], 16
    $region33: #{residual_block.5} parent=1 // pred_fallthru
      _
    %v69 = vld [vmem:[#allocation2] sm:$0xff]
    %v70 = vld [vmem:[#allocation2 + $0x8] sm:$0xff]
    %v71 = vld [vmem:[#allocation2 + $0x10] sm:$0xff]
    %v72 = vld [vmem:[#allocation2 + $0x18] sm:$0xff]
    %v73 = vld [vmem:[#allocation7] sm:$0x1]
    %v75 = vlaneseq
    %v76 = vshrl.u32 %v75, 7
    %v77 = vsub.s32 0, %v76
    %v78 = vrot.slane %v73, %v77
    %v80 = vmul.f32 %v69, %v78
    %v81 = vmul.f32 %v70, %v78
    %v82 = vmul.f32 %v71, %v78
    %v83 = vmul.f32 %v72, %v78
    %v84 = vld [vmem:[#allocation8] sm:$0x1]
    %v86 = vlaneseq
    %v87 = vshrl.u32 %v86, 7
    %v88 = vsub.s32 0, %v87
    %v89 = vrot.slane %v84, %v88
    %v91 = vadd.f32 %v80, %v89
    %v92 = vadd.f32 %v81, %v89
    %v93 = vadd.f32 %v82, %v89
    %v94 = vadd.f32 %v83, %v89
    %v95 = vld [vmem:[#allocation5] sm:$0xff]
    %v96 = vld [vmem:[#allocation5 + $0x8] sm:$0xff]
    %v97 = vld [vmem:[#allocation5 + $0x10] sm:$0xff]
    %v98 = vld [vmem:[#allocation5 + $0x18] sm:$0xff]
    %v99 = vadd.f32 %v91, %v95
    %v100 = vadd.f32 %v92, %v96
    %v101 = vadd.f32 %v93, %v97
    %v102 = vadd.f32 %v94, %v98
    %v103 = vmax.f32 %v99, 0.0
    %v104 = vmax.f32 %v100, 0.0
    %v105 = vmax.f32 %v101, 0.0
    %v106 = vmax.f32 %v102, 0.0
    %107 = vst [vmem:[#allocation10] sm:$0xff] %v103
    %108 = vst [vmem:[#allocation10 + $0x8] sm:$0xff] %v104
    %109 = vst [vmem:[#allocation10 + $0x10] sm:$0xff] %v105
    %110 = vst [vmem:[#allocation10 + $0x18] sm:$0xff] %v106
    // Predicated region
    $region34: #{residual_block.5} parent=1 // pred_check
      _
    $region35: #{residual_block.5} parent=1 // pred_check_branch
      %112 = sbr.rel (0) target = $region37
    $region36: #{residual_block.5} parent=1 // pred_region
      %s114 = ssub.s32 512, 512
      %115 = vsyncadd [#allocation4], %s114
      %s116 = sshll.u32 [#allocation10], 4
      %s117 = int_to_ptr.vmem [resolvable:$true] %s116
      %122 = dma.vmem_to_hbm [thread:$0]  %s117, 512, %s4, [#allocation4], 128, 128, 8
    $region37: #{residual_block.5} parent=1 // pred_fallthru
      _
    // Predicated region
    $region38: #{residual_block.5} parent=1 // pred_check
      _
    $region39: #{residual_block.5} parent=1 // pred_check_branch
      %124 = sbr.rel (0) target = $region41
    $region40: #{residual_block.5} parent=1 // pred_region
      %125 = dma.done [#allocation4], 512
    $region41: #{residual_block.5} parent=1 // pred_fallthru
      _
    %126 = vsyncpa [#allocation3], 1
    %127 = vsyncpa [#allocation6], 1
    %128 = vsyncpa [#allocation9], 1
    %129 = vsyncpa [#allocation4], 1

// kernel: residual_block.4
$region0: #{residual_block.4}
  #allocation0 [shape = 'u32[]', space=smem, size = 0x4, offset = 0x4, fixed_abs, tag = 'smem constant byte address 0x4 - core index']
  #allocation1 [shape = 'u32[144,128]{1,0:T(1,128)}', space=vmem, size = 0x12000, scoped, tag = 'internal scratch']
  %s0 = inlined_call_operand.hbm [shape: f32[2,16,16,8], index: 0, kind: input, shape index: {}]
  %s1 = inlined_call_operand.hbm [shape: f32[1,8], index: 1, kind: input, shape index: {}]
  %s2 = inlined_call_operand.hbm [shape: f32[1,8], index: 2, kind: input, shape index: {}]
  %s3 = inlined_call_operand.hbm [shape: bf16[72,8], index: 3, kind: input, shape index: {}]
  %s4 = inlined_call_operand.hbm [shape: f32[2,16,16,8], index: 4, kind: output, shape index: {0}]
  %s5 = inlined_call_operand.hbm [shape: f32[2,2,8], index: 5, kind: output, shape index: {1}]
  %6 = xla_tuple %s4, %s5
  %s7 = sld [smem:[#allocation0]]
  $region73: #{residual_block.4} parent=0
    _
  %s9 = ssub.s32 1, %s7
  %s10 = scalar_select 0, %s9, %s7
  $region1: #{residual_block.4} parent=0
    #allocation2 [shape = 'u8[262144]{0}', space=vmem, size = 0x40000, scoped, tag = 'input window, operand 0']
    #allocation3 [shape = 's32[2]{0}', space=sflag, size = 0x8, scoped, tag = 'scoped memory for residual_block.4']
    #allocation4 [shape = 's32[2]{0}', space=sflag, size = 0x8, scoped, tag = 'scoped memory for residual_block.4']
    #allocation5 [shape = 'u8[512]{0}', space=vmem, size = 0x400, scoped, tag = 'input window, operand 1, single buffered']
    #allocation6 [shape = 's32[1]{0}', space=sflag, size = 0x4, scoped, tag = 'scoped memory for residual_block.4']
    #allocation7 [shape = 'u8[512]{0}', space=vmem, size = 0x400, scoped, tag = 'input window, operand 2, single buffered']
    #allocation8 [shape = 'u8[18432]{0}', space=vmem, size = 0x4800, scoped, tag = 'input window, operand 3, single buffered']
    #allocation9 [shape = 's32[1]{0}', space=sflag, size = 0x4, scoped, tag = 'scoped memory for residual_block.4']
    #allocation10 [shape = 'u8[262144]{0}', space=vmem, size = 0x40000, scoped, tag = 'output window, operand 0']
    #allocation11 [shape = 'u8[2048]{0}', space=vmem, size = 0x800, scoped, tag = 'output window, operand 1']
    #allocation12 [shape = 's32[2]{0}', space=sflag, size = 0x8, scoped, tag = 'scoped memory for residual_block.4']
    %11 = vsyncpa [#allocation3], 0
    %s12 = scalar_lea.sflag [#allocation3], 1
    %13 = vsyncpa %s12, 0
    %14 = vsyncpa [#allocation6], 0
    %15 = vsyncpa [#allocation9], 0
    %16 = vsyncpa [#allocation4], 0
    %s17 = scalar_lea.sflag [#allocation4], 1
    %18 = vsyncpa %s17, 0
    %19 = vsyncpa [#allocation12], 0
    %s20 = scalar_lea.sflag [#allocation12], 1
    %21 = vsyncpa %s20, 0
    loop: start=0, step=1, limit=4
    $region2: #{residual_block.4} parent=1 // loop_pre_header
      _
    $region3: #{residual_block.4} parent=1 // loop_header
      %s23 = sphi 0, %s27
      %p24 = scmp.ge.s32.totalorder %s23, 4
      %s33 = sphi 0, %s35
      %s36 = sphi 0, %s33
      %s37 = sphi 0, %s36
      %s53 = sphi 0, %s37
      %s57 = sphi 0, %s57
      %s59 = sphi 0, %s57
      %s60 = sphi 0, %s59
      %s74 = sphi 0, %s60
      %s78 = sphi 0, %s78
      %s80 = sphi 0, %s78
      %s81 = sphi 0, %s80
      %s95 = sphi 0, %s81
      %s99 = sphi 0, %s99
      %s101 = sphi 0, %s99
      %s102 = sphi 0, %s101
      %s116 = sphi 0, %s102
      %s122 = sphi 0, %s124
      %s125 = sphi 0, %s122
      %s126 = sphi 0, %s125
      %s142 = sphi 0, %s126
      %s148 = sphi 0, %s150
      %s151 = sphi 0, %s148
      %s152 = sphi 0, %s151
      %s168 = sphi 0, %s152
    $region4: #{residual_block.4} parent=1 // loop_header_branch
      %26 = sbr.rel (%p24) target = $region8
    $region5: #{residual_block.4} parent=1 // loop_body
      %s28 = ssub.s32 %s23, 1
      %s29 = ssub.s32 %s23, 2
      %s30 = sadd.s32 %s23, 1
      %s31 = ssub.s32 %s23, %s30
      %p32 = scmp.eq.s32.totalorder %s31, 0
      %s34 = sadd.s32 %s33, 1
      %s35 = scalar_select %p32, %s33, %s34
      %p38 = pneg %p32
      %p39 = scmp.eq.s32.totalorder %s23, 1
      %p40 = por %p38, %p39
      %p41 = scmp.ne.s32.totalorder %s33, %s36
      %p42 = scmp.eq.s32.totalorder %s23, 0
      %p43 = por %p41, %p42
      %p44 = scmp.ne.s32.totalorder %s33, %s36
      %p45 = scmp.eq.s32.totalorder %s28, 1
      %p46 = por %p44, %p45
      %p47 = scmp.ne.s32.totalorder %s36, %s37
      %p48 = scmp.eq.s32.totalorder %s28, 0
      %p49 = por %p47, %p48
      %p50 = scmp.ne.s32.totalorder %s36, %s37
      %p51 = scmp.eq.s32.totalorder %s29, 1
      %p52 = por %p50, %p51
      %p54 = scmp.ne.s32.totalorder %s37, %s53
      %p55 = scmp.eq.s32.totalorder %s29, 0
      %p56 = por %p54, %p55
      %s58 = sadd.s32 %s57, 1
      %p61 = scmp.eq.s32.totalorder %s23, 1
      %p62 = scmp.ne.s32.totalorder %s57, %s59
      %p63 = scmp.eq.s32.totalorder %s23, 0
      %p64 = por %p62, %p63
      %p65 = scmp.ne.s32.totalorder %s57, %s59
      %p66 = scmp.eq.s32.totalorder %s28, 1
      %p67 = por %p65, %p66
      %p68 = scmp.ne.s32.totalorder %s59, %s60
      %p69 = scmp.eq.s32.totalorder %s28, 0
      %p70 = por %p68, %p69
      %p71 = scmp.ne.s32.totalorder %s59, %s60
      %p72 = scmp.eq.s32.totalorder %s29, 1
      %p73 = por %p71, %p72
      %p75 = scmp.ne.s32.totalorder %s60, %s74
      %p76 = scmp.eq.s32.totalorder %s29, 0
      %p77 = por %p75, %p76
      %s79 = sadd.s32 %s78, 1
      %p82 = scmp.eq.s32.totalorder %s23, 1
      %p83 = scmp.ne.s32.totalorder %s78, %s80
      %p84 = scmp.eq.s32.totalorder %s23, 0
      %p85 = por %p83, %p84
      %p86 = scmp.ne.s32.totalorder %s78, %s80
      %p87 = scmp.eq.s32.totalorder %s28, 1
      %p88 = por %p86, %p87
      %p89 = scmp.ne.s32.totalorder %s80, %s81
      %p90 = scmp.eq.s32.totalorder %s28, 0
      %p91 = por %p89, %p90
      %p92 = scmp.ne.s32.totalorder %s80, %s81
      %p93 = scmp.eq.s32.totalorder %s29, 1
      %p94 = por %p92, %p93
      %p96 = scmp.ne.s32.totalorder %s81, %s95
      %p97 = scmp.eq.s32.totalorder %s29, 0
      %p98 = por %p96, %p97
      %s100 = sadd.s32 %s99, 1
      %p103 = scmp.eq.s32.totalorder %s23, 1
      %p104 = scmp.ne.s32.totalorder %s99, %s101
      %p105 = scmp.eq.s32.totalorder %s23, 0
      %p106 = por %p104, %p105
      %p107 = scmp.ne.s32.totalorder %s99, %s101
      %p108 = scmp.eq.s32.totalorder %s28, 1
      %p109 = por %p107, %p108
      %p110 = scmp.ne.s32.totalorder %s101, %s102
      %p111 = scmp.eq.s32.totalorder %s28, 0
      %p112 = por %p110, %p111
      %p113 = scmp.ne.s32.totalorder %s101, %s102
      %p114 = scmp.eq.s32.totalorder %s29, 1
      %p115 = por %p113, %p114
      %p117 = scmp.ne.s32.totalorder %s102, %s116
      %p118 = scmp.eq.s32.totalorder %s29, 0
      %p119 = por %p117, %p118
      %s120 = ssub.s32 %s23, %s30
      %p121 = scmp.eq.s32.totalorder %s120, 0
      %s123 = sadd.s32 %s122, 1
      %s124 = scalar_select %p121, %s122, %s123
      %p127 = pneg %p121
      %p128 = scmp.eq.s32.totalorder %s23, 1
      %p129 = por %p127, %p128
      %p130 = scmp.ne.s32.totalorder %s122, %s125
      %p131 = scmp.eq.s32.totalorder %s23, 0
      %p132 = por %p130, %p131
      %p133 = scmp.ne.s32.totalorder %s122, %s125
      %p134 = scmp.eq.s32.totalorder %s28, 1
      %p135 = por %p133, %p134
      %p136 = scmp.ne.s32.totalorder %s125, %s126
      %p137 = scmp.eq.s32.totalorder %s28, 0
      %p138 = por %p136, %p137
      %p139 = scmp.ne.s32.totalorder %s125, %s126
      %p140 = scmp.eq.s32.totalorder %s29, 1
      %p141 = por %p139, %p140
      %p143 = scmp.ne.s32.totalorder %s126, %s142
      %p144 = scmp.eq.s32.totalorder %s29, 0
      %p145 = por %p143, %p144
      %s146 = ssub.s32 %s23, %s30
      %p147 = scmp.eq.s32.totalorder %s146, 0
      %s149 = sadd.s32 %s148, 1
      %s150 = scalar_select %p147, %s148, %s149
      %p153 = pneg %p147
      %p154 = scmp.eq.s32.totalorder %s23, 1
      %p155 = por %p153, %p154
      %p156 = scmp.ne.s32.totalorder %s148, %s151
      %p157 = scmp.eq.s32.totalorder %s23, 0
      %p158 = por %p156, %p157
      %p159 = scmp.ne.s32.totalorder %s148, %s151
      %p160 = scmp.eq.s32.totalorder %s28, 1
      %p161 = por %p159, %p160
      %p162 = scmp.ne.s32.totalorder %s151, %s152
      %p163 = scmp.eq.s32.totalorder %s28, 0
      %p164 = por %p162, %p163
      %p165 = scmp.ne.s32.totalorder %s151, %s152
      %p166 = scmp.eq.s32.totalorder %s29, 1
      %p167 = por %p165, %p166
      %p169 = scmp.ne.s32.totalorder %s152, %s168
      %p170 = scmp.eq.s32.totalorder %s29, 0
      %p171 = por %p169, %p170
      %p172 = scmp.le.s32.totalorder 1, %s23
      %p173 = scmp.lt.s32.totalorder %s23, 3
      %p174 = pnand %p172, %p173
      %p175 = pneg %p174
      // Predicated region
      $region9: #{residual_block.4} parent=5 // pred_check
        _
      $region10: #{residual_block.4} parent=5 // pred_check_branch
        %177 = sbr.rel (%p174) target = $region12
      $region11: #{residual_block.4} parent=5 // pred_region
        %s178 = ssub.s32 %s23, 1
        // Predicated region
        $region13: #{residual_block.4} parent=11 // pred_check
          %p179 = pneg %p70
        $region14: #{residual_block.4} parent=11 // pred_check_branch
          %181 = sbr.rel (%p179) target = $region16
        $region15: #{residual_block.4} parent=11 // pred_region
          %s183 = ssub.s32 16, 16
          %184 = vsyncadd [#allocation6], %s183
          %s186 = sshll.u32 [#allocation5], 4
          %s187 = int_to_ptr.vmem [resolvable:$true] %s186
          %189 = dma.hbm_to_vmem [thread:$0]  %s1, 16, %s187, [#allocation6]
        $region16: #{residual_block.4} parent=11 // pred_fallthru
          _
        // Predicated region
        $region17: #{residual_block.4} parent=11 // pred_check
          %p190 = pneg %p91
        $region18: #{residual_block.4} parent=11 // pred_check_branch
          %192 = sbr.rel (%p190) target = $region20
        $region19: #{residual_block.4} parent=11 // pred_region
          %s194 = ssub.s32 16, 16
          %195 = vsyncadd [#allocation6], %s194
          %s197 = sshll.u32 [#allocation7], 4
          %s198 = int_to_ptr.vmem [resolvable:$true] %s197
          %200 = dma.hbm_to_vmem [thread:$0]  %s2, 16, %s198, [#allocation6]
        $region20: #{residual_block.4} parent=11 // pred_fallthru
          _
        // Predicated region
        $region21: #{residual_block.4} parent=11 // pred_check
          %p201 = pneg %p112
        $region22: #{residual_block.4} parent=11 // pred_check_branch
          %203 = sbr.rel (%p201) target = $region24
        $region23: #{residual_block.4} parent=11 // pred_region
          %s205 = ssub.s32 576, 576
          %206 = vsyncadd [#allocation9], %s205
          %s207 = sshll.u32 [#allocation8], 4
          %s208 = int_to_ptr.vmem [resolvable:$true] %s207
          %213 = dma.hbm_to_vmem [thread:$0]  %s3, 576, %s208, [#allocation9], 64, 64, 4
        $region24: #{residual_block.4} parent=11 // pred_fallthru
          _
      $region12: #{residual_block.4} parent=5 // pred_fallthru
        _
      %p214 = scmp.lt.s32.totalorder %s23, 2
      // Predicated region
      $region25: #{residual_block.4} parent=5 // pred_check
        %p215 = pneg %p214
      $region26: #{residual_block.4} parent=5 // pred_check_branch
        %217 = sbr.rel (%p215) target = $region28
      $region27: #{residual_block.4} parent=5 // pred_region
        // Predicated region
        $region29: #{residual_block.4} parent=27 // pred_check
          %p218 = pneg %p43
        $region30: #{residual_block.4} parent=27 // pred_check_branch
          %220 = sbr.rel (%p218) target = $region32
        $region31: #{residual_block.4} parent=27 // pred_region
          %s221 = sand.u32 %s33, 1
          %s222 = scalar_lea.sflag [#allocation3], %s221
          %s223 = sand.u32 %s33, 1
          %s224 = smul.addr %s223, 256
          %s225 = scalar_lea.vmem [#allocation2], %s224
          %s227 = ssub.s32 4096, 4096
          %228 = vsyncadd %s222, %s227
          %s229 = smul.addr %s23, 32
          %s230 = smul.addr %s229, 128
          %s231 = scalar_lea.hbm %s0, %s230
          %s232 = sshll.u32 %s225, 4
          %s233 = int_to_ptr.vmem [resolvable:$true] %s232
          %238 = dma.hbm_to_vmem [thread:$0]  %s231, 4096, %s233, %s222, 128, 128, 8
        $region32: #{residual_block.4} parent=27 // pred_fallthru
          _
      $region28: #{residual_block.4} parent=5 // pred_fallthru
        _
      %p239 = scmp.le.s32.totalorder 1, %s23
      %p240 = scmp.lt.s32.totalorder %s23, 3
      %p241 = pnand %p239, %p240
      %p242 = pneg %p241
      // Predicated region
      $region33: #{residual_block.4} parent=5 // pred_check
        _
      $region34: #{residual_block.4} parent=5 // pred_check_branch
        %244 = sbr.rel (%p241) target = $region36
      $region35: #{residual_block.4} parent=5 // pred_region
        %s245 = ssub.s32 %s23, 1
        %s246 = sand.u32 %s36, 1
        %s247 = scalar_lea.sflag [#allocation3], %s246
        %s248 = sand.u32 %s36, 1
        %s249 = smul.addr %s248, 256
        %s250 = scalar_lea.vmem [#allocation2], %s249
        // Predicated region
        $region37: #{residual_block.4} parent=35 // pred_check
          %p251 = pneg %p49
        $region38: #{residual_block.4} parent=35 // pred_check_branch
          %253 = sbr.rel (%p251) target = $region40
        $region39: #{residual_block.4} parent=35 // pred_region
          %254 = dma.done %s247, 4096
        $region40: #{residual_block.4} parent=35 // pred_fallthru
          _
        // Predicated region
        $region41: #{residual_block.4} parent=35 // pred_check
          %p255 = pneg %p70
        $region42: #{residual_block.4} parent=35 // pred_check_branch
          %257 = sbr.rel (%p255) target = $region44
        $region43: #{residual_block.4} parent=35 // pred_region
          %258 = dma.done [#allocation6], 16
        $region44: #{residual_block.4} parent=35 // pred_fallthru
          _
        // Predicated region
        $region45: #{residual_block.4} parent=35 // pred_check
          %p259 = pneg %p91
        $region46: #{residual_block.4} parent=35 // pred_check_branch
          %261 = sbr.rel (%p259) target = $region48
        $region47: #{residual_block.4} parent=35 // pred_region
          %262 = dma.done [#allocation6], 16
        $region48: #{residual_block.4} parent=35 // pred_fallthru
          _
        // Predicated region
        $region49: #{residual_block.4} parent=35 // pred_check
          %p263 = pneg %p112
        $region50: #{residual_block.4} parent=35 // pred_check_branch
          %265 = sbr.rel (%p263) target = $region52
        $region51: #{residual_block.4} parent=35 // pred_region
          %266 = dma.done [#allocation9], 576
        $region52: #{residual_block.4} parent=35 // pred_fallthru
          _
        %s267 = sand.u32 %s36, 1
        %s268 = scalar_lea.sflag [#allocation3], %s267
        %s269 = sand.u32 %s36, 1
        %s270 = smul.addr %s269, 256
        %s271 = scalar_lea.vmem [#allocation2], %s270
        %p272 = pneg %p49
        %p273 = pneg %p46
        %p274 = pneg %p70
        %p275 = pneg %p67
        %p276 = pneg %p91
        %p277 = pneg %p88
        %p278 = pneg %p112
        %p279 = pneg %p109
        %p280 = pneg %p138
        %p281 = pneg %p135
        %s282 = sand.u32 %s125, 1
        %s283 = scalar_lea.sflag [#allocation4], %s282
        %s284 = sand.u32 %s125, 1
        %s285 = smul.addr %s284, 256
        %s286 = scalar_lea.vmem [#allocation10], %s285
        %p287 = pneg %p164
        %p288 = pneg %p161
        %s289 = sand.u32 %s151, 1
        %s290 = scalar_lea.sflag [#allocation12], %s289
        %s291 = sand.u32 %s151, 1
        %s292 = smul.addr %s291, 2
        %s293 = scalar_lea.vmem [#allocation11], %s292
        %v295 = vld [vmem:[%s250] sm:$0xff]
        %v296 = vld [vmem:[%s250 + $0x8] sm:$0xff]
        %v297 = vld [vmem:[%s250 + $0x10] sm:$0xff]
        %v298 = vld [vmem:[%s250 + $0x18] sm:$0xff]
        %v299 = vld [vmem:[%s250 + $0x20] sm:$0xff]
        %v300 = vld [vmem:[%s250 + $0x28] sm:$0xff]
        %v301 = vld [vmem:[%s250 + $0x30] sm:$0xff]
        %v302 = vld [vmem:[%s250 + $0x38] sm:$0xff]
        %v303 = vld [vmem:[%s250 + $0x40] sm:$0xff]
        %v304 = vld [vmem:[%s250 + $0x48] sm:$0xff]
        %v305 = vld [vmem:[%s250 + $0x50] sm:$0xff]
        %v306 = vld [vmem:[%s250 + $0x58] sm:$0xff]
        %v307 = vld [vmem:[%s250 + $0x60] sm:$0xff]
        %v308 = vld [vmem:[%s250 + $0x68] sm:$0xff]
        %v309 = vld [vmem:[%s250 + $0x70] sm:$0xff]
        %v310 = vld [vmem:[%s250 + $0x78] sm:$0xff]
        %v311 = vld [vmem:[%s250 + $0x80] sm:$0xff]
        %v312 = vld [vmem:[%s250 + $0x88] sm:$0xff]
        %v313 = vld [vmem:[%s250 + $0x90] sm:$0xff]
        %v314 = vld [vmem:[%s250 + $0x98] sm:$0xff]
        %v315 = vld [vmem:[%s250 + $0xa0] sm:$0xff]
        %v316 = vld [vmem:[%s250 + $0xa8] sm:$0xff]
        %v317 = vld [vmem:[%s250 + $0xb0] sm:$0xff]
        %v318 = vld [vmem:[%s250 + $0xb8] sm:$0xff]
        %v319 = vld [vmem:[%s250 + $0xc0] sm:$0xff]
        %v320 = vld [vmem:[%s250 + $0xc8] sm:$0xff]
        %v321 = vld [vmem:[%s250 + $0xd0] sm:$0xff]
        %v322 = vld [vmem:[%s250 + $0xd8] sm:$0xff]
        %v323 = vld [vmem:[%s250 + $0xe0] sm:$0xff]
        %v324 = vld [vmem:[%s250 + $0xe8] sm:$0xff]
        %v325 = vld [vmem:[%s250 + $0xf0] sm:$0xff]
        %v326 = vld [vmem:[%s250 + $0xf8] sm:$0xff]
        %v327 = vld [vmem:[#allocation5] sm:$0x1]
        %v329 = vlaneseq
        %v330 = vshrl.u32 %v329, 7
        %v331 = vsub.s32 0, %v330
        %v332 = vrot.slane %v327, %v331
        %v334 = vmul.f32 %v295, %v332
        %v335 = vmul.f32 %v296, %v332
        %v336 = vmul.f32 %v297, %v332
        %v337 = vmul.f32 %v298, %v332
        %v338 = vmul.f32 %v299, %v332
        %v339 = vmul.f32 %v300, %v332
        %v340 = vmul.f32 %v301, %v332
        %v341 = vmul.f32 %v302, %v332
        %v342 = vmul.f32 %v303, %v332
        %v343 = vmul.f32 %v304, %v332
        %v344 = vmul.f32 %v305, %v332
        %v345 = vmul.f32 %v306, %v332
        %v346 = vmul.f32 %v307, %v332
        %v347 = vmul.f32 %v308, %v332
        %v348 = vmul.f32 %v309, %v332
        %v349 = vmul.f32 %v310, %v332
        %v350 = vmul.f32 %v311, %v332
        %v351 = vmul.f32 %v312, %v332
        %v352 = vmul.f32 %v313, %v332
        %v353 = vmul.f32 %v314, %v332
        %v354 = vmul.f32 %v315, %v332
        %v355 = vmul.f32 %v316, %v332
        %v356 = vmul.f32 %v317, %v332
        %v357 = vmul.f32 %v318, %v332
        %v358 = vmul.f32 %v319, %v332
        %v359 = vmul.f32 %v320, %v332
        %v360 = vmul.f32 %v321, %v332
        %v361 = vmul.f32 %v322, %v332
        %v362 = vmul.f32 %v323, %v332
        %v363 = vmul.f32 %v324, %v332
        %v364 = vmul.f32 %v325, %v332
        %v365 = vmul.f32 %v326, %v332
        %v366 = vld [vmem:[#allocation7] sm:$0x1]
        %v368 = vlaneseq
        %v369 = vshrl.u32 %v368, 7
        %v370 = vsub.s32 0, %v369
        %v371 = vrot.slane %v366, %v370
        %v373 = vadd.f32 %v334, %v371
        %v374 = vadd.f32 %v335, %v371
        %v375 = vadd.f32 %v336, %v371
        %v376 = vadd.f32 %v337, %v371
        %v377 = vadd.f32 %v338, %v371
        %v378 = vadd.f32 %v339, %v371
        %v379 = vadd.f32 %v340, %v371
        %v380 = vadd.f32 %v341, %v371
        %v381 = vadd.f32 %v342, %v371
        %v382 = vadd.f32 %v343, %v371
        %v383 = vadd.f32 %v344, %v371
        %v384 = vadd.f32 %v345, %v371
        %v385 = vadd.f32 %v346, %v371
        %v386 = vadd.f32 %v347, %v371
        %v387 = vadd.f32 %v348, %v371
        %v388 = vadd.f32 %v349, %v371
        %v389 = vadd.f32 %v350, %v371
        %v390 = vadd.f32 %v351, %v371
        %v391 = vadd.f32 %v352, %v371
        %v392 = vadd.f32 %v353, %v371
        %v393 = vadd.f32 %v354, %v371
        %v394 = vadd.f32 %v355, %v371
        %v395 = vadd.f32 %v356, %v371
        %v396 = vadd.f32 %v357, %v371
        %v397 = vadd.f32 %v358, %v371
        %v398 = vadd.f32 %v359, %v371
        %v399 = vadd.f32 %v360, %v371
        %v400 = vadd.f32 %v361, %v371
        %v401 = vadd.f32 %v362, %v371
        %v402 = vadd.f32 %v363, %v371
        %v403 = vadd.f32 %v364, %v371
        %v404 = vadd.f32 %v365, %v371
        %v405 = vmax.f32 %v373, 0.0
        %v406 = vmax.f32 %v374, 0.0
        %v407 = vmax.f32 %v375, 0.0
        %v408 = vmax.f32 %v376, 0.0
        %v409 = vmax.f32 %v377, 0.0
        %v410 = vmax.f32 %v378, 0.0
        %v411 = vmax.f32 %v379, 0.0
        %v412 = vmax.f32 %v380, 0.0
        %v413 = vmax.f32 %v381, 0.0
        %v414 = vmax.f32 %v382, 0.0
        %v415 = vmax.f32 %v383, 0.0
        %v416 = vmax.f32 %v384, 0.0
        %v417 = vmax.f32 %v385, 0.0
        %v418 = vmax.f32 %v386, 0.0
        %v419 = vmax.f32 %v387, 0.0
        %v420 = vmax.f32 %v388, 0.0
        %v421 = vmax.f32 %v389, 0.0
        %v422 = vmax.f32 %v390, 0.0
        %v423 = vmax.f32 %v391, 0.0
        %v424 = vmax.f32 %v392, 0.0
        %v425 = vmax.f32 %v393, 0.0
        %v426 = vmax.f32 %v394, 0.0
        %v427 = vmax.f32 %v395, 0.0
        %v428 = vmax.f32 %v396, 0.0
        %v429 = vmax.f32 %v397, 0.0
        %v430 = vmax.f32 %v398, 0.0
        %v431 = vmax.f32 %v399, 0.0
        %v432 = vmax.f32 %v400, 0.0
        %v433 = vmax.f32 %v401, 0.0
        %v434 = vmax.f32 %v402, 0.0
        %v435 = vmax.f32 %v403, 0.0
        %v436 = vmax.f32 %v404, 0.0
        %v437 = vlaneseq
        %v438 = vshrl.u32 %v437, 7
        %v439 = vadd.s32 %v438, 8
        %vm440 = vcmp.gt.s32.totalorder %v438, 0
        %vm441 = vcmp.gt.s32.totalorder %v439, 0
        %v442 = vrot.slane %v405, 7
        %v443 = vrot.slane %v406, 7
        %v444 = vrot.slane %v407, 7
        %v445 = vrot.slane %v408, 7
        %v446 = vrot.slane %v409, 7
        %v447 = vrot.slane %v410, 7
        %v448 = vrot.slane %v411, 7
        %v449 = vrot.slane %v412, 7
        %v450 = vrot.slane %v413, 7
        %v451 = vrot.slane %v414, 7
        %v452 = vrot.slane %v415, 7
        %v453 = vrot.slane %v416, 7
        %v454 = vrot.slane %v417, 7
        %v455 = vrot.slane %v418, 7
        %v456 = vrot.slane %v419, 7
        %v457 = vrot.slane %v420, 7
        %v458 = vrot.slane %v421, 7
        %v459 = vrot.slane %v422, 7
        %v460 = vrot.slane %v423, 7
        %v461 = vrot.slane %v424, 7
        %v462 = vrot.slane %v425, 7
        %v463 = vrot.slane %v426, 7
        %v464 = vrot.slane %v427, 7
        %v465 = vrot.slane %v428, 7
        %v466 = vrot.slane %v429, 7
        %v467 = vrot.slane %v430, 7
        %v468 = vrot.slane %v431, 7
        %v469 = vrot.slane %v432, 7
        %v470 = vrot.slane %v433, 7
        %v471 = vrot.slane %v434, 7
        %v472 = vrot.slane %v435, 7
        %v473 = vrot.slane %v436, 7
        %vm474 = vcmp.lt.s32.totalorder %v438, 1
        %v475 = vsel %vm474, %v472, %v473
        %v476 = vsel %vm474, %v471, %v472
        %v477 = vsel %vm474, %v470, %v471
        %v478 = vsel %vm474, %v469, %v470
        %v479 = vsel %vm474, %v468, %v469
        %v480 = vsel %vm474, %v467, %v468
        %v481 = vsel %vm474, %v466, %v467
        %v482 = vsel %vm474, %v465, %v466
        %v483 = vsel %vm474, %v464, %v465
        %v484 = vsel %vm474, %v463, %v464
        %v485 = vsel %vm474, %v462, %v463
        %v486 = vsel %vm474, %v461, %v462
        %v487 = vsel %vm474, %v460, %v461
        %v488 = vsel %vm474, %v459, %v460
        %v489 = vsel %vm474, %v458, %v459
        %v490 = vsel %vm474, %v457, %v458
        %v491 = vsel %vm474, %v456, %v457
        %v492 = vsel %vm474, %v455, %v456
        %v493 = vsel %vm474, %v454, %v455
        %v494 = vsel %vm474, %v453, %v454
        %v495 = vsel %vm474, %v452, %v453
        %v496 = vsel %vm474, %v451, %v452
        %v497 = vsel %vm474, %v450, %v451
        %v498 = vsel %vm474, %v449, %v450
        %v499 = vsel %vm474, %v448, %v449
        %v500 = vsel %vm474, %v447, %v448
        %v501 = vsel %vm474, %v446, %v447
        %v502 = vsel %vm474, %v445, %v446
        %v503 = vsel %vm474, %v444, %v445
        %v504 = vsel %vm474, %v443, %v444
        %v505 = vsel %vm474, %v442, %v443
        %v506 = vsel %vm474, %v473, %v442
        %v507 = vsel %vm440, %v506, 0.0
        %v508 = vsel %vm441, %v505, 0.0
        %v509 = vsel %vm440, %v504, 0.0
        %v510 = vsel %vm441, %v503, 0.0
        %v511 = vsel %vm440, %v502, 0.0
        %v512 = vsel %vm441, %v501, 0.0
        %v513 = vsel %vm440, %v500, 0.0
        %v514 = vsel %vm441, %v499, 0.0
        %v515 = vsel %vm440, %v498, 0.0
        %v516 = vsel %vm441, %v497, 0.0
        %v517 = vsel %vm440, %v496, 0.0
        %v518 = vsel %vm441, %v495, 0.0
        %v519 = vsel %vm440, %v494, 0.0
        %v520 = vsel %vm441, %v493, 0.0
        %v521 = vsel %vm440, %v492, 0.0
        %v522 = vsel %vm441, %v491, 0.0
        %v523 = vsel %vm440, %v490, 0.0
        %v524 = vsel %vm441, %v489, 0.0
        %v525 = vsel %vm440, %v488, 0.0
        %v526 = vsel %vm441, %v487, 0.0
        %v527 = vsel %vm440, %v486, 0.0
        %v528 = vsel %vm441, %v485, 0.0
        %v529 = vsel %vm440, %v484, 0.0
        %v530 = vsel %vm441, %v483, 0.0
        %v531 = vsel %vm440, %v482, 0.0
        %v532 = vsel %vm441, %v481, 0.0
        %v533 = vsel %vm440, %v480, 0.0
        %v534 = vsel %vm441, %v479, 0.0
        %v535 = vsel %vm440, %v478, 0.0
        %v536 = vsel %vm441, %v477, 0.0
        %v537 = vsel %vm440, %v476, 0.0
        %v538 = vsel %vm441, %v475, 0.0
        %vm539 = vcmp.lt.s32.totalorder %v438, 15
        %vm540 = vcmp.lt.s32.totalorder %v439, 15
        %v541 = vrot.slane %v405, 1
        %v542 = vrot.slane %v406, 1
        %v543 = vrot.slane %v407, 1
        %v544 = vrot.slane %v408, 1
        %v545 = vrot.slane %v409, 1
        %v546 = vrot.slane %v410, 1
        %v547 = vrot.slane %v411, 1
        %v548 = vrot.slane %v412, 1
        %v549 = vrot.slane %v413, 1
        %v550 = vrot.slane %v414, 1
        %v551 = vrot.slane %v415, 1
        %v552 = vrot.slane %v416, 1
        %v553 = vrot.slane %v417, 1
        %v554 = vrot.slane %v418, 1
        %v555 = vrot.slane %v419, 1
        %v556 = vrot.slane %v420, 1
        %v557 = vrot.slane %v421, 1
        %v558 = vrot.slane %v422, 1
        %v559 = vrot.slane %v423, 1
        %v560 = vrot.slane %v424, 1
        %v561 = vrot.slane %v425, 1
        %v562 = vrot.slane %v426, 1
        %v563 = vrot.slane %v427, 1
        %v564 = vrot.slane %v428, 1
        %v565 = vrot.slane %v429, 1
        %v566 = vrot.slane %v430, 1
        %v567 = vrot.slane %v431, 1
        %v568 = vrot.slane %v432, 1
        %v569 = vrot.slane %v433, 1
        %v570 = vrot.slane %v434, 1
        %v571 = vrot.slane %v435, 1
        %v572 = vrot.slane %v436, 1
        %vm573 = vcmp.lt.s32.totalorder %v438, 7
        %v574 = vsel %vm573, %v571, %v572
        %v575 = vsel %vm573, %v570, %v571
        %v576 = vsel %vm573, %v569, %v570
        %v577 = vsel %vm573, %v568, %v569
        %v578 = vsel %vm573, %v567, %v568
        %v579 = vsel %vm573, %v566, %v567
        %v580 = vsel %vm573, %v565, %v566
        %v581 = vsel %vm573, %v564, %v565
        %v582 = vsel %vm573, %v563, %v564
        %v583 = vsel %vm573, %v562, %v563
        %v584 = vsel %vm573, %v561, %v562
        %v585 = vsel %vm573, %v560, %v561
        %v586 = vsel %vm573, %v559, %v560
        %v587 = vsel %vm573, %v558, %v559
        %v588 = vsel %vm573, %v557, %v558
        %v589 = vsel %vm573, %v556, %v557
        %v590 = vsel %vm573, %v555, %v556
        %v591 = vsel %vm573, %v554, %v555
        %v592 = vsel %vm573, %v553, %v554
        %v593 = vsel %vm573, %v552, %v553
        %v594 = vsel %vm573, %v551, %v552
        %v595 = vsel %vm573, %v550, %v551
        %v596 = vsel %vm573, %v549, %v550
        %v597 = vsel %vm573, %v548, %v549
        %v598 = vsel %vm573, %v547, %v548
        %v599 = vsel %vm573, %v546, %v547
        %v600 = vsel %vm573, %v545, %v546
        %v601 = vsel %vm573, %v544, %v545
        %v602 = vsel %vm573, %v543, %v544
        %v603 = vsel %vm573, %v542, %v543
        %v604 = vsel %vm573, %v541, %v542
        %v605 = vsel %vm573, %v572, %v541
        %v606 = vsel %vm539, %v604, 0.0
        %v607 = vsel %vm540, %v603, 0.0
        %v608 = vsel %vm539, %v602, 0.0
        %v609 = vsel %vm540, %v601, 0.0
        %v610 = vsel %vm539, %v600, 0.0
        %v611 = vsel %vm540, %v599, 0.0
        %v612 = vsel %vm539, %v598, 0.0
        %v613 = vsel %vm540, %v597, 0.0
        %v614 = vsel %vm539, %v596, 0.0
        %v615 = vsel %vm540, %v595, 0.0
        %v616 = vsel %vm539, %v594, 0.0
        %v617 = vsel %vm540, %v593, 0.0
        %v618 = vsel %vm539, %v592, 0.0
        %v619 = vsel %vm540, %v591, 0.0
        %v620 = vsel %vm539, %v590, 0.0
        %v621 = vsel %vm540, %v589, 0.0
        %v622 = vsel %vm539, %v588, 0.0
        %v623 = vsel %vm540, %v587, 0.0
        %v624 = vsel %vm539, %v586, 0.0
        %v625 = vsel %vm540, %v585, 0.0
        %v626 = vsel %vm539, %v584, 0.0
        %v627 = vsel %vm540, %v583, 0.0
        %v628 = vsel %vm539, %v582, 0.0
        %v629 = vsel %vm540, %v581, 0.0
        %v630 = vsel %vm539, %v580, 0.0
        %v631 = vsel %vm540, %v579, 0.0
        %v632 = vsel %vm539, %v578, 0.0
        %v633 = vsel %vm540, %v577, 0.0
        %v634 = vsel %vm539, %v576, 0.0
        %v635 = vsel %vm540, %v575, 0.0
        %v636 = vsel %vm539, %v574, 0.0
        %v637 = vsel %vm540, %v605, 0.0
        %669 = vrot.lane.b32.xlu0 0.0, 8
        %v670 = vpop.permute.xlu0 %669
        %671 = vrot.lane.b32.xlu0 %v405, 8
        %v672 = vpop.permute.xlu0 %671
        %673 = vrot.lane.b32.xlu0 %v406, 8
        %v674 = vpop.permute.xlu0 %673
        %675 = vrot.lane.b32.xlu0 %v407, 8
        %v676 = vpop.permute.xlu0 %675
        %677 = vrot.lane.b32.xlu0 %v408, 8
        %v678 = vpop.permute.xlu0 %677
        %679 = vrot.lane.b32.xlu0 %v409, 8
        %v680 = vpop.permute.xlu0 %679
        %681 = vrot.lane.b32.xlu0 %v410, 8
        %v682 = vpop.permute.xlu0 %681
        %683 = vrot.lane.b32.xlu0 %v411, 8
        %v684 = vpop.permute.xlu0 %683
        %685 = vrot.lane.b32.xlu0 %v412, 8
        %v686 = vpop.permute.xlu0 %685
        %687 = vrot.lane.b32.xlu0 %v413, 8
        %v688 = vpop.permute.xlu0 %687
        %689 = vrot.lane.b32.xlu0 %v414, 8
        %v690 = vpop.permute.xlu0 %689
        %691 = vrot.lane.b32.xlu0 %v415, 8
        %v692 = vpop.permute.xlu0 %691
        %693 = vrot.lane.b32.xlu0 %v416, 8
        %v694 = vpop.permute.xlu0 %693
        %695 = vrot.lane.b32.xlu0 %v417, 8
        %v696 = vpop.permute.xlu0 %695
        %697 = vrot.lane.b32.xlu0 %v418, 8
        %v698 = vpop.permute.xlu0 %697
        %699 = vrot.lane.b32.xlu0 %v419, 8
        %v700 = vpop.permute.xlu0 %699
        %701 = vrot.lane.b32.xlu0 %v420, 8
        %v702 = vpop.permute.xlu0 %701
        %703 = vrot.lane.b32.xlu0 %v421, 8
        %v704 = vpop.permute.xlu0 %703
        %705 = vrot.lane.b32.xlu0 %v422, 8
        %v706 = vpop.permute.xlu0 %705
        %707 = vrot.lane.b32.xlu0 %v423, 8
        %v708 = vpop.permute.xlu0 %707
        %709 = vrot.lane.b32.xlu0 %v424, 8
        %v710 = vpop.permute.xlu0 %709
        %711 = vrot.lane.b32.xlu0 %v425, 8
        %v712 = vpop.permute.xlu0 %711
        %713 = vrot.lane.b32.xlu0 %v426, 8
        %v714 = vpop.permute.xlu0 %713
        %715 = vrot.lane.b32.xlu0 %v427, 8
        %v716 = vpop.permute.xlu0 %715
        %717 = vrot.lane.b32.xlu0 %v428, 8
        %v718 = vpop.permute.xlu0 %717
        %719 = vrot.lane.b32.xlu0 %v429, 8
        %v720 = vpop.permute.xlu0 %719
        %721 = vrot.lane.b32.xlu0 %v430, 8
        %v722 = vpop.permute.xlu0 %721
        %723 = vrot.lane.b32.xlu0 %v431, 8
        %v724 = vpop.permute.xlu0 %723
        %725 = vrot.lane.b32.xlu0 %v432, 8
        %v726 = vpop.permute.xlu0 %725
        %727 = vrot.lane.b32.xlu0 %v433, 8
        %v728 = vpop.permute.xlu0 %727
        %729 = vrot.lane.b32.xlu0 %v434, 8
        %v730 = vpop.permute.xlu0 %729
        %792 = vrot.lane.b32.xlu0 0.0, 16
        %v793 = vpop.permute.xlu0 %792
        %794 = vrot.lane.b32.xlu0 %v606, 16
        %v795 = vpop.permute.xlu0 %794
        %796 = vrot.lane.b32.xlu0 %v607, 16
        %v797 = vpop.permute.xlu0 %796
        %798 = vrot.lane.b32.xlu0 %v608, 16
        %v799 = vpop.permute.xlu0 %798
        %800 = vrot.lane.b32.xlu0 %v609, 16
        %v801 = vpop.permute.xlu0 %800
        %802 = vrot.lane.b32.xlu0 %v610, 16
        %v803 = vpop.permute.xlu0 %802
        %804 = vrot.lane.b32.xlu0 %v611, 16
        %v805 = vpop.permute.xlu0 %804
        %806 = vrot.lane.b32.xlu0 %v612, 16
        %v807 = vpop.permute.xlu0 %806
        %808 = vrot.lane.b32.xlu0 %v613, 16
        %v809 = vpop.permute.xlu0 %808
        %810 = vrot.lane.b32.xlu0 %v614, 16
        %v811 = vpop.permute.xlu0 %810
        %812 = vrot.lane.b32.xlu0 %v615, 16
        %v813 = vpop.permute.xlu0 %812
        %814 = vrot.lane.b32.xlu0 %v616, 16
        %v815 = vpop.permute.xlu0 %814
        %816 = vrot.lane.b32.xlu0 %v617, 16
        %v817 = vpop.permute.xlu0 %816
        %818 = vrot.lane.b32.xlu0 %v618, 16
        %v819 = vpop.permute.xlu0 %818
        %820 = vrot.lane.b32.xlu0 %v619, 16
        %v821 = vpop.permute.xlu0 %820
        %822 = vrot.lane.b32.xlu0 %v620, 16
        %v823 = vpop.permute.xlu0 %822
        %824 = vrot.lane.b32.xlu0 %v621, 16
        %v825 = vpop.permute.xlu0 %824
        %826 = vrot.lane.b32.xlu0 %v622, 16
        %v827 = vpop.permute.xlu0 %826
        %828 = vrot.lane.b32.xlu0 %v623, 16
        %v829 = vpop.permute.xlu0 %828
        %830 = vrot.lane.b32.xlu0 %v624, 16
        %v831 = vpop.permute.xlu0 %830
        %832 = vrot.lane.b32.xlu0 %v625, 16
        %v833 = vpop.permute.xlu0 %832
        %834 = vrot.lane.b32.xlu0 %v626, 16
        %v835 = vpop.permute.xlu0 %834
        %836 = vrot.lane.b32.xlu0 %v627, 16
        %v837 = vpop.permute.xlu0 %836
        %838 = vrot.lane.b32.xlu0 %v628, 16
        %v839 = vpop.permute.xlu0 %838
        %840 = vrot.lane.b32.xlu0 %v629, 16
        %v841 = vpop.permute.xlu0 %840
        %842 = vrot.lane.b32.xlu0 %v630, 16
        %v843 = vpop.permute.xlu0 %842
        %844 = vrot.lane.b32.xlu0 %v631, 16
        %v845 = vpop.permute.xlu0 %844
        %846 = vrot.lane.b32.xlu0 %v632, 16
        %v847 = vpop.permute.xlu0 %846
        %848 = vrot.lane.b32.xlu0 %v633, 16
        %v849 = vpop.permute.xlu0 %848
        %850 = vrot.lane.b32.xlu0 %v634, 16
        %v851 = vpop.permute.xlu0 %850
        %852 = vrot.lane.b32.xlu0 %v635, 16
        %v853 = vpop.permute.xlu0 %852
        %917 = vrot.lane.b32.xlu0 %v507, 24
        %v918 = vpop.permute.xlu0 %917
        %919 = vrot.lane.b32.xlu0 %v508, 24
        %v920 = vpop.permute.xlu0 %919
        %921 = vrot.lane.b32.xlu0 %v509, 24
        %v922 = vpop.permute.xlu0 %921
        %923 = vrot.lane.b32.xlu0 %v510, 24
        %v924 = vpop.permute.xlu0 %923
        %925 = vrot.lane.b32.xlu0 %v511, 24
        %v926 = vpop.permute.xlu0 %925
        %927 = vrot.lane.b32.xlu0 %v512, 24
        %v928 = vpop.permute.xlu0 %927
        %929 = vrot.lane.b32.xlu0 %v513, 24
        %v930 = vpop.permute.xlu0 %929
        %931 = vrot.lane.b32.xlu0 %v514, 24
        %v932 = vpop.permute.xlu0 %931
        %933 = vrot.lane.b32.xlu0 %v515, 24
        %v934 = vpop.permute.xlu0 %933
        %935 = vrot.lane.b32.xlu0 %v516, 24
        %v936 = vpop.permute.xlu0 %935
        %937 = vrot.lane.b32.xlu0 %v517, 24
        %v938 = vpop.permute.xlu0 %937
        %939 = vrot.lane.b32.xlu0 %v518, 24
        %v940 = vpop.permute.xlu0 %939
        %941 = vrot.lane.b32.xlu0 %v519, 24
        %v942 = vpop.permute.xlu0 %941
        %943 = vrot.lane.b32.xlu0 %v520, 24
        %v944 = vpop.permute.xlu0 %943
        %945 = vrot.lane.b32.xlu0 %v521, 24
        %v946 = vpop.permute.xlu0 %945
        %947 = vrot.lane.b32.xlu0 %v522, 24
        %v948 = vpop.permute.xlu0 %947
        %949 = vrot.lane.b32.xlu0 %v523, 24
        %v950 = vpop.permute.xlu0 %949
        %951 = vrot.lane.b32.xlu0 %v524, 24
        %v952 = vpop.permute.xlu0 %951
        %953 = vrot.lane.b32.xlu0 %v525, 24
        %v954 = vpop.permute.xlu0 %953
        %955 = vrot.lane.b32.xlu0 %v526, 24
        %v956 = vpop.permute.xlu0 %955
        %957 = vrot.lane.b32.xlu0 %v527, 24
        %v958 = vpop.permute.xlu0 %957
        %959 = vrot.lane.b32.xlu0 %v528, 24
        %v960 = vpop.permute.xlu0 %959
        %961 = vrot.lane.b32.xlu0 %v529, 24
        %v962 = vpop.permute.xlu0 %961
        %963 = vrot.lane.b32.xlu0 %v530, 24
        %v964 = vpop.permute.xlu0 %963
        %965 = vrot.lane.b32.xlu0 %v531, 24
        %v966 = vpop.permute.xlu0 %965
        %967 = vrot.lane.b32.xlu0 %v532, 24
        %v968 = vpop.permute.xlu0 %967
        %969 = vrot.lane.b32.xlu0 %v533, 24
        %v970 = vpop.permute.xlu0 %969
        %971 = vrot.lane.b32.xlu0 %v534, 24
        %v972 = vpop.permute.xlu0 %971
        %973 = vrot.lane.b32.xlu0 %v535, 24
        %v974 = vpop.permute.xlu0 %973
        %975 = vrot.lane.b32.xlu0 %v536, 24
        %v976 = vpop.permute.xlu0 %975
        %977 = vrot.lane.b32.xlu0 %v537, 24
        %v978 = vpop.permute.xlu0 %977
        %979 = vrot.lane.b32.xlu0 %v538, 24
        %v980 = vpop.permute.xlu0 %979
        %1015 = vrot.lane.b32.xlu0 %v405, 32
        %v1016 = vpop.permute.xlu0 %1015
        %1017 = vrot.lane.b32.xlu0 %v406, 32
        %v1018 = vpop.permute.xlu0 %1017
        %1019 = vrot.lane.b32.xlu0 %v407, 32
        %v1020 = vpop.permute.xlu0 %1019
        %1021 = vrot.lane.b32.xlu0 %v408, 32
        %v1022 = vpop.permute.xlu0 %1021
        %1023 = vrot.lane.b32.xlu0 %v409, 32
        %v1024 = vpop.permute.xlu0 %1023
        %1025 = vrot.lane.b32.xlu0 %v410, 32
        %v1026 = vpop.permute.xlu0 %1025
        %1027 = vrot.lane.b32.xlu0 %v411, 32
        %v1028 = vpop.permute.xlu0 %1027
        %1029 = vrot.lane.b32.xlu0 %v412, 32
        %v1030 = vpop.permute.xlu0 %1029
        %1031 = vrot.lane.b32.xlu0 %v413, 32
        %v1032 = vpop.permute.xlu0 %1031
        %1033 = vrot.lane.b32.xlu0 %v414, 32
        %v1034 = vpop.permute.xlu0 %1033
        %1035 = vrot.lane.b32.xlu0 %v415, 32
        %v1036 = vpop.permute.xlu0 %1035
        %1037 = vrot.lane.b32.xlu0 %v416, 32
        %v1038 = vpop.permute.xlu0 %1037
        %1039 = vrot.lane.b32.xlu0 %v417, 32
        %v1040 = vpop.permute.xlu0 %1039
        %1041 = vrot.lane.b32.xlu0 %v418, 32
        %v1042 = vpop.permute.xlu0 %1041
        %1043 = vrot.lane.b32.xlu0 %v419, 32
        %v1044 = vpop.permute.xlu0 %1043
        %1045 = vrot.lane.b32.xlu0 %v420, 32
        %v1046 = vpop.permute.xlu0 %1045
        %1047 = vrot.lane.b32.xlu0 %v421, 32
        %v1048 = vpop.permute.xlu0 %1047
        %1049 = vrot.lane.b32.xlu0 %v422, 32
        %v1050 = vpop.permute.xlu0 %1049
        %1051 = vrot.lane.b32.xlu0 %v423, 32
        %v1052 = vpop.permute.xlu0 %1051
        %1053 = vrot.lane.b32.xlu0 %v424, 32
        %v1054 = vpop.permute.xlu0 %1053
        %1055 = vrot.lane.b32.xlu0 %v425, 32
        %v1056 = vpop.permute.xlu0 %1055
        %1057 = vrot.lane.b32.xlu0 %v426, 32
        %v1058 = vpop.permute.xlu0 %1057
        %1059 = vrot.lane.b32.xlu0 %v427, 32
        %v1060 = vpop.permute.xlu0 %1059
        %1061 = vrot.lane.b32.xlu0 %v428, 32
        %v1062 = vpop.permute.xlu0 %1061
        %1063 = vrot.lane.b32.xlu0 %v429, 32
        %v1064 = vpop.permute.xlu0 %1063
        %1065 = vrot.lane.b32.xlu0 %v430, 32
        %v1066 = vpop.permute.xlu0 %1065
        %1067 = vrot.lane.b32.xlu0 %v431, 32
        %v1068 = vpop.permute.xlu0 %1067
        %1069 = vrot.lane.b32.xlu0 %v432, 32
        %v1070 = vpop.permute.xlu0 %1069
        %1071 = vrot.lane.b32.xlu0 %v433, 32
        %v1072 = vpop.permute.xlu0 %1071
        %1073 = vrot.lane.b32.xlu0 %v434, 32
        %v1074 = vpop.permute.xlu0 %1073
        %1075 = vrot.lane.b32.xlu0 %v435, 32
        %v1076 = vpop.permute.xlu0 %1075
        %1077 = vrot.lane.b32.xlu0 %v436, 32
        %v1078 = vpop.permute.xlu0 %1077
        %1113 = vrot.lane.b32.xlu0 %v606, 40
        %v1114 = vpop.permute.xlu0 %1113
        %1115 = vrot.lane.b32.xlu0 %v607, 40
        %v1116 = vpop.permute.xlu0 %1115
        %1117 = vrot.lane.b32.xlu0 %v608, 40
        %v1118 = vpop.permute.xlu0 %1117
        %1119 = vrot.lane.b32.xlu0 %v609, 40
        %v1120 = vpop.permute.xlu0 %1119
        %1121 = vrot.lane.b32.xlu0 %v610, 40
        %v1122 = vpop.permute.xlu0 %1121
        %1123 = vrot.lane.b32.xlu0 %v611, 40
        %v1124 = vpop.permute.xlu0 %1123
        %1125 = vrot.lane.b32.xlu0 %v612, 40
        %v1126 = vpop.permute.xlu0 %1125
        %1127 = vrot.lane.b32.xlu0 %v613, 40
        %v1128 = vpop.permute.xlu0 %1127
        %1129 = vrot.lane.b32.xlu0 %v614, 40
        %v1130 = vpop.permute.xlu0 %1129
        %1131 = vrot.lane.b32.xlu0 %v615, 40
        %v1132 = vpop.permute.xlu0 %1131
        %1133 = vrot.lane.b32.xlu0 %v616, 40
        %v1134 = vpop.permute.xlu0 %1133
        %1135 = vrot.lane.b32.xlu0 %v617, 40
        %v1136 = vpop.permute.xlu0 %1135
        %1137 = vrot.lane.b32.xlu0 %v618, 40
        %v1138 = vpop.permute.xlu0 %1137
        %1139 = vrot.lane.b32.xlu0 %v619, 40
        %v1140 = vpop.permute.xlu0 %1139
        %1141 = vrot.lane.b32.xlu0 %v620, 40
        %v1142 = vpop.permute.xlu0 %1141
        %1143 = vrot.lane.b32.xlu0 %v621, 40
        %v1144 = vpop.permute.xlu0 %1143
        %1145 = vrot.lane.b32.xlu0 %v622, 40
        %v1146 = vpop.permute.xlu0 %1145
        %1147 = vrot.lane.b32.xlu0 %v623, 40
        %v1148 = vpop.permute.xlu0 %1147
        %1149 = vrot.lane.b32.xlu0 %v624, 40
        %v1150 = vpop.permute.xlu0 %1149
        %1151 = vrot.lane.b32.xlu0 %v625, 40
        %v1152 = vpop.permute.xlu0 %1151
        %1153 = vrot.lane.b32.xlu0 %v626, 40
        %v1154 = vpop.permute.xlu0 %1153
        %1155 = vrot.lane.b32.xlu0 %v627, 40
        %v1156 = vpop.permute.xlu0 %1155
        %1157 = vrot.lane.b32.xlu0 %v628, 40
        %v1158 = vpop.permute.xlu0 %1157
        %1159 = vrot.lane.b32.xlu0 %v629, 40
        %v1160 = vpop.permute.xlu0 %1159
        %1161 = vrot.lane.b32.xlu0 %v630, 40
        %v1162 = vpop.permute.xlu0 %1161
        %1163 = vrot.lane.b32.xlu0 %v631, 40
        %v1164 = vpop.permute.xlu0 %1163
        %1165 = vrot.lane.b32.xlu0 %v632, 40
        %v1166 = vpop.permute.xlu0 %1165
        %1167 = vrot.lane.b32.xlu0 %v633, 40
        %v1168 = vpop.permute.xlu0 %1167
        %1169 = vrot.lane.b32.xlu0 %v634, 40
        %v1170 = vpop.permute.xlu0 %1169
        %1171 = vrot.lane.b32.xlu0 %v635, 40
        %v1172 = vpop.permute.xlu0 %1171
        %1173 = vrot.lane.b32.xlu0 %v636, 40
        %v1174 = vpop.permute.xlu0 %1173
        %1175 = vrot.lane.b32.xlu0 %v637, 40
        %v1176 = vpop.permute.xlu0 %1175
        %1209 = vrot.lane.b32.xlu0 %v509, 48
        %v1210 = vpop.permute.xlu0 %1209
        %1211 = vrot.lane.b32.xlu0 %v510, 48
        %v1212 = vpop.permute.xlu0 %1211
        %1213 = vrot.lane.b32.xlu0 %v511, 48
        %v1214 = vpop.permute.xlu0 %1213
        %1215 = vrot.lane.b32.xlu0 %v512, 48
        %v1216 = vpop.permute.xlu0 %1215
        %1217 = vrot.lane.b32.xlu0 %v513, 48
        %v1218 = vpop.permute.xlu0 %1217
        %1219 = vrot.lane.b32.xlu0 %v514, 48
        %v1220 = vpop.permute.xlu0 %1219
        %1221 = vrot.lane.b32.xlu0 %v515, 48
        %v1222 = vpop.permute.xlu0 %1221
        %1223 = vrot.lane.b32.xlu0 %v516, 48
        %v1224 = vpop.permute.xlu0 %1223
        %1225 = vrot.lane.b32.xlu0 %v517, 48
        %v1226 = vpop.permute.xlu0 %1225
        %1227 = vrot.lane.b32.xlu0 %v518, 48
        %v1228 = vpop.permute.xlu0 %1227
        %1229 = vrot.lane.b32.xlu0 %v519, 48
        %v1230 = vpop.permute.xlu0 %1229
        %1231 = vrot.lane.b32.xlu0 %v520, 48
        %v1232 = vpop.permute.xlu0 %1231
        %1233 = vrot.lane.b32.xlu0 %v521, 48
        %v1234 = vpop.permute.xlu0 %1233
        %1235 = vrot.lane.b32.xlu0 %v522, 48
        %v1236 = vpop.permute.xlu0 %1235
        %1237 = vrot.lane.b32.xlu0 %v523, 48
        %v1238 = vpop.permute.xlu0 %1237
        %1239 = vrot.lane.b32.xlu0 %v524, 48
        %v1240 = vpop.permute.xlu0 %1239
        %1241 = vrot.lane.b32.xlu0 %v525, 48
        %v1242 = vpop.permute.xlu0 %1241
        %1243 = vrot.lane.b32.xlu0 %v526, 48
        %v1244 = vpop.permute.xlu0 %1243
        %1245 = vrot.lane.b32.xlu0 %v527, 48
        %v1246 = vpop.permute.xlu0 %1245
        %1247 = vrot.lane.b32.xlu0 %v528, 48
        %v1248 = vpop.permute.xlu0 %1247
        %1249 = vrot.lane.b32.xlu0 %v529, 48
        %v1250 = vpop.permute.xlu0 %1249
        %1251 = vrot.lane.b32.xlu0 %v530, 48
        %v1252 = vpop.permute.xlu0 %1251
        %1253 = vrot.lane.b32.xlu0 %v531, 48
        %v1254 = vpop.permute.xlu0 %1253
        %1255 = vrot.lane.b32.xlu0 %v532, 48
        %v1256 = vpop.permute.xlu0 %1255
        %1257 = vrot.lane.b32.xlu0 %v533, 48
        %v1258 = vpop.permute.xlu0 %1257
        %1259 = vrot.lane.b32.xlu0 %v534, 48
        %v1260 = vpop.permute.xlu0 %1259
        %1261 = vrot.lane.b32.xlu0 %v535, 48
        %v1262 = vpop.permute.xlu0 %1261
        %1263 = vrot.lane.b32.xlu0 %v536, 48
        %v1264 = vpop.permute.xlu0 %1263
        %1265 = vrot.lane.b32.xlu0 %v537, 48
        %v1266 = vpop.permute.xlu0 %1265
        %1267 = vrot.lane.b32.xlu0 %v538, 48
        %v1268 = vpop.permute.xlu0 %1267
        %1269 = vrot.lane.b32.xlu0 0.0, 48
        %v1270 = vpop.permute.xlu0 %1269
        %1302 = vrot.lane.b32.xlu0 %v407, 56
        %v1303 = vpop.permute.xlu0 %1302
        %1304 = vrot.lane.b32.xlu0 %v408, 56
        %v1305 = vpop.permute.xlu0 %1304
        %1306 = vrot.lane.b32.xlu0 %v409, 56
        %v1307 = vpop.permute.xlu0 %1306
        %1308 = vrot.lane.b32.xlu0 %v410, 56
        %v1309 = vpop.permute.xlu0 %1308
        %1310 = vrot.lane.b32.xlu0 %v411, 56
        %v1311 = vpop.permute.xlu0 %1310
        %1312 = vrot.lane.b32.xlu0 %v412, 56
        %v1313 = vpop.permute.xlu0 %1312
        %1314 = vrot.lane.b32.xlu0 %v413, 56
        %v1315 = vpop.permute.xlu0 %1314
        %1316 = vrot.lane.b32.xlu0 %v414, 56
        %v1317 = vpop.permute.xlu0 %1316
        %1318 = vrot.lane.b32.xlu0 %v415, 56
        %v1319 = vpop.permute.xlu0 %1318
        %1320 = vrot.lane.b32.xlu0 %v416, 56
        %v1321 = vpop.permute.xlu0 %1320
        %1322 = vrot.lane.b32.xlu0 %v417, 56
        %v1323 = vpop.permute.xlu0 %1322
        %1324 = vrot.lane.b32.xlu0 %v418, 56
        %v1325 = vpop.permute.xlu0 %1324
        %1326 = vrot.lane.b32.xlu0 %v419, 56
        %v1327 = vpop.permute.xlu0 %1326
        %1328 = vrot.lane.b32.xlu0 %v420, 56
        %v1329 = vpop.permute.xlu0 %1328
        %1330 = vrot.lane.b32.xlu0 %v421, 56
        %v1331 = vpop.permute.xlu0 %1330
        %1332 = vrot.lane.b32.xlu0 %v422, 56
        %v1333 = vpop.permute.xlu0 %1332
        %1334 = vrot.lane.b32.xlu0 %v423, 56
        %v1335 = vpop.permute.xlu0 %1334
        %1336 = vrot.lane.b32.xlu0 %v424, 56
        %v1337 = vpop.permute.xlu0 %1336
        %1338 = vrot.lane.b32.xlu0 %v425, 56
        %v1339 = vpop.permute.xlu0 %1338
        %1340 = vrot.lane.b32.xlu0 %v426, 56
        %v1341 = vpop.permute.xlu0 %1340
        %1342 = vrot.lane.b32.xlu0 %v427, 56
        %v1343 = vpop.permute.xlu0 %1342
        %1344 = vrot.lane.b32.xlu0 %v428, 56
        %v1345 = vpop.permute.xlu0 %1344
        %1346 = vrot.lane.b32.xlu0 %v429, 56
        %v1347 = vpop.permute.xlu0 %1346
        %1348 = vrot.lane.b32.xlu0 %v430, 56
        %v1349 = vpop.permute.xlu0 %1348
        %1350 = vrot.lane.b32.xlu0 %v431, 56
        %v1351 = vpop.permute.xlu0 %1350
        %1352 = vrot.lane.b32.xlu0 %v432, 56
        %v1353 = vpop.permute.xlu0 %1352
        %1354 = vrot.lane.b32.xlu0 %v433, 56
        %v1355 = vpop.permute.xlu0 %1354
        %1356 = vrot.lane.b32.xlu0 %v434, 56
        %v1357 = vpop.permute.xlu0 %1356
        %1358 = vrot.lane.b32.xlu0 %v435, 56
        %v1359 = vpop.permute.xlu0 %1358
        %1360 = vrot.lane.b32.xlu0 %v436, 56
        %v1361 = vpop.permute.xlu0 %1360
        %1362 = vrot.lane.b32.xlu0 0.0, 56
        %v1363 = vpop.permute.xlu0 %1362
        %1395 = vrot.lane.b32.xlu0 %v608, 64
        %v1396 = vpop.permute.xlu0 %1395
        %1397 = vrot.lane.b32.xlu0 %v609, 64
        %v1398 = vpop.permute.xlu0 %1397
        %1399 = vrot.lane.b32.xlu0 %v610, 64
        %v1400 = vpop.permute.xlu0 %1399
        %1401 = vrot.lane.b32.xlu0 %v611, 64
        %v1402 = vpop.permute.xlu0 %1401
        %1403 = vrot.lane.b32.xlu0 %v612, 64
        %v1404 = vpop.permute.xlu0 %1403
        %1405 = vrot.lane.b32.xlu0 %v613, 64
        %v1406 = vpop.permute.xlu0 %1405
        %1407 = vrot.lane.b32.xlu0 %v614, 64
        %v1408 = vpop.permute.xlu0 %1407
        %1409 = vrot.lane.b32.xlu0 %v615, 64
        %v1410 = vpop.permute.xlu0 %1409
        %1411 = vrot.lane.b32.xlu0 %v616, 64
        %v1412 = vpop.permute.xlu0 %1411
        %1413 = vrot.lane.b32.xlu0 %v617, 64
        %v1414 = vpop.permute.xlu0 %1413
        %1415 = vrot.lane.b32.xlu0 %v618, 64
        %v1416 = vpop.permute.xlu0 %1415
        %1417 = vrot.lane.b32.xlu0 %v619, 64
        %v1418 = vpop.permute.xlu0 %1417
        %1419 = vrot.lane.b32.xlu0 %v620, 64
        %v1420 = vpop.permute.xlu0 %1419
        %1421 = vrot.lane.b32.xlu0 %v621, 64
        %v1422 = vpop.permute.xlu0 %1421
        %1423 = vrot.lane.b32.xlu0 %v622, 64
        %v1424 = vpop.permute.xlu0 %1423
        %1425 = vrot.lane.b32.xlu0 %v623, 64
        %v1426 = vpop.permute.xlu0 %1425
        %1427 = vrot.lane.b32.xlu0 %v624, 64
        %v1428 = vpop.permute.xlu0 %1427
        %1429 = vrot.lane.b32.xlu0 %v625, 64
        %v1430 = vpop.permute.xlu0 %1429
        %1431 = vrot.lane.b32.xlu0 %v626, 64
        %v1432 = vpop.permute.xlu0 %1431
        %1433 = vrot.lane.b32.xlu0 %v627, 64
        %v1434 = vpop.permute.xlu0 %1433
        %1435 = vrot.lane.b32.xlu0 %v628, 64
        %v1436 = vpop.permute.xlu0 %1435
        %1437 = vrot.lane.b32.xlu0 %v629, 64
        %v1438 = vpop.permute.xlu0 %1437
        %1439 = vrot.lane.b32.xlu0 %v630, 64
        %v1440 = vpop.permute.xlu0 %1439
        %1441 = vrot.lane.b32.xlu0 %v631, 64
        %v1442 = vpop.permute.xlu0 %1441
        %1443 = vrot.lane.b32.xlu0 %v632, 64
        %v1444 = vpop.permute.xlu0 %1443
        %1445 = vrot.lane.b32.xlu0 %v633, 64
        %v1446 = vpop.permute.xlu0 %1445
        %1447 = vrot.lane.b32.xlu0 %v634, 64
        %v1448 = vpop.permute.xlu0 %1447
        %1449 = vrot.lane.b32.xlu0 %v635, 64
        %v1450 = vpop.permute.xlu0 %1449
        %1451 = vrot.lane.b32.xlu0 %v636, 64
        %v1452 = vpop.permute.xlu0 %1451
        %1453 = vrot.lane.b32.xlu0 %v637, 64
        %v1454 = vpop.permute.xlu0 %1453
        %1455 = vrot.lane.b32.xlu0 0.0, 64
        %v1456 = vpop.permute.xlu0 %1455
        %vm1488 = vcmask 64512
        %v1489 = vsel %vm1488, 0.0, %v670
        %v1490 = vsel %vm1488, %v507, %v672
        %v1491 = vsel %vm1488, %v508, %v674
        %v1492 = vsel %vm1488, %v509, %v676
        %v1493 = vsel %vm1488, %v510, %v678
        %v1494 = vsel %vm1488, %v511, %v680
        %v1495 = vsel %vm1488, %v512, %v682
        %v1496 = vsel %vm1488, %v513, %v684
        %v1497 = vsel %vm1488, %v514, %v686
        %v1498 = vsel %vm1488, %v515, %v688
        %v1499 = vsel %vm1488, %v516, %v690
        %v1500 = vsel %vm1488, %v517, %v692
        %v1501 = vsel %vm1488, %v518, %v694
        %v1502 = vsel %vm1488, %v519, %v696
        %v1503 = vsel %vm1488, %v520, %v698
        %v1504 = vsel %vm1488, %v521, %v700
        %v1505 = vsel %vm1488, %v522, %v702
        %v1506 = vsel %vm1488, %v523, %v704
        %v1507 = vsel %vm1488, %v524, %v706
        %v1508 = vsel %vm1488, %v525, %v708
        %v1509 = vsel %vm1488, %v526, %v710
        %v1510 = vsel %vm1488, %v527, %v712
        %v1511 = vsel %vm1488, %v528, %v714
        %v1512 = vsel %vm1488, %v529, %v716
        %v1513 = vsel %vm1488, %v530, %v718
        %v1514 = vsel %vm1488, %v531, %v720
        %v1515 = vsel %vm1488, %v532, %v722
        %v1516 = vsel %vm1488, %v533, %v724
        %v1517 = vsel %vm1488, %v534, %v726
        %v1518 = vsel %vm1488, %v535, %v728
        %v1519 = vsel %vm1488, %v536, %v730
        %vm1520 = vcmask 130048
        %v1521 = vsel %vm1520, %v1489, %v793
        %v1522 = vsel %vm1520, %v1490, %v795
        %v1523 = vsel %vm1520, %v1491, %v797
        %v1524 = vsel %vm1520, %v1492, %v799
        %v1525 = vsel %vm1520, %v1493, %v801
        %v1526 = vsel %vm1520, %v1494, %v803
        %v1527 = vsel %vm1520, %v1495, %v805
        %v1528 = vsel %vm1520, %v1496, %v807
        %v1529 = vsel %vm1520, %v1497, %v809
        %v1530 = vsel %vm1520, %v1498, %v811
        %v1531 = vsel %vm1520, %v1499, %v813
        %v1532 = vsel %vm1520, %v1500, %v815
        %v1533 = vsel %vm1520, %v1501, %v817
        %v1534 = vsel %vm1520, %v1502, %v819
        %v1535 = vsel %vm1520, %v1503, %v821
        %v1536 = vsel %vm1520, %v1504, %v823
        %v1537 = vsel %vm1520, %v1505, %v825
        %v1538 = vsel %vm1520, %v1506, %v827
        %v1539 = vsel %vm1520, %v1507, %v829
        %v1540 = vsel %vm1520, %v1508, %v831
        %v1541 = vsel %vm1520, %v1509, %v833
        %v1542 = vsel %vm1520, %v1510, %v835
        %v1543 = vsel %vm1520, %v1511, %v837
        %v1544 = vsel %vm1520, %v1512, %v839
        %v1545 = vsel %vm1520, %v1513, %v841
        %v1546 = vsel %vm1520, %v1514, %v843
        %v1547 = vsel %vm1520, %v1515, %v845
        %v1548 = vsel %vm1520, %v1516, %v847
        %v1549 = vsel %vm1520, %v1517, %v849
        %v1550 = vsel %vm1520, %v1518, %v851
        %v1551 = vsel %vm1520, %v1519, %v853
        %vm1552 = vcmask 195584
        %v1553 = vsel %vm1552, %v1521, %v918
        %v1554 = vsel %vm1552, %v1521, %v920
        %v1555 = vsel %vm1552, %v1522, %v922
        %v1556 = vsel %vm1552, %v1523, %v924
        %v1557 = vsel %vm1552, %v1524, %v926
        %v1558 = vsel %vm1552, %v1525, %v928
        %v1559 = vsel %vm1552, %v1526, %v930
        %v1560 = vsel %vm1552, %v1527, %v932
        %v1561 = vsel %vm1552, %v1528, %v934
        %v1562 = vsel %vm1552, %v1529, %v936
        %v1563 = vsel %vm1552, %v1530, %v938
        %v1564 = vsel %vm1552, %v1531, %v940
        %v1565 = vsel %vm1552, %v1532, %v942
        %v1566 = vsel %vm1552, %v1533, %v944
        %v1567 = vsel %vm1552, %v1534, %v946
        %v1568 = vsel %vm1552, %v1535, %v948
        %v1569 = vsel %vm1552, %v1536, %v950
        %v1570 = vsel %vm1552, %v1537, %v952
        %v1571 = vsel %vm1552, %v1538, %v954
        %v1572 = vsel %vm1552, %v1539, %v956
        %v1573 = vsel %vm1552, %v1540, %v958
        %v1574 = vsel %vm1552, %v1541, %v960
        %v1575 = vsel %vm1552, %v1542, %v962
        %v1576 = vsel %vm1552, %v1543, %v964
        %v1577 = vsel %vm1552, %v1544, %v966
        %v1578 = vsel %vm1552, %v1545, %v968
        %v1579 = vsel %vm1552, %v1546, %v970
        %v1580 = vsel %vm1552, %v1547, %v972
        %v1581 = vsel %vm1552, %v1548, %v974
        %v1582 = vsel %vm1552, %v1549, %v976
        %v1583 = vsel %vm1552, %v1550, %v978
        %v1584 = vsel %vm1552, %v1551, %v980
        %vm1585 = vcmask 261120
        %v1586 = vsel %vm1585, %v1553, %v1016
        %v1587 = vsel %vm1585, %v1554, %v1018
        %v1588 = vsel %vm1585, %v1555, %v1020
        %v1589 = vsel %vm1585, %v1556, %v1022
        %v1590 = vsel %vm1585, %v1557, %v1024
        %v1591 = vsel %vm1585, %v1558, %v1026
        %v1592 = vsel %vm1585, %v1559, %v1028
        %v1593 = vsel %vm1585, %v1560, %v1030
        %v1594 = vsel %vm1585, %v1561, %v1032
        %v1595 = vsel %vm1585, %v1562, %v1034
        %v1596 = vsel %vm1585, %v1563, %v1036
        %v1597 = vsel %vm1585, %v1564, %v1038
        %v1598 = vsel %vm1585, %v1565, %v1040
        %v1599 = vsel %vm1585, %v1566, %v1042
        %v1600 = vsel %vm1585, %v1567, %v1044
        %v1601 = vsel %vm1585, %v1568, %v1046
        %v1602 = vsel %vm1585, %v1569, %v1048
        %v1603 = vsel %vm1585, %v1570, %v1050
        %v1604 = vsel %vm1585, %v1571, %v1052
        %v1605 = vsel %vm1585, %v1572, %v1054
        %v1606 = vsel %vm1585, %v1573, %v1056
        %v1607 = vsel %vm1585, %v1574, %v1058
        %v1608 = vsel %vm1585, %v1575, %v1060
        %v1609 = vsel %vm1585, %v1576, %v1062
        %v1610 = vsel %vm1585, %v1577, %v1064
        %v1611 = vsel %vm1585, %v1578, %v1066
        %v1612 = vsel %vm1585, %v1579, %v1068
        %v1613 = vsel %vm1585, %v1580, %v1070
        %v1614 = vsel %vm1585, %v1581, %v1072
        %v1615 = vsel %vm1585, %v1582, %v1074
        %v1616 = vsel %vm1585, %v1583, %v1076
        %v1617 = vsel %vm1585, %v1584, %v1078
        %vm1618 = vcmask 326656
        %v1619 = vsel %vm1618, %v1586, %v1114
        %v1620 = vsel %vm1618, %v1587, %v1116
        %v1621 = vsel %vm1618, %v1588, %v1118
        %v1622 = vsel %vm1618, %v1589, %v1120
        %v1623 = vsel %vm1618, %v1590, %v1122
        %v1624 = vsel %vm1618, %v1591, %v1124
        %v1625 = vsel %vm1618, %v1592, %v1126
        %v1626 = vsel %vm1618, %v1593, %v1128
        %v1627 = vsel %vm1618, %v1594, %v1130
        %v1628 = vsel %vm1618, %v1595, %v1132
        %v1629 = vsel %vm1618, %v1596, %v1134
        %v1630 = vsel %vm1618, %v1597, %v1136
        %v1631 = vsel %vm1618, %v1598, %v1138
        %v1632 = vsel %vm1618, %v1599, %v1140
        %v1633 = vsel %vm1618, %v1600, %v1142
        %v1634 = vsel %vm1618, %v1601, %v1144
        %v1635 = vsel %vm1618, %v1602, %v1146
        %v1636 = vsel %vm1618, %v1603, %v1148
        %v1637 = vsel %vm1618, %v1604, %v1150
        %v1638 = vsel %vm1618, %v1605, %v1152
        %v1639 = vsel %vm1618, %v1606, %v1154
        %v1640 = vsel %vm1618, %v1607, %v1156
        %v1641 = vsel %vm1618, %v1608, %v1158
        %v1642 = vsel %vm1618, %v1609, %v1160
        %v1643 = vsel %vm1618, %v1610, %v1162
        %v1644 = vsel %vm1618, %v1611, %v1164
        %v1645 = vsel %vm1618, %v1612, %v1166
        %v1646 = vsel %vm1618, %v1613, %v1168
        %v1647 = vsel %vm1618, %v1614, %v1170
        %v1648 = vsel %vm1618, %v1615, %v1172
        %v1649 = vsel %vm1618, %v1616, %v1174
        %v1650 = vsel %vm1618, %v1617, %v1176
        %vm1651 = vcmask 392192
        %v1652 = vsel %vm1651, %v1619, %v1210
        %v1653 = vsel %vm1651, %v1620, %v1212
        %v1654 = vsel %vm1651, %v1621, %v1214
        %v1655 = vsel %vm1651, %v1622, %v1216
        %v1656 = vsel %vm1651, %v1623, %v1218
        %v1657 = vsel %vm1651, %v1624, %v1220
        %v1658 = vsel %vm1651, %v1625, %v1222
        %v1659 = vsel %vm1651, %v1626, %v1224
        %v1660 = vsel %vm1651, %v1627, %v1226
        %v1661 = vsel %vm1651, %v1628, %v1228
        %v1662 = vsel %vm1651, %v1629, %v1230
        %v1663 = vsel %vm1651, %v1630, %v1232
        %v1664 = vsel %vm1651, %v1631, %v1234
        %v1665 = vsel %vm1651, %v1632, %v1236
        %v1666 = vsel %vm1651, %v1633, %v1238
        %v1667 = vsel %vm1651, %v1634, %v1240
        %v1668 = vsel %vm1651, %v1635, %v1242
        %v1669 = vsel %vm1651, %v1636, %v1244
        %v1670 = vsel %vm1651, %v1637, %v1246
        %v1671 = vsel %vm1651, %v1638, %v1248
        %v1672 = vsel %vm1651, %v1639, %v1250
        %v1673 = vsel %vm1651, %v1640, %v1252
        %v1674 = vsel %vm1651, %v1641, %v1254
        %v1675 = vsel %vm1651, %v1642, %v1256
        %v1676 = vsel %vm1651, %v1643, %v1258
        %v1677 = vsel %vm1651, %v1644, %v1260
        %v1678 = vsel %vm1651, %v1645, %v1262
        %v1679 = vsel %vm1651, %v1646, %v1264
        %v1680 = vsel %vm1651, %v1647, %v1266
        %v1681 = vsel %vm1651, %v1648, %v1268
        %v1682 = vsel %vm1651, %v1649, %v1270
        %v1683 = vsel %vm1651, %v1650, %v1270
        %vm1684 = vcmask 457728
        %v1685 = vsel %vm1684, %v1652, %v1303
        %v1686 = vsel %vm1684, %v1653, %v1305
        %v1687 = vsel %vm1684, %v1654, %v1307
        %v1688 = vsel %vm1684, %v1655, %v1309
        %v1689 = vsel %vm1684, %v1656, %v1311
        %v1690 = vsel %vm1684, %v1657, %v1313
        %v1691 = vsel %vm1684, %v1658, %v1315
        %v1692 = vsel %vm1684, %v1659, %v1317
        %v1693 = vsel %vm1684, %v1660, %v1319
        %v1694 = vsel %vm1684, %v1661, %v1321
        %v1695 = vsel %vm1684, %v1662, %v1323
        %v1696 = vsel %vm1684, %v1663, %v1325
        %v1697 = vsel %vm1684, %v1664, %v1327
        %v1698 = vsel %vm1684, %v1665, %v1329
        %v1699 = vsel %vm1684, %v1666, %v1331
        %v1700 = vsel %vm1684, %v1667, %v1333
        %v1701 = vsel %vm1684, %v1668, %v1335
        %v1702 = vsel %vm1684, %v1669, %v1337
        %v1703 = vsel %vm1684, %v1670, %v1339
        %v1704 = vsel %vm1684, %v1671, %v1341
        %v1705 = vsel %vm1684, %v1672, %v1343
        %v1706 = vsel %vm1684, %v1673, %v1345
        %v1707 = vsel %vm1684, %v1674, %v1347
        %v1708 = vsel %vm1684, %v1675, %v1349
        %v1709 = vsel %vm1684, %v1676, %v1351
        %v1710 = vsel %vm1684, %v1677, %v1353
        %v1711 = vsel %vm1684, %v1678, %v1355
        %v1712 = vsel %vm1684, %v1679, %v1357
        %v1713 = vsel %vm1684, %v1680, %v1359
        %v1714 = vsel %vm1684, %v1681, %v1361
        %v1715 = vsel %vm1684, %v1682, %v1363
        %v1716 = vsel %vm1684, %v1683, %v1363
        %vm1717 = vcmask 523264
        %v1718 = vsel %vm1717, %v1685, %v1396
        %v1719 = vsel %vm1717, %v1686, %v1398
        %v1720 = vsel %vm1717, %v1687, %v1400
        %v1721 = vsel %vm1717, %v1688, %v1402
        %v1722 = vsel %vm1717, %v1689, %v1404
        %v1723 = vsel %vm1717, %v1690, %v1406
        %v1724 = vsel %vm1717, %v1691, %v1408
        %v1725 = vsel %vm1717, %v1692, %v1410
        %v1726 = vsel %vm1717, %v1693, %v1412
        %v1727 = vsel %vm1717, %v1694, %v1414
        %v1728 = vsel %vm1717, %v1695, %v1416
        %v1729 = vsel %vm1717, %v1696, %v1418
        %v1730 = vsel %vm1717, %v1697, %v1420
        %v1731 = vsel %vm1717, %v1698, %v1422
        %v1732 = vsel %vm1717, %v1699, %v1424
        %v1733 = vsel %vm1717, %v1700, %v1426
        %v1734 = vsel %vm1717, %v1701, %v1428
        %v1735 = vsel %vm1717, %v1702, %v1430
        %v1736 = vsel %vm1717, %v1703, %v1432
        %v1737 = vsel %vm1717, %v1704, %v1434
        %v1738 = vsel %vm1717, %v1705, %v1436
        %v1739 = vsel %vm1717, %v1706, %v1438
        %v1740 = vsel %vm1717, %v1707, %v1440
        %v1741 = vsel %vm1717, %v1708, %v1442
        %v1742 = vsel %vm1717, %v1709, %v1444
        %v1743 = vsel %vm1717, %v1710, %v1446
        %v1744 = vsel %vm1717, %v1711, %v1448
        %v1745 = vsel %vm1717, %v1712, %v1450
        %v1746 = vsel %vm1717, %v1713, %v1452
        %v1747 = vsel %vm1717, %v1714, %v1454
        %v1748 = vsel %vm1717, %v1715, %v1456
        %v1749 = vsel %vm1717, %v1716, %v1456
        %v1750 = vpack.c.bf16 %v1719, %v1718
        %v1751 = vpack.c.bf16 %v1721, %v1720
        %v1752 = vpack.c.bf16 %v1723, %v1722
        %v1753 = vpack.c.bf16 %v1725, %v1724
        %v1754 = vpack.c.bf16 %v1727, %v1726
        %v1755 = vpack.c.bf16 %v1729, %v1728
        %v1756 = vpack.c.bf16 %v1731, %v1730
        %v1757 = vpack.c.bf16 %v1733, %v1732
        %v1758 = vpack.c.bf16 %v1735, %v1734
        %v1759 = vpack.c.bf16 %v1737, %v1736
        %v1760 = vpack.c.bf16 %v1739, %v1738
        %v1761 = vpack.c.bf16 %v1741, %v1740
        %v1762 = vpack.c.bf16 %v1743, %v1742
        %v1763 = vpack.c.bf16 %v1745, %v1744
        %v1764 = vpack.c.bf16 %v1747, %v1746
        %v1765 = vpack.c.bf16 %v1749, %v1748
        %v1766 = vld [vmem:[#allocation8] sm:$0xf]
        %v1767 = vld [vmem:[#allocation8 + $0x4] sm:$0xf]
        %v1768 = vld [vmem:[#allocation8 + $0x8] sm:$0xf]
        %v1769 = vld [vmem:[#allocation8 + $0xc] sm:$0xf]
        %v1770 = vld [vmem:[#allocation8 + $0x10] sm:$0xf]
        %v1771 = vld [vmem:[#allocation8 + $0x14] sm:$0xf]
        %v1772 = vld [vmem:[#allocation8 + $0x18] sm:$0xf]
        %v1773 = vld [vmem:[#allocation8 + $0x1c] sm:$0xf]
        %v1774 = vld [vmem:[#allocation8 + $0x20] sm:$0xf]
        %v1784 = vunpack.c.l.b16 %v1766
        %v1785 = vunpack.c.l.b16 %v1767
        %v1786 = vunpack.c.l.b16 %v1768
        %v1787 = vunpack.c.l.b16 %v1769
        %v1788 = vunpack.c.l.b16 %v1770
        %v1789 = vunpack.c.l.b16 %v1771
        %v1790 = vunpack.c.l.b16 %v1772
        %v1791 = vunpack.c.l.b16 %v1773
        %v1792 = vunpack.c.l.b16 %v1774
        %v1793 = vpack.c.b16 %v1785, %v1784
        %v1794 = vpack.c.b16 %v1787, %v1786
        %v1795 = vpack.c.b16 %v1789, %v1788
        %v1796 = vpack.c.b16 %v1791, %v1790
        %v1797 = vpack.c.b16 %v1792, %v1792
        %vm1802 = vcmask 588800
        %v1804 = vsel %vm1802, %v1750, 0
        %v1807 = vsel %vm1802, %v1751, 0
        %v1810 = vsel %vm1802, %v1752, 0
        %v1813 = vsel %vm1802, %v1753, 0
        %v1816 = vsel %vm1802, %v1754, 0
        %v1819 = vsel %vm1802, %v1755, 0
        %v1822 = vsel %vm1802, %v1756, 0
        %v1825 = vsel %vm1802, %v1757, 0
        %v1828 = vsel %vm1802, %v1758, 0
        %v1831 = vsel %vm1802, %v1759, 0
        %v1834 = vsel %vm1802, %v1760, 0
        %v1837 = vsel %vm1802, %v1761, 0
        %v1840 = vsel %vm1802, %v1762, 0
        %v1843 = vsel %vm1802, %v1763, 0
        %v1846 = vsel %vm1802, %v1764, 0
        %v1849 = vsel %vm1802, %v1765, 0
        %vm1851 = vcmask 1043456
        %v1853 = vsel %vm1851, %v1797, 0
        %1855 = vmatprep.subr.bf16.mxu0 0
        %1856 = vmatpush1.bf16.msra.mxu0 %v1793
        %1857 = vmatprep.subr.bf16.mxu0 0
        %1858 = vmatpush1.bf16.msra.mxu0 %v1794
        %1859 = vmatprep.subr.bf16.mxu0 0
        %1860 = vmatpush1.bf16.msra.mxu0 %v1795
        %1861 = vmatprep.subr.bf16.mxu0 0
        %1862 = vmatpush1.bf16.msra.mxu0 %v1796
        %1863 = vmatprep.subr.bf16.mxu0 0
        %1864 = vmatpush1.bf16.msra.mxu0 %v1853
        %1865 = vmatprep.subr.bf16.mxu0 0
        %1866 = vmatpush1.bf16.msra.mxu0 0
        %1867 = vmatprep.subr.bf16.mxu0 0
        %1868 = vmatpush1.bf16.msra.mxu0 0
        %1869 = vmatprep.subr.bf16.mxu0 0
        %1870 = vmatpush1.bf16.msra.mxu0 0
        %1871 = vmatprep.subr.bf16.mxu0 0
        %1872 = vmatpush1.bf16.msra.mxu0 0
        %1873 = vmatprep.subr.bf16.mxu0 0
        %1874 = vmatpush1.bf16.msra.mxu0 0
        %1875 = vmatprep.subr.bf16.mxu0 0
        %1876 = vmatpush1.bf16.msra.mxu0 0
        %1877 = vmatprep.subr.bf16.mxu0 0
        %1878 = vmatpush1.bf16.msra.mxu0 0
        %1879 = vmatprep.subr.bf16.mxu0 0
        %1880 = vmatpush1.bf16.msra.mxu0 0
        %1881 = vmatprep.subr.bf16.mxu0 0
        %1882 = vmatpush1.bf16.msra.mxu0 0
        %1883 = vmatprep.subr.bf16.mxu0 0
        %1884 = vmatpush1.bf16.msra.mxu0 0
        %1885 = vmatprep.subr.bf16.mxu0 0
        %1886 = vmatpush1.bf16.msra.mxu0 0
        %1887 = vmatprep.mubr.bf16.mxu0 0
        %1888 = vmatmul.mubr.bf16.gmra.mrb[0].mxu0 %v1804
        %v1889 = vpop.f32.mrb[0].mxu0
        %v1890 = vadd.f32 0.0, %v1889
        %v1891 = vpop.f32.mrb[0].mxu0
        %v1892 = vpop.f32.mrb[0].mxu0
        %v1893 = vadd.f32 0.0, %v1892
        %v1894 = vpop.f32.mrb[0].mxu0
        %1895 = vmatprep.mubr.bf16.mxu0 0
        %1896 = vmatmul.mubr.bf16.gmra.mrb[0].mxu0 %v1807
        %v1897 = vpop.f32.mrb[0].mxu0
        %v1898 = vadd.f32 0.0, %v1897
        %v1899 = vpop.f32.mrb[0].mxu0
        %v1900 = vpop.f32.mrb[0].mxu0
        %v1901 = vadd.f32 0.0, %v1900
        %v1902 = vpop.f32.mrb[0].mxu0
        %1903 = vmatprep.mubr.bf16.mxu0 0
        %1904 = vmatmul.mubr.bf16.gmra.mrb[0].mxu0 %v1810
        %v1905 = vpop.f32.mrb[0].mxu0
        %v1906 = vadd.f32 0.0, %v1905
        %v1907 = vpop.f32.mrb[0].mxu0
        %v1908 = vpop.f32.mrb[0].mxu0
        %v1909 = vadd.f32 0.0, %v1908
        %v1910 = vpop.f32.mrb[0].mxu0
        %1911 = vmatprep.mubr.bf16.mxu0 0
        %1912 = vmatmul.mubr.bf16.gmra.mrb[0].mxu0 %v1813
        %v1913 = vpop.f32.mrb[0].mxu0
        %v1914 = vadd.f32 0.0, %v1913
        %v1915 = vpop.f32.mrb[0].mxu0
        %v1916 = vpop.f32.mrb[0].mxu0
        %v1917 = vadd.f32 0.0, %v1916
        %v1918 = vpop.f32.mrb[0].mxu0
        %1919 = vmatprep.mubr.bf16.mxu0 0
        %1920 = vmatmul.mubr.bf16.gmra.mrb[0].mxu0 %v1816
        %v1921 = vpop.f32.mrb[0].mxu0
        %v1922 = vadd.f32 0.0, %v1921
        %v1923 = vpop.f32.mrb[0].mxu0
        %v1924 = vpop.f32.mrb[0].mxu0
        %v1925 = vadd.f32 0.0, %v1924
        %v1926 = vpop.f32.mrb[0].mxu0
        %1927 = vmatprep.mubr.bf16.mxu0 0
        %1928 = vmatmul.mubr.bf16.gmra.mrb[0].mxu0 %v1819
        %v1929 = vpop.f32.mrb[0].mxu0
        %v1930 = vadd.f32 0.0, %v1929
        %v1931 = vpop.f32.mrb[0].mxu0
        %v1932 = vpop.f32.mrb[0].mxu0
        %v1933 = vadd.f32 0.0, %v1932
        %v1934 = vpop.f32.mrb[0].mxu0
        %1935 = vmatprep.mubr.bf16.mxu0 0
        %1936 = vmatmul.mubr.bf16.gmra.mrb[0].mxu0 %v1822
        %v1937 = vpop.f32.mrb[0].mxu0
        %v1938 = vadd.f32 0.0, %v1937
        %v1939 = vpop.f32.mrb[0].mxu0
        %v1940 = vpop.f32.mrb[0].mxu0
        %v1941 = vadd.f32 0.0, %v1940
        %v1942 = vpop.f32.mrb[0].mxu0
        %1943 = vmatprep.mubr.bf16.mxu0 0
        %1944 = vmatmul.mubr.bf16.gmra.mrb[0].mxu0 %v1825
        %v1945 = vpop.f32.mrb[0].mxu0
        %v1946 = vadd.f32 0.0, %v1945
        %v1947 = vpop.f32.mrb[0].mxu0
        %v1948 = vpop.f32.mrb[0].mxu0
        %v1949 = vadd.f32 0.0, %v1948
        %v1950 = vpop.f32.mrb[0].mxu0
        %1951 = vmatprep.mubr.bf16.mxu0 0
        %1952 = vmatmul.mubr.bf16.gmra.mrb[0].mxu0 %v1828
        %v1953 = vpop.f32.mrb[0].mxu0
        %v1954 = vadd.f32 0.0, %v1953
        %v1955 = vpop.f32.mrb[0].mxu0
        %v1956 = vpop.f32.mrb[0].mxu0
        %v1957 = vadd.f32 0.0, %v1956
        %v1958 = vpop.f32.mrb[0].mxu0
        %1959 = vmatprep.mubr.bf16.mxu0 0
        %1960 = vmatmul.mubr.bf16.gmra.mrb[0].mxu0 %v1831
        %v1961 = vpop.f32.mrb[0].mxu0
        %v1962 = vadd.f32 0.0, %v1961
        %v1963 = vpop.f32.mrb[0].mxu0
        %v1964 = vpop.f32.mrb[0].mxu0
        %v1965 = vadd.f32 0.0, %v1964
        %v1966 = vpop.f32.mrb[0].mxu0
        %1967 = vmatprep.mubr.bf16.mxu0 0
        %1968 = vmatmul.mubr.bf16.gmra.mrb[0].mxu0 %v1834
        %v1969 = vpop.f32.mrb[0].mxu0
        %v1970 = vadd.f32 0.0, %v1969
        %v1971 = vpop.f32.mrb[0].mxu0
        %v1972 = vpop.f32.mrb[0].mxu0
        %v1973 = vadd.f32 0.0, %v1972
        %v1974 = vpop.f32.mrb[0].mxu0
        %1975 = vmatprep.mubr.bf16.mxu0 0
        %1976 = vmatmul.mubr.bf16.gmra.mrb[0].mxu0 %v1837
        %v1977 = vpop.f32.mrb[0].mxu0
        %v1978 = vadd.f32 0.0, %v1977
        %v1979 = vpop.f32.mrb[0].mxu0
        %v1980 = vpop.f32.mrb[0].mxu0
        %v1981 = vadd.f32 0.0, %v1980
        %v1982 = vpop.f32.mrb[0].mxu0
        %1983 = vmatprep.mubr.bf16.mxu0 0
        %1984 = vmatmul.mubr.bf16.gmra.mrb[0].mxu0 %v1840
        %v1985 = vpop.f32.mrb[0].mxu0
        %v1986 = vadd.f32 0.0, %v1985
        %v1987 = vpop.f32.mrb[0].mxu0
        %v1988 = vpop.f32.mrb[0].mxu0
        %v1989 = vadd.f32 0.0, %v1988
        %v1990 = vpop.f32.mrb[0].mxu0
        %1991 = vmatprep.mubr.bf16.mxu0 0
        %1992 = vmatmul.mubr.bf16.gmra.mrb[0].mxu0 %v1843
        %v1993 = vpop.f32.mrb[0].mxu0
        %v1994 = vadd.f32 0.0, %v1993
        %v1995 = vpop.f32.mrb[0].mxu0
        %v1996 = vpop.f32.mrb[0].mxu0
        %v1997 = vadd.f32 0.0, %v1996
        %v1998 = vpop.f32.mrb[0].mxu0
        %1999 = vmatprep.mubr.bf16.mxu0 0
        %2000 = vmatmul.mubr.bf16.gmra.mrb[0].mxu0 %v1846
        %v2001 = vpop.f32.mrb[0].mxu0
        %v2002 = vadd.f32 0.0, %v2001
        %v2003 = vpop.f32.mrb[0].mxu0
        %v2004 = vpop.f32.mrb[0].mxu0
        %v2005 = vadd.f32 0.0, %v2004
        %v2006 = vpop.f32.mrb[0].mxu0
        %2007 = vmatprep.mubr.bf16.mxu0 0
        %2008 = vmatmul.mubr.bf16.gmra.mrb[0].mxu0 %v1849
        %v2009 = vpop.f32.mrb[0].mxu0
        %v2010 = vadd.f32 0.0, %v2009
        %v2011 = vpop.f32.mrb[0].mxu0
        %v2012 = vpop.f32.mrb[0].mxu0
        %v2013 = vadd.f32 0.0, %v2012
        %v2014 = vpop.f32.mrb[0].mxu0
        %2015 = vdwg.mxu0
        %2016 = vst.msk [vmem:[%s286] sm:$0xff] %vm1488, %v1890
        %2017 = vst.msk [vmem:[%s286 + $0x8] sm:$0xff] %vm1488, %v1893
        %2018 = vst.msk [vmem:[%s286 + $0x10] sm:$0xff] %vm1488, %v1898
        %2019 = vst.msk [vmem:[%s286 + $0x18] sm:$0xff] %vm1488, %v1901
        %2020 = vst.msk [vmem:[%s286 + $0x20] sm:$0xff] %vm1488, %v1906
        %2021 = vst.msk [vmem:[%s286 + $0x28] sm:$0xff] %vm1488, %v1909
        %2022 = vst.msk [vmem:[%s286 + $0x30] sm:$0xff] %vm1488, %v1914
        %2023 = vst.msk [vmem:[%s286 + $0x38] sm:$0xff] %vm1488, %v1917
        %2024 = vst.msk [vmem:[%s286 + $0x40] sm:$0xff] %vm1488, %v1922
        %2025 = vst.msk [vmem:[%s286 + $0x48] sm:$0xff] %vm1488, %v1925
        %2026 = vst.msk [vmem:[%s286 + $0x50] sm:$0xff] %vm1488, %v1930
        %2027 = vst.msk [vmem:[%s286 + $0x58] sm:$0xff] %vm1488, %v1933
        %2028 = vst.msk [vmem:[%s286 + $0x60] sm:$0xff] %vm1488, %v1938
        %2029 = vst.msk [vmem:[%s286 + $0x68] sm:$0xff] %vm1488, %v1941
        %2030 = vst.msk [vmem:[%s286 + $0x70] sm:$0xff] %vm1488, %v1946
        %2031 = vst.msk [vmem:[%s286 + $0x78] sm:$0xff] %vm1488, %v1949
        %2032 = vst.msk [vmem:[%s286 + $0x80] sm:$0xff] %vm1488, %v1954
        %2033 = vst.msk [vmem:[%s286 + $0x88] sm:$0xff] %vm1488, %v1957
        %2034 = vst.msk [vmem:[%s286 + $0x90] sm:$0xff] %vm1488, %v1962
        %2035 = vst.msk [vmem:[%s286 + $0x98] sm:$0xff] %vm1488, %v1965
        %2036 = vst.msk [vmem:[%s286 + $0xa0] sm:$0xff] %vm1488, %v1970
        %2037 = vst.msk [vmem:[%s286 + $0xa8] sm:$0xff] %vm1488, %v1973
        %2038 = vst.msk [vmem:[%s286 + $0xb0] sm:$0xff] %vm1488, %v1978
        %2039 = vst.msk [vmem:[%s286 + $0xb8] sm:$0xff] %vm1488, %v1981
        %2040 = vst.msk [vmem:[%s286 + $0xc0] sm:$0xff] %vm1488, %v1986
        %2041 = vst.msk [vmem:[%s286 + $0xc8] sm:$0xff] %vm1488, %v1989
        %2042 = vst.msk [vmem:[%s286 + $0xd0] sm:$0xff] %vm1488, %v1994
        %2043 = vst.msk [vmem:[%s286 + $0xd8] sm:$0xff] %vm1488, %v1997
        %2044 = vst.msk [vmem:[%s286 + $0xe0] sm:$0xff] %vm1488, %v2002
        %2045 = vst.msk [vmem:[%s286 + $0xe8] sm:$0xff] %vm1488, %v2005
        %2046 = vst.msk [vmem:[%s286 + $0xf0] sm:$0xff] %vm1488, %v2010
        %2047 = vst.msk [vmem:[%s286 + $0xf8] sm:$0xff] %vm1488, %v2013
        %v2048 = vsel %vm1488, %v1890, 0.0
        %v2049 = vsel %vm1488, %v1893, 0.0
        %v2050 = vadd.f32 %v2048, %v2049
        %v2051 = vsel %vm1488, %v1898, 0.0
        %v2052 = vadd.f32 %v2050, %v2051
        %v2053 = vsel %vm1488, %v1901, 0.0
        %v2054 = vadd.f32 %v2052, %v2053
        %v2055 = vsel %vm1488, %v1906, 0.0
        %v2056 = vadd.f32 %v2054, %v2055
        %v2057 = vsel %vm1488, %v1909, 0.0
        %v2058 = vadd.f32 %v2056, %v2057
        %v2059 = vsel %vm1488, %v1914, 0.0
        %v2060 = vadd.f32 %v2058, %v2059
        %v2061 = vsel %vm1488, %v1917, 0.0
        %v2062 = vadd.f32 %v2060, %v2061
        %v2063 = vsel %vm1488, %v1922, 0.0
        %v2064 = vadd.f32 %v2062, %v2063
        %v2065 = vsel %vm1488, %v1925, 0.0
        %v2066 = vadd.f32 %v2064, %v2065
        %v2067 = vsel %vm1488, %v1930, 0.0
        %v2068 = vadd.f32 %v2066, %v2067
        %v2069 = vsel %vm1488, %v1933, 0.0
        %v2070 = vadd.f32 %v2068, %v2069
        %v2071 = vsel %vm1488, %v1938, 0.0
        %v2072 = vadd.f32 %v2070, %v2071
        %v2073 = vsel %vm1488, %v1941, 0.0
        %v2074 = vadd.f32 %v2072, %v2073
        %v2075 = vsel %vm1488, %v1946, 0.0
        %v2076 = vadd.f32 %v2074, %v2075
        %v2077 = vsel %vm1488, %v1949, 0.0
        %v2078 = vadd.f32 %v2076, %v2077
        %v2079 = vsel %vm1488, %v1954, 0.0
        %v2080 = vadd.f32 %v2078, %v2079
        %v2081 = vsel %vm1488, %v1957, 0.0
        %v2082 = vadd.f32 %v2080, %v2081
        %v2083 = vsel %vm1488, %v1962, 0.0
        %v2084 = vadd.f32 %v2082, %v2083
        %v2085 = vsel %vm1488, %v1965, 0.0
        %v2086 = vadd.f32 %v2084, %v2085
        %v2087 = vsel %vm1488, %v1970, 0.0
        %v2088 = vadd.f32 %v2086, %v2087
        %v2089 = vsel %vm1488, %v1973, 0.0
        %v2090 = vadd.f32 %v2088, %v2089
        %v2091 = vsel %vm1488, %v1978, 0.0
        %v2092 = vadd.f32 %v2090, %v2091
        %v2093 = vsel %vm1488, %v1981, 0.0
        %v2094 = vadd.f32 %v2092, %v2093
        %v2095 = vsel %vm1488, %v1986, 0.0
        %v2096 = vadd.f32 %v2094, %v2095
        %v2097 = vsel %vm1488, %v1989, 0.0
        %v2098 = vadd.f32 %v2096, %v2097
        %v2099 = vsel %vm1488, %v1994, 0.0
        %v2100 = vadd.f32 %v2098, %v2099
        %v2101 = vsel %vm1488, %v1997, 0.0
        %v2102 = vadd.f32 %v2100, %v2101
        %v2103 = vsel %vm1488, %v2002, 0.0
        %v2104 = vadd.f32 %v2102, %v2103
        %v2105 = vsel %vm1488, %v2005, 0.0
        %v2106 = vadd.f32 %v2104, %v2105
        %v2107 = vsel %vm1488, %v2010, 0.0
        %v2108 = vadd.f32 %v2106, %v2107
        %v2109 = vsel %vm1488, %v2013, 0.0
        %v2110 = vadd.f32 %v2108, %v2109
        %v2111 = vrot.slane %v2110, 4
        %v2112 = vadd.f32 %v2110, %v2111
        %v2113 = vrot.slane %v2112, 2
        %v2114 = vadd.f32 %v2112, %v2113
        %v2115 = vrot.slane %v2114, 1
        %v2116 = vadd.f32 %v2114, %v2115
        %v2117 = vmul.f32 %v1890, %v1890
        %v2118 = vmul.f32 %v1893, %v1893
        %v2119 = vmul.f32 %v1898, %v1898
        %v2120 = vmul.f32 %v1901, %v1901
        %v2121 = vmul.f32 %v1906, %v1906
        %v2122 = vmul.f32 %v1909, %v1909
        %v2123 = vmul.f32 %v1914, %v1914
        %v2124 = vmul.f32 %v1917, %v1917
        %v2125 = vmul.f32 %v1922, %v1922
        %v2126 = vmul.f32 %v1925, %v1925
        %v2127 = vmul.f32 %v1930, %v1930
        %v2128 = vmul.f32 %v1933, %v1933
        %v2129 = vmul.f32 %v1938, %v1938
        %v2130 = vmul.f32 %v1941, %v1941
        %v2131 = vmul.f32 %v1946, %v1946
        %v2132 = vmul.f32 %v1949, %v1949
        %v2133 = vmul.f32 %v1954, %v1954
        %v2134 = vmul.f32 %v1957, %v1957
        %v2135 = vmul.f32 %v1962, %v1962
        %v2136 = vmul.f32 %v1965, %v1965
        %v2137 = vmul.f32 %v1970, %v1970
        %v2138 = vmul.f32 %v1973, %v1973
        %v2139 = vmul.f32 %v1978, %v1978
        %v2140 = vmul.f32 %v1981, %v1981
        %v2141 = vmul.f32 %v1986, %v1986
        %v2142 = vmul.f32 %v1989, %v1989
        %v2143 = vmul.f32 %v1994, %v1994
        %v2144 = vmul.f32 %v1997, %v1997
        %v2145 = vmul.f32 %v2002, %v2002
        %v2146 = vmul.f32 %v2005, %v2005
        %v2147 = vmul.f32 %v2010, %v2010
        %v2148 = vmul.f32 %v2013, %v2013
        %v2149 = vsel %vm1488, %v2117, 0.0
        %v2150 = vsel %vm1488, %v2118, 0.0
        %v2151 = vadd.f32 %v2149, %v2150
        %v2152 = vsel %vm1488, %v2119, 0.0
        %v2153 = vadd.f32 %v2151, %v2152
        %v2154 = vsel %vm1488, %v2120, 0.0
        %v2155 = vadd.f32 %v2153, %v2154
        %v2156 = vsel %vm1488, %v2121, 0.0
        %v2157 = vadd.f32 %v2155, %v2156
        %v2158 = vsel %vm1488, %v2122, 0.0
        %v2159 = vadd.f32 %v2157, %v2158
        %v2160 = vsel %vm1488, %v2123, 0.0
        %v2161 = vadd.f32 %v2159, %v2160
        %v2162 = vsel %vm1488, %v2124, 0.0
        %v2163 = vadd.f32 %v2161, %v2162
        %v2164 = vsel %vm1488, %v2125, 0.0
        %v2165 = vadd.f32 %v2163, %v2164
        %v2166 = vsel %vm1488, %v2126, 0.0
        %v2167 = vadd.f32 %v2165, %v2166
        %v2168 = vsel %vm1488, %v2127, 0.0
        %v2169 = vadd.f32 %v2167, %v2168
        %v2170 = vsel %vm1488, %v2128, 0.0
        %v2171 = vadd.f32 %v2169, %v2170
        %v2172 = vsel %vm1488, %v2129, 0.0
        %v2173 = vadd.f32 %v2171, %v2172
        %v2174 = vsel %vm1488, %v2130, 0.0
        %v2175 = vadd.f32 %v2173, %v2174
        %v2176 = vsel %vm1488, %v2131, 0.0
        %v2177 = vadd.f32 %v2175, %v2176
        %v2178 = vsel %vm1488, %v2132, 0.0
        %v2179 = vadd.f32 %v2177, %v2178
        %v2180 = vsel %vm1488, %v2133, 0.0
        %v2181 = vadd.f32 %v2179, %v2180
        %v2182 = vsel %vm1488, %v2134, 0.0
        %v2183 = vadd.f32 %v2181, %v2182
        %v2184 = vsel %vm1488, %v2135, 0.0
        %v2185 = vadd.f32 %v2183, %v2184
        %v2186 = vsel %vm1488, %v2136, 0.0
        %v2187 = vadd.f32 %v2185, %v2186
        %v2188 = vsel %vm1488, %v2137, 0.0
        %v2189 = vadd.f32 %v2187, %v2188
        %v2190 = vsel %vm1488, %v2138, 0.0
        %v2191 = vadd.f32 %v2189, %v2190
        %v2192 = vsel %vm1488, %v2139, 0.0
        %v2193 = vadd.f32 %v2191, %v2192
        %v2194 = vsel %vm1488, %v2140, 0.0
        %v2195 = vadd.f32 %v2193, %v2194
        %v2196 = vsel %vm1488, %v2141, 0.0
        %v2197 = vadd.f32 %v2195, %v2196
        %v2198 = vsel %vm1488, %v2142, 0.0
        %v2199 = vadd.f32 %v2197, %v2198
        %v2200 = vsel %vm1488, %v2143, 0.0
        %v2201 = vadd.f32 %v2199, %v2200
        %v2202 = vsel %vm1488, %v2144, 0.0
        %v2203 = vadd.f32 %v2201, %v2202
        %v2204 = vsel %vm1488, %v2145, 0.0
        %v2205 = vadd.f32 %v2203, %v2204
        %v2206 = vsel %vm1488, %v2146, 0.0
        %v2207 = vadd.f32 %v2205, %v2206
        %v2208 = vsel %vm1488, %v2147, 0.0
        %v2209 = vadd.f32 %v2207, %v2208
        %v2210 = vsel %vm1488, %v2148, 0.0
        %v2211 = vadd.f32 %v2209, %v2210
        %v2212 = vrot.slane %v2211, 4
        %v2213 = vadd.f32 %v2211, %v2212
        %v2214 = vrot.slane %v2213, 2
        %v2215 = vadd.f32 %v2213, %v2214
        %v2216 = vrot.slane %v2215, 1
        %v2217 = vadd.f32 %v2215, %v2216
        %vm2218 = vcmask 1040384
        %v2219 = vsel %vm2218, %v2116, %v2217
        %vm2220 = vcmask 58368
        %2221 = vst.msk [vmem:[%s293] sm:$0x3] %vm2220, %v2219
        %s2222 = sand.u32 %s125, 1
        %s2223 = scalar_lea.sflag [#allocation4], %s2222
        %s2224 = sand.u32 %s125, 1
        %s2225 = smul.addr %s2224, 256
        %s2226 = scalar_lea.vmem [#allocation10], %s2225
        %s2227 = sand.u32 %s151, 1
        %s2228 = scalar_lea.sflag [#allocation12], %s2227
        %s2229 = sand.u32 %s151, 1
        %s2230 = smul.addr %s2229, 2
        %s2231 = scalar_lea.vmem [#allocation11], %s2230
        // Predicated region
        $region53: #{residual_block.4} parent=35 // pred_check
          %p2232 = pneg %p135
        $region54: #{residual_block.4} parent=35 // pred_check_branch
          %2234 = sbr.rel (%p2232) target = $region56
        $region55: #{residual_block.4} parent=35 // pred_region
          %s2236 = ssub.s32 4096, 4096
          %2237 = vsyncadd %s2223, %s2236
          %s2238 = smul.addr %s28, 32
          %s2239 = smul.addr %s2238, 128
          %s2240 = scalar_lea.hbm %s4, %s2239
          %s2241 = sshll.u32 %s2226, 4
          %s2242 = int_to_ptr.vmem [resolvable:$true] %s2241
          %2247 = dma.vmem_to_hbm [thread:$0]  %s2242, 4096, %s2240, %s2223, 128, 128, 8
        $region56: #{residual_block.4} parent=35 // pred_fallthru
          _
        // Predicated region
        $region57: #{residual_block.4} parent=35 // pred_check
          %p2248 = pneg %p161
        $region58: #{residual_block.4} parent=35 // pred_check_branch
          %2250 = sbr.rel (%p2248) target = $region60
        $region59: #{residual_block.4} parent=35 // pred_region
          %s2252 = ssub.s32 32, 32
          %2253 = vsyncadd %s2228, %s2252
          %s2254 = smul.addr %s28, 32
          %s2255 = scalar_lea.hbm %s5, %s2254
          %s2257 = sshll.u32 %s2231, 4
          %s2258 = int_to_ptr.vmem [resolvable:$true] %s2257
          %2260 = dma.vmem_to_hbm [thread:$0]  %s2258, 32, %s2255, %s2228
        $region60: #{residual_block.4} parent=35 // pred_fallthru
          _
      $region36: #{residual_block.4} parent=5 // pred_fallthru
        _
      %p2261 = scmp.le.s32.totalorder 2, %s23
      // Predicated region
      $region61: #{residual_block.4} parent=5 // pred_check
        %p2262 = pneg %p2261
      $region62: #{residual_block.4} parent=5 // pred_check_branch
        %2264 = sbr.rel (%p2262) target = $region64
      $region63: #{residual_block.4} parent=5 // pred_region
        %s2265 = ssub.s32 %s23, 2
        // Predicated region
        $region65: #{residual_block.4} parent=63 // pred_check
          %p2266 = pneg %p141
        $region66: #{residual_block.4} parent=63 // pred_check_branch
          %2268 = sbr.rel (%p2266) target = $region68
        $region67: #{residual_block.4} parent=63 // pred_region
          %s2269 = sand.u32 %s126, 1
          %s2270 = scalar_lea.sflag [#allocation4], %s2269
          %s2271 = sand.u32 %s126, 1
          %s2272 = smul.addr %s2271, 256
          %s2273 = scalar_lea.vmem [#allocation10], %s2272
          %2274 = dma.done %s2270, 4096
        $region68: #{residual_block.4} parent=63 // pred_fallthru
          _
        // Predicated region
        $region69: #{residual_block.4} parent=63 // pred_check
          %p2275 = pneg %p167
        $region70: #{residual_block.4} parent=63 // pred_check_branch
          %2277 = sbr.rel (%p2275) target = $region72
        $region71: #{residual_block.4} parent=63 // pred_region
          %s2278 = sand.u32 %s152, 1
          %s2279 = scalar_lea.sflag [#allocation12], %s2278
          %s2280 = sand.u32 %s152, 1
          %s2281 = smul.addr %s2280, 2
          %s2282 = scalar_lea.vmem [#allocation11], %s2281
          %2283 = dma.done %s2279, 32
        $region72: #{residual_block.4} parent=63 // pred_fallthru
          _
      $region64: #{residual_block.4} parent=5 // pred_fallthru
        _
    $region6: #{residual_block.4} parent=1 // loop_footer
      %s27 = sadd.s32 1, %s23
    $region7: #{residual_block.4} parent=1 // loop_footer_branch
      %22 = sbr.rel target = $region3
    $region8: #{residual_block.4} parent=1 // loop_exit
      _
    %2284 = vsyncpa [#allocation3], 1
    %s2285 = scalar_lea.sflag [#allocation3], 1
    %2286 = vsyncpa %s2285, 1
    %2287 = vsyncpa [#allocation6], 1
    %2288 = vsyncpa [#allocation9], 1
    %2289 = vsyncpa [#allocation4], 1
    %s2290 = scalar_lea.sflag [#allocation4], 1
    %2291 = vsyncpa %s2290, 1
    %2292 = vsyncpa [#allocation12], 1
    %s2293 = scalar_lea.sflag [#allocation12], 1
    %2294 = vsyncpa %s2293, 1

// kernel: residual_block.3
$region0: #{residual_block.3}
  #allocation0 [shape = 'u32[]', space=smem, size = 0x4, offset = 0x4, fixed_abs, tag = 'smem constant byte address 0x4 - core index']
  #allocation1 [shape = 'u32[144,128]{1,0:T(1,128)}', space=vmem, size = 0x12000, scoped, tag = 'internal scratch']
  %s0 = inlined_call_operand.hbm [shape: f32[2,16,16,8], index: 0, kind: input, shape index: {}]
  %s1 = inlined_call_operand.hbm [shape: bf16[72,8], index: 1, kind: input, shape index: {}]
  %s2 = inlined_call_operand.hbm [shape: f32[2,16,16,8], index: 2, kind: output, shape index: {0}]
  %s3 = inlined_call_operand.hbm [shape: f32[2,2,8], index: 3, kind: output, shape index: {1}]
  %4 = xla_tuple %s2, %s3
  %s5 = sld [smem:[#allocation0]]
  $region57: #{residual_block.3} parent=0
    _
  %s7 = ssub.s32 1, %s5
  %s8 = scalar_select 0, %s7, %s5
  $region1: #{residual_block.3} parent=0
    #allocation2 [shape = 'u8[262144]{0}', space=vmem, size = 0x40000, scoped, tag = 'input window, operand 0']
    #allocation3 [shape = 's32[2]{0}', space=sflag, size = 0x8, scoped, tag = 'scoped memory for residual_block.3']
    #allocation4 [shape = 's32[2]{0}', space=sflag, size = 0x8, scoped, tag = 'scoped memory for residual_block.3']
    #allocation5 [shape = 'u8[18432]{0}', space=vmem, size = 0x4800, scoped, tag = 'input window, operand 1, single buffered']
    #allocation6 [shape = 's32[1]{0}', space=sflag, size = 0x4, scoped, tag = 'scoped memory for residual_block.3']
    #allocation7 [shape = 'u8[262144]{0}', space=vmem, size = 0x40000, scoped, tag = 'output window, operand 0']
    #allocation8 [shape = 'u8[2048]{0}', space=vmem, size = 0x800, scoped, tag = 'output window, operand 1']
    #allocation9 [shape = 's32[2]{0}', space=sflag, size = 0x8, scoped, tag = 'scoped memory for residual_block.3']
    %9 = vsyncpa [#allocation3], 0
    %s10 = scalar_lea.sflag [#allocation3], 1
    %11 = vsyncpa %s10, 0
    %12 = vsyncpa [#allocation6], 0
    %13 = vsyncpa [#allocation4], 0
    %s14 = scalar_lea.sflag [#allocation4], 1
    %15 = vsyncpa %s14, 0
    %16 = vsyncpa [#allocation9], 0
    %s17 = scalar_lea.sflag [#allocation9], 1
    %18 = vsyncpa %s17, 0
    loop: start=0, step=1, limit=4
    $region2: #{residual_block.3} parent=1 // loop_pre_header
      _
    $region3: #{residual_block.3} parent=1 // loop_header
      %s20 = sphi 0, %s24
      %p21 = scmp.ge.s32.totalorder %s20, 4
      %s30 = sphi 0, %s32
      %s33 = sphi 0, %s30
      %s34 = sphi 0, %s33
      %s50 = sphi 0, %s34
      %s54 = sphi 0, %s54
      %s56 = sphi 0, %s54
      %s57 = sphi 0, %s56
      %s71 = sphi 0, %s57
      %s77 = sphi 0, %s79
      %s80 = sphi 0, %s77
      %s81 = sphi 0, %s80
      %s97 = sphi 0, %s81
      %s103 = sphi 0, %s105
      %s106 = sphi 0, %s103
      %s107 = sphi 0, %s106
      %s123 = sphi 0, %s107
    $region4: #{residual_block.3} parent=1 // loop_header_branch
      %23 = sbr.rel (%p21) target = $region8
    $region5: #{residual_block.3} parent=1 // loop_body
      %s25 = ssub.s32 %s20, 1
      %s26 = ssub.s32 %s20, 2
      %s27 = sadd.s32 %s20, 1
      %s28 = ssub.s32 %s20, %s27
      %p29 = scmp.eq.s32.totalorder %s28, 0
      %s31 = sadd.s32 %s30, 1
      %s32 = scalar_select %p29, %s30, %s31
      %p35 = pneg %p29
      %p36 = scmp.eq.s32.totalorder %s20, 1
      %p37 = por %p35, %p36
      %p38 = scmp.ne.s32.totalorder %s30, %s33
      %p39 = scmp.eq.s32.totalorder %s20, 0
      %p40 = por %p38, %p39
      %p41 = scmp.ne.s32.totalorder %s30, %s33
      %p42 = scmp.eq.s32.totalorder %s25, 1
      %p43 = por %p41, %p42
      %p44 = scmp.ne.s32.totalorder %s33, %s34
      %p45 = scmp.eq.s32.totalorder %s25, 0
      %p46 = por %p44, %p45
      %p47 = scmp.ne.s32.totalorder %s33, %s34
      %p48 = scmp.eq.s32.totalorder %s26, 1
      %p49 = por %p47, %p48
      %p51 = scmp.ne.s32.totalorder %s34, %s50
      %p52 = scmp.eq.s32.totalorder %s26, 0
      %p53 = por %p51, %p52
      %s55 = sadd.s32 %s54, 1
      %p58 = scmp.eq.s32.totalorder %s20, 1
      %p59 = scmp.ne.s32.totalorder %s54, %s56
      %p60 = scmp.eq.s32.totalorder %s20, 0
      %p61 = por %p59, %p60
      %p62 = scmp.ne.s32.totalorder %s54, %s56
      %p63 = scmp.eq.s32.totalorder %s25, 1
      %p64 = por %p62, %p63
      %p65 = scmp.ne.s32.totalorder %s56, %s57
      %p66 = scmp.eq.s32.totalorder %s25, 0
      %p67 = por %p65, %p66
      %p68 = scmp.ne.s32.totalorder %s56, %s57
      %p69 = scmp.eq.s32.totalorder %s26, 1
      %p70 = por %p68, %p69
      %p72 = scmp.ne.s32.totalorder %s57, %s71
      %p73 = scmp.eq.s32.totalorder %s26, 0
      %p74 = por %p72, %p73
      %s75 = ssub.s32 %s20, %s27
      %p76 = scmp.eq.s32.totalorder %s75, 0
      %s78 = sadd.s32 %s77, 1
      %s79 = scalar_select %p76, %s77, %s78
      %p82 = pneg %p76
      %p83 = scmp.eq.s32.totalorder %s20, 1
      %p84 = por %p82, %p83
      %p85 = scmp.ne.s32.totalorder %s77, %s80
      %p86 = scmp.eq.s32.totalorder %s20, 0
      %p87 = por %p85, %p86
      %p88 = scmp.ne.s32.totalorder %s77, %s80
      %p89 = scmp.eq.s32.totalorder %s25, 1
      %p90 = por %p88, %p89
      %p91 = scmp.ne.s32.totalorder %s80, %s81
      %p92 = scmp.eq.s32.totalorder %s25, 0
      %p93 = por %p91, %p92
      %p94 = scmp.ne.s32.totalorder %s80, %s81
      %p95 = scmp.eq.s32.totalorder %s26, 1
      %p96 = por %p94, %p95
      %p98 = scmp.ne.s32.totalorder %s81, %s97
      %p99 = scmp.eq.s32.totalorder %s26, 0
      %p100 = por %p98, %p99
      %s101 = ssub.s32 %s20, %s27
      %p102 = scmp.eq.s32.totalorder %s101, 0
      %s104 = sadd.s32 %s103, 1
      %s105 = scalar_select %p102, %s103, %s104
      %p108 = pneg %p102
      %p109 = scmp.eq.s32.totalorder %s20, 1
      %p110 = por %p108, %p109
      %p111 = scmp.ne.s32.totalorder %s103, %s106
      %p112 = scmp.eq.s32.totalorder %s20, 0
      %p113 = por %p111, %p112
      %p114 = scmp.ne.s32.totalorder %s103, %s106
      %p115 = scmp.eq.s32.totalorder %s25, 1
      %p116 = por %p114, %p115
      %p117 = scmp.ne.s32.totalorder %s106, %s107
      %p118 = scmp.eq.s32.totalorder %s25, 0
      %p119 = por %p117, %p118
      %p120 = scmp.ne.s32.totalorder %s106, %s107
      %p121 = scmp.eq.s32.totalorder %s26, 1
      %p122 = por %p120, %p121
      %p124 = scmp.ne.s32.totalorder %s107, %s123
      %p125 = scmp.eq.s32.totalorder %s26, 0
      %p126 = por %p124, %p125
      %p127 = scmp.le.s32.totalorder 1, %s20
      %p128 = scmp.lt.s32.totalorder %s20, 3
      %p129 = pnand %p127, %p128
      %p130 = pneg %p129
      // Predicated region
      $region9: #{residual_block.3} parent=5 // pred_check
        _
      $region10: #{residual_block.3} parent=5 // pred_check_branch
        %132 = sbr.rel (%p129) target = $region12
      $region11: #{residual_block.3} parent=5 // pred_region
        %s133 = ssub.s32 %s20, 1
        // Predicated region
        $region13: #{residual_block.3} parent=11 // pred_check
          %p134 = pneg %p67
        $region14: #{residual_block.3} parent=11 // pred_check_branch
          %136 = sbr.rel (%p134) target = $region16
        $region15: #{residual_block.3} parent=11 // pred_region
          %s138 = ssub.s32 576, 576
          %139 = vsyncadd [#allocation6], %s138
          %s140 = sshll.u32 [#allocation5], 4
          %s141 = int_to_ptr.vmem [resolvable:$true] %s140
          %146 = dma.hbm_to_vmem [thread:$0]  %s1, 576, %s141, [#allocation6], 64, 64, 4
        $region16: #{residual_block.3} parent=11 // pred_fallthru
          _
      $region12: #{residual_block.3} parent=5 // pred_fallthru
        _
      %p147 = scmp.lt.s32.totalorder %s20, 2
      // Predicated region
      $region17: #{residual_block.3} parent=5 // pred_check
        %p148 = pneg %p147
      $region18: #{residual_block.3} parent=5 // pred_check_branch
        %150 = sbr.rel (%p148) target = $region20
      $region19: #{residual_block.3} parent=5 // pred_region
        // Predicated region
        $region21: #{residual_block.3} parent=19 // pred_check
          %p151 = pneg %p40
        $region22: #{residual_block.3} parent=19 // pred_check_branch
          %153 = sbr.rel (%p151) target = $region24
        $region23: #{residual_block.3} parent=19 // pred_region
          %s154 = sand.u32 %s30, 1
          %s155 = scalar_lea.sflag [#allocation3], %s154
          %s156 = sand.u32 %s30, 1
          %s157 = smul.addr %s156, 256
          %s158 = scalar_lea.vmem [#allocation2], %s157
          %s160 = ssub.s32 4096, 4096
          %161 = vsyncadd %s155, %s160
          %s162 = smul.addr %s20, 32
          %s163 = smul.addr %s162, 128
          %s164 = scalar_lea.hbm %s0, %s163
          %s165 = sshll.u32 %s158, 4
          %s166 = int_to_ptr.vmem [resolvable:$true] %s165
          %171 = dma.hbm_to_vmem [thread:$0]  %s164, 4096, %s166, %s155, 128, 128, 8
        $region24: #{residual_block.3} parent=19 // pred_fallthru
          _
      $region20: #{residual_block.3} parent=5 // pred_fallthru
        _
      %p172 = scmp.le.s32.totalorder 1, %s20
      %p173 = scmp.lt.s32.totalorder %s20, 3
      %p174 = pnand %p172, %p173
      %p175 = pneg %p174
      // Predicated region
      $region25: #{residual_block.3} parent=5 // pred_check
        _
      $region26: #{residual_block.3} parent=5 // pred_check_branch
        %177 = sbr.rel (%p174) target = $region28
      $region27: #{residual_block.3} parent=5 // pred_region
        %s178 = ssub.s32 %s20, 1
        %s179 = sand.u32 %s33, 1
        %s180 = scalar_lea.sflag [#allocation3], %s179
        %s181 = sand.u32 %s33, 1
        %s182 = smul.addr %s181, 256
        %s183 = scalar_lea.vmem [#allocation2], %s182
        // Predicated region
        $region29: #{residual_block.3} parent=27 // pred_check
          %p184 = pneg %p46
        $region30: #{residual_block.3} parent=27 // pred_check_branch
          %186 = sbr.rel (%p184) target = $region32
        $region31: #{residual_block.3} parent=27 // pred_region
          %187 = dma.done %s180, 4096
        $region32: #{residual_block.3} parent=27 // pred_fallthru
          _
        // Predicated region
        $region33: #{residual_block.3} parent=27 // pred_check
          %p188 = pneg %p67
        $region34: #{residual_block.3} parent=27 // pred_check_branch
          %190 = sbr.rel (%p188) target = $region36
        $region35: #{residual_block.3} parent=27 // pred_region
          %191 = dma.done [#allocation6], 576
        $region36: #{residual_block.3} parent=27 // pred_fallthru
          _
        %s192 = sand.u32 %s33, 1
        %s193 = scalar_lea.sflag [#allocation3], %s192
        %s194 = sand.u32 %s33, 1
        %s195 = smul.addr %s194, 256
        %s196 = scalar_lea.vmem [#allocation2], %s195
        %p197 = pneg %p46
        %p198 = pneg %p43
        %p199 = pneg %p67
        %p200 = pneg %p64
        %p201 = pneg %p93
        %p202 = pneg %p90
        %s203 = sand.u32 %s80, 1
        %s204 = scalar_lea.sflag [#allocation4], %s203
        %s205 = sand.u32 %s80, 1
        %s206 = smul.addr %s205, 256
        %s207 = scalar_lea.vmem [#allocation7], %s206
        %p208 = pneg %p119
        %p209 = pneg %p116
        %s210 = sand.u32 %s106, 1
        %s211 = scalar_lea.sflag [#allocation9], %s210
        %s212 = sand.u32 %s106, 1
        %s213 = smul.addr %s212, 2
        %s214 = scalar_lea.vmem [#allocation8], %s213
        %v216 = vld [vmem:[%s183] sm:$0xff]
        %v217 = vld [vmem:[%s183 + $0x8] sm:$0xff]
        %v218 = vld [vmem:[%s183 + $0x10] sm:$0xff]
        %v219 = vld [vmem:[%s183 + $0x18] sm:$0xff]
        %v220 = vld [vmem:[%s183 + $0x20] sm:$0xff]
        %v221 = vld [vmem:[%s183 + $0x28] sm:$0xff]
        %v222 = vld [vmem:[%s183 + $0x30] sm:$0xff]
        %v223 = vld [vmem:[%s183 + $0x38] sm:$0xff]
        %v224 = vld [vmem:[%s183 + $0x40] sm:$0xff]
        %v225 = vld [vmem:[%s183 + $0x48] sm:$0xff]
        %v226 = vld [vmem:[%s183 + $0x50] sm:$0xff]
        %v227 = vld [vmem:[%s183 + $0x58] sm:$0xff]
        %v228 = vld [vmem:[%s183 + $0x60] sm:$0xff]
        %v229 = vld [vmem:[%s183 + $0x68] sm:$0xff]
        %v230 = vld [vmem:[%s183 + $0x70] sm:$0xff]
        %v231 = vld [vmem:[%s183 + $0x78] sm:$0xff]
        %v232 = vld [vmem:[%s183 + $0x80] sm:$0xff]
        %v233 = vld [vmem:[%s183 + $0x88] sm:$0xff]
        %v234 = vld [vmem:[%s183 + $0x90] sm:$0xff]
        %v235 = vld [vmem:[%s183 + $0x98] sm:$0xff]
        %v236 = vld [vmem:[%s183 + $0xa0] sm:$0xff]
        %v237 = vld [vmem:[%s183 + $0xa8] sm:$0xff]
        %v238 = vld [vmem:[%s183 + $0xb0] sm:$0xff]
        %v239 = vld [vmem:[%s183 + $0xb8] sm:$0xff]
        %v240 = vld [vmem:[%s183 + $0xc0] sm:$0xff]
        %v241 = vld [vmem:[%s183 + $0xc8] sm:$0xff]
        %v242 = vld [vmem:[%s183 + $0xd0] sm:$0xff]
        %v243 = vld [vmem:[%s183 + $0xd8] sm:$0xff]
        %v244 = vld [vmem:[%s183 + $0xe0] sm:$0xff]
        %v245 = vld [vmem:[%s183 + $0xe8] sm:$0xff]
        %v246 = vld [vmem:[%s183 + $0xf0] sm:$0xff]
        %v247 = vld [vmem:[%s183 + $0xf8] sm:$0xff]
        %v248 = vlaneseq
        %v249 = vshrl.u32 %v248, 7
        %v250 = vadd.s32 %v249, 8
        %vm251 = vcmp.gt.s32.totalorder %v249, 0
        %vm252 = vcmp.gt.s32.totalorder %v250, 0
        %v253 = vrot.slane %v216, 7
        %v254 = vrot.slane %v217, 7
        %v255 = vrot.slane %v218, 7
        %v256 = vrot.slane %v219, 7
        %v257 = vrot.slane %v220, 7
        %v258 = vrot.slane %v221, 7
        %v259 = vrot.slane %v222, 7
        %v260 = vrot.slane %v223, 7
        %v261 = vrot.slane %v224, 7
        %v262 = vrot.slane %v225, 7
        %v263 = vrot.slane %v226, 7
        %v264 = vrot.slane %v227, 7
        %v265 = vrot.slane %v228, 7
        %v266 = vrot.slane %v229, 7
        %v267 = vrot.slane %v230, 7
        %v268 = vrot.slane %v231, 7
        %v269 = vrot.slane %v232, 7
        %v270 = vrot.slane %v233, 7
        %v271 = vrot.slane %v234, 7
        %v272 = vrot.slane %v235, 7
        %v273 = vrot.slane %v236, 7
        %v274 = vrot.slane %v237, 7
        %v275 = vrot.slane %v238, 7
        %v276 = vrot.slane %v239, 7
        %v277 = vrot.slane %v240, 7
        %v278 = vrot.slane %v241, 7
        %v279 = vrot.slane %v242, 7
        %v280 = vrot.slane %v243, 7
        %v281 = vrot.slane %v244, 7
        %v282 = vrot.slane %v245, 7
        %v283 = vrot.slane %v246, 7
        %v284 = vrot.slane %v247, 7
        %vm285 = vcmp.lt.s32.totalorder %v249, 1
        %v286 = vsel %vm285, %v283, %v284
        %v287 = vsel %vm285, %v282, %v283
        %v288 = vsel %vm285, %v281, %v282
        %v289 = vsel %vm285, %v280, %v281
        %v290 = vsel %vm285, %v279, %v280
        %v291 = vsel %vm285, %v278, %v279
        %v292 = vsel %vm285, %v277, %v278
        %v293 = vsel %vm285, %v276, %v277
        %v294 = vsel %vm285, %v275, %v276
        %v295 = vsel %vm285, %v274, %v275
        %v296 = vsel %vm285, %v273, %v274
        %v297 = vsel %vm285, %v272, %v273
        %v298 = vsel %vm285, %v271, %v272
        %v299 = vsel %vm285, %v270, %v271
        %v300 = vsel %vm285, %v269, %v270
        %v301 = vsel %vm285, %v268, %v269
        %v302 = vsel %vm285, %v267, %v268
        %v303 = vsel %vm285, %v266, %v267
        %v304 = vsel %vm285, %v265, %v266
        %v305 = vsel %vm285, %v264, %v265
        %v306 = vsel %vm285, %v263, %v264
        %v307 = vsel %vm285, %v262, %v263
        %v308 = vsel %vm285, %v261, %v262
        %v309 = vsel %vm285, %v260, %v261
        %v310 = vsel %vm285, %v259, %v260
        %v311 = vsel %vm285, %v258, %v259
        %v312 = vsel %vm285, %v257, %v258
        %v313 = vsel %vm285, %v256, %v257
        %v314 = vsel %vm285, %v255, %v256
        %v315 = vsel %vm285, %v254, %v255
        %v316 = vsel %vm285, %v253, %v254
        %v317 = vsel %vm285, %v284, %v253
        %v318 = vsel %vm251, %v317, 0.0
        %v319 = vsel %vm252, %v316, 0.0
        %v320 = vsel %vm251, %v315, 0.0
        %v321 = vsel %vm252, %v314, 0.0
        %v322 = vsel %vm251, %v313, 0.0
        %v323 = vsel %vm252, %v312, 0.0
        %v324 = vsel %vm251, %v311, 0.0
        %v325 = vsel %vm252, %v310, 0.0
        %v326 = vsel %vm251, %v309, 0.0
        %v327 = vsel %vm252, %v308, 0.0
        %v328 = vsel %vm251, %v307, 0.0
        %v329 = vsel %vm252, %v306, 0.0
        %v330 = vsel %vm251, %v305, 0.0
        %v331 = vsel %vm252, %v304, 0.0
        %v332 = vsel %vm251, %v303, 0.0
        %v333 = vsel %vm252, %v302, 0.0
        %v334 = vsel %vm251, %v301, 0.0
        %v335 = vsel %vm252, %v300, 0.0
        %v336 = vsel %vm251, %v299, 0.0
        %v337 = vsel %vm252, %v298, 0.0
        %v338 = vsel %vm251, %v297, 0.0
        %v339 = vsel %vm252, %v296, 0.0
        %v340 = vsel %vm251, %v295, 0.0
        %v341 = vsel %vm252, %v294, 0.0
        %v342 = vsel %vm251, %v293, 0.0
        %v343 = vsel %vm252, %v292, 0.0
        %v344 = vsel %vm251, %v291, 0.0
        %v345 = vsel %vm252, %v290, 0.0
        %v346 = vsel %vm251, %v289, 0.0
        %v347 = vsel %vm252, %v288, 0.0
        %v348 = vsel %vm251, %v287, 0.0
        %v349 = vsel %vm252, %v286, 0.0
        %vm350 = vcmp.lt.s32.totalorder %v249, 15
        %vm351 = vcmp.lt.s32.totalorder %v250, 15
        %v352 = vrot.slane %v216, 1
        %v353 = vrot.slane %v217, 1
        %v354 = vrot.slane %v218, 1
        %v355 = vrot.slane %v219, 1
        %v356 = vrot.slane %v220, 1
        %v357 = vrot.slane %v221, 1
        %v358 = vrot.slane %v222, 1
        %v359 = vrot.slane %v223, 1
        %v360 = vrot.slane %v224, 1
        %v361 = vrot.slane %v225, 1
        %v362 = vrot.slane %v226, 1
        %v363 = vrot.slane %v227, 1
        %v364 = vrot.slane %v228, 1
        %v365 = vrot.slane %v229, 1
        %v366 = vrot.slane %v230, 1
        %v367 = vrot.slane %v231, 1
        %v368 = vrot.slane %v232, 1
        %v369 = vrot.slane %v233, 1
        %v370 = vrot.slane %v234, 1
        %v371 = vrot.slane %v235, 1
        %v372 = vrot.slane %v236, 1
        %v373 = vrot.slane %v237, 1
        %v374 = vrot.slane %v238, 1
        %v375 = vrot.slane %v239, 1
        %v376 = vrot.slane %v240, 1
        %v377 = vrot.slane %v241, 1
        %v378 = vrot.slane %v242, 1
        %v379 = vrot.slane %v243, 1
        %v380 = vrot.slane %v244, 1
        %v381 = vrot.slane %v245, 1
        %v382 = vrot.slane %v246, 1
        %v383 = vrot.slane %v247, 1
        %vm384 = vcmp.lt.s32.totalorder %v249, 7
        %v385 = vsel %vm384, %v382, %v383
        %v386 = vsel %vm384, %v381, %v382
        %v387 = vsel %vm384, %v380, %v381
        %v388 = vsel %vm384, %v379, %v380
        %v389 = vsel %vm384, %v378, %v379
        %v390 = vsel %vm384, %v377, %v378
        %v391 = vsel %vm384, %v376, %v377
        %v392 = vsel %vm384, %v375, %v376
        %v393 = vsel %vm384, %v374, %v375
        %v394 = vsel %vm384, %v373, %v374
        %v395 = vsel %vm384, %v372, %v373
        %v396 = vsel %vm384, %v371, %v372
        %v397 = vsel %vm384, %v370, %v371
        %v398 = vsel %vm384, %v369, %v370
        %v399 = vsel %vm384, %v368, %v369
        %v400 = vsel %vm384, %v367, %v368
        %v401 = vsel %vm384, %v366, %v367
        %v402 = vsel %vm384, %v365, %v366
        %v403 = vsel %vm384, %v364, %v365
        %v404 = vsel %vm384, %v363, %v364
        %v405 = vsel %vm384, %v362, %v363
        %v406 = vsel %vm384, %v361, %v362
        %v407 = vsel %vm384, %v360, %v361
        %v408 = vsel %vm384, %v359, %v360
        %v409 = vsel %vm384, %v358, %v359
        %v410 = vsel %vm384, %v357, %v358
        %v411 = vsel %vm384, %v356, %v357
        %v412 = vsel %vm384, %v355, %v356
        %v413 = vsel %vm384, %v354, %v355
        %v414 = vsel %vm384, %v353, %v354
        %v415 = vsel %vm384, %v352, %v353
        %v416 = vsel %vm384, %v383, %v352
        %v417 = vsel %vm350, %v415, 0.0
        %v418 = vsel %vm351, %v414, 0.0
        %v419 = vsel %vm350, %v413, 0.0
        %v420 = vsel %vm351, %v412, 0.0
        %v421 = vsel %vm350, %v411, 0.0
        %v422 = vsel %vm351, %v410, 0.0
        %v423 = vsel %vm350, %v409, 0.0
        %v424 = vsel %vm351, %v408, 0.0
        %v425 = vsel %vm350, %v407, 0.0
        %v426 = vsel %vm351, %v406, 0.0
        %v427 = vsel %vm350, %v405, 0.0
        %v428 = vsel %vm351, %v404, 0.0
        %v429 = vsel %vm350, %v403, 0.0
        %v430 = vsel %vm351, %v402, 0.0
        %v431 = vsel %vm350, %v401, 0.0
        %v432 = vsel %vm351, %v400, 0.0
        %v433 = vsel %vm350, %v399, 0.0
        %v434 = vsel %vm351, %v398, 0.0
        %v435 = vsel %vm350, %v397, 0.0
        %v436 = vsel %vm351, %v396, 0.0
        %v437 = vsel %vm350, %v395, 0.0
        %v438 = vsel %vm351, %v394, 0.0
        %v439 = vsel %vm350, %v393, 0.0
        %v440 = vsel %vm351, %v392, 0.0
        %v441 = vsel %vm350, %v391, 0.0
        %v442 = vsel %vm351, %v390, 0.0
        %v443 = vsel %vm350, %v389, 0.0
        %v444 = vsel %vm351, %v388, 0.0
        %v445 = vsel %vm350, %v387, 0.0
        %v446 = vsel %vm351, %v386, 0.0
        %v447 = vsel %vm350, %v385, 0.0
        %v448 = vsel %vm351, %v416, 0.0
        %480 = vrot.lane.b32.xlu0 0.0, 8
        %v481 = vpop.permute.xlu0 %480
        %482 = vrot.lane.b32.xlu0 %v216, 8
        %v483 = vpop.permute.xlu0 %482
        %484 = vrot.lane.b32.xlu0 %v217, 8
        %v485 = vpop.permute.xlu0 %484
        %486 = vrot.lane.b32.xlu0 %v218, 8
        %v487 = vpop.permute.xlu0 %486
        %488 = vrot.lane.b32.xlu0 %v219, 8
        %v489 = vpop.permute.xlu0 %488
        %490 = vrot.lane.b32.xlu0 %v220, 8
        %v491 = vpop.permute.xlu0 %490
        %492 = vrot.lane.b32.xlu0 %v221, 8
        %v493 = vpop.permute.xlu0 %492
        %494 = vrot.lane.b32.xlu0 %v222, 8
        %v495 = vpop.permute.xlu0 %494
        %496 = vrot.lane.b32.xlu0 %v223, 8
        %v497 = vpop.permute.xlu0 %496
        %498 = vrot.lane.b32.xlu0 %v224, 8
        %v499 = vpop.permute.xlu0 %498
        %500 = vrot.lane.b32.xlu0 %v225, 8
        %v501 = vpop.permute.xlu0 %500
        %502 = vrot.lane.b32.xlu0 %v226, 8
        %v503 = vpop.permute.xlu0 %502
        %504 = vrot.lane.b32.xlu0 %v227, 8
        %v505 = vpop.permute.xlu0 %504
        %506 = vrot.lane.b32.xlu0 %v228, 8
        %v507 = vpop.permute.xlu0 %506
        %508 = vrot.lane.b32.xlu0 %v229, 8
        %v509 = vpop.permute.xlu0 %508
        %510 = vrot.lane.b32.xlu0 %v230, 8
        %v511 = vpop.permute.xlu0 %510
        %512 = vrot.lane.b32.xlu0 %v231, 8
        %v513 = vpop.permute.xlu0 %512
        %514 = vrot.lane.b32.xlu0 %v232, 8
        %v515 = vpop.permute.xlu0 %514
        %516 = vrot.lane.b32.xlu0 %v233, 8
        %v517 = vpop.permute.xlu0 %516
        %518 = vrot.lane.b32.xlu0 %v234, 8
        %v519 = vpop.permute.xlu0 %518
        %520 = vrot.lane.b32.xlu0 %v235, 8
        %v521 = vpop.permute.xlu0 %520
        %522 = vrot.lane.b32.xlu0 %v236, 8
        %v523 = vpop.permute.xlu0 %522
        %524 = vrot.lane.b32.xlu0 %v237, 8
        %v525 = vpop.permute.xlu0 %524
        %526 = vrot.lane.b32.xlu0 %v238, 8
        %v527 = vpop.permute.xlu0 %526
        %528 = vrot.lane.b32.xlu0 %v239, 8
        %v529 = vpop.permute.xlu0 %528
        %530 = vrot.lane.b32.xlu0 %v240, 8
        %v531 = vpop.permute.xlu0 %530
        %532 = vrot.lane.b32.xlu0 %v241, 8
        %v533 = vpop.permute.xlu0 %532
        %534 = vrot.lane.b32.xlu0 %v242, 8
        %v535 = vpop.permute.xlu0 %534
        %536 = vrot.lane.b32.xlu0 %v243, 8
        %v537 = vpop.permute.xlu0 %536
        %538 = vrot.lane.b32.xlu0 %v244, 8
        %v539 = vpop.permute.xlu0 %538
        %540 = vrot.lane.b32.xlu0 %v245, 8
        %v541 = vpop.permute.xlu0 %540
        %603 = vrot.lane.b32.xlu0 0.0, 16
        %v604 = vpop.permute.xlu0 %603
        %605 = vrot.lane.b32.xlu0 %v417, 16
        %v606 = vpop.permute.xlu0 %605
        %607 = vrot.lane.b32.xlu0 %v418, 16
        %v608 = vpop.permute.xlu0 %607
        %609 = vrot.lane.b32.xlu0 %v419, 16
        %v610 = vpop.permute.xlu0 %609
        %611 = vrot.lane.b32.xlu0 %v420, 16
        %v612 = vpop.permute.xlu0 %611
        %613 = vrot.lane.b32.xlu0 %v421, 16
        %v614 = vpop.permute.xlu0 %613
        %615 = vrot.lane.b32.xlu0 %v422, 16
        %v616 = vpop.permute.xlu0 %615
        %617 = vrot.lane.b32.xlu0 %v423, 16
        %v618 = vpop.permute.xlu0 %617
        %619 = vrot.lane.b32.xlu0 %v424, 16
        %v620 = vpop.permute.xlu0 %619
        %621 = vrot.lane.b32.xlu0 %v425, 16
        %v622 = vpop.permute.xlu0 %621
        %623 = vrot.lane.b32.xlu0 %v426, 16
        %v624 = vpop.permute.xlu0 %623
        %625 = vrot.lane.b32.xlu0 %v427, 16
        %v626 = vpop.permute.xlu0 %625
        %627 = vrot.lane.b32.xlu0 %v428, 16
        %v628 = vpop.permute.xlu0 %627
        %629 = vrot.lane.b32.xlu0 %v429, 16
        %v630 = vpop.permute.xlu0 %629
        %631 = vrot.lane.b32.xlu0 %v430, 16
        %v632 = vpop.permute.xlu0 %631
        %633 = vrot.lane.b32.xlu0 %v431, 16
        %v634 = vpop.permute.xlu0 %633
        %635 = vrot.lane.b32.xlu0 %v432, 16
        %v636 = vpop.permute.xlu0 %635
        %637 = vrot.lane.b32.xlu0 %v433, 16
        %v638 = vpop.permute.xlu0 %637
        %639 = vrot.lane.b32.xlu0 %v434, 16
        %v640 = vpop.permute.xlu0 %639
        %641 = vrot.lane.b32.xlu0 %v435, 16
        %v642 = vpop.permute.xlu0 %641
        %643 = vrot.lane.b32.xlu0 %v436, 16
        %v644 = vpop.permute.xlu0 %643
        %645 = vrot.lane.b32.xlu0 %v437, 16
        %v646 = vpop.permute.xlu0 %645
        %647 = vrot.lane.b32.xlu0 %v438, 16
        %v648 = vpop.permute.xlu0 %647
        %649 = vrot.lane.b32.xlu0 %v439, 16
        %v650 = vpop.permute.xlu0 %649
        %651 = vrot.lane.b32.xlu0 %v440, 16
        %v652 = vpop.permute.xlu0 %651
        %653 = vrot.lane.b32.xlu0 %v441, 16
        %v654 = vpop.permute.xlu0 %653
        %655 = vrot.lane.b32.xlu0 %v442, 16
        %v656 = vpop.permute.xlu0 %655
        %657 = vrot.lane.b32.xlu0 %v443, 16
        %v658 = vpop.permute.xlu0 %657
        %659 = vrot.lane.b32.xlu0 %v444, 16
        %v660 = vpop.permute.xlu0 %659
        %661 = vrot.lane.b32.xlu0 %v445, 16
        %v662 = vpop.permute.xlu0 %661
        %663 = vrot.lane.b32.xlu0 %v446, 16
        %v664 = vpop.permute.xlu0 %663
        %728 = vrot.lane.b32.xlu0 %v318, 24
        %v729 = vpop.permute.xlu0 %728
        %730 = vrot.lane.b32.xlu0 %v319, 24
        %v731 = vpop.permute.xlu0 %730
        %732 = vrot.lane.b32.xlu0 %v320, 24
        %v733 = vpop.permute.xlu0 %732
        %734 = vrot.lane.b32.xlu0 %v321, 24
        %v735 = vpop.permute.xlu0 %734
        %736 = vrot.lane.b32.xlu0 %v322, 24
        %v737 = vpop.permute.xlu0 %736
        %738 = vrot.lane.b32.xlu0 %v323, 24
        %v739 = vpop.permute.xlu0 %738
        %740 = vrot.lane.b32.xlu0 %v324, 24
        %v741 = vpop.permute.xlu0 %740
        %742 = vrot.lane.b32.xlu0 %v325, 24
        %v743 = vpop.permute.xlu0 %742
        %744 = vrot.lane.b32.xlu0 %v326, 24
        %v745 = vpop.permute.xlu0 %744
        %746 = vrot.lane.b32.xlu0 %v327, 24
        %v747 = vpop.permute.xlu0 %746
        %748 = vrot.lane.b32.xlu0 %v328, 24
        %v749 = vpop.permute.xlu0 %748
        %750 = vrot.lane.b32.xlu0 %v329, 24
        %v751 = vpop.permute.xlu0 %750
        %752 = vrot.lane.b32.xlu0 %v330, 24
        %v753 = vpop.permute.xlu0 %752
        %754 = vrot.lane.b32.xlu0 %v331, 24
        %v755 = vpop.permute.xlu0 %754
        %756 = vrot.lane.b32.xlu0 %v332, 24
        %v757 = vpop.permute.xlu0 %756
        %758 = vrot.lane.b32.xlu0 %v333, 24
        %v759 = vpop.permute.xlu0 %758
        %760 = vrot.lane.b32.xlu0 %v334, 24
        %v761 = vpop.permute.xlu0 %760
        %762 = vrot.lane.b32.xlu0 %v335, 24
        %v763 = vpop.permute.xlu0 %762
        %764 = vrot.lane.b32.xlu0 %v336, 24
        %v765 = vpop.permute.xlu0 %764
        %766 = vrot.lane.b32.xlu0 %v337, 24
        %v767 = vpop.permute.xlu0 %766
        %768 = vrot.lane.b32.xlu0 %v338, 24
        %v769 = vpop.permute.xlu0 %768
        %770 = vrot.lane.b32.xlu0 %v339, 24
        %v771 = vpop.permute.xlu0 %770
        %772 = vrot.lane.b32.xlu0 %v340, 24
        %v773 = vpop.permute.xlu0 %772
        %774 = vrot.lane.b32.xlu0 %v341, 24
        %v775 = vpop.permute.xlu0 %774
        %776 = vrot.lane.b32.xlu0 %v342, 24
        %v777 = vpop.permute.xlu0 %776
        %778 = vrot.lane.b32.xlu0 %v343, 24
        %v779 = vpop.permute.xlu0 %778
        %780 = vrot.lane.b32.xlu0 %v344, 24
        %v781 = vpop.permute.xlu0 %780
        %782 = vrot.lane.b32.xlu0 %v345, 24
        %v783 = vpop.permute.xlu0 %782
        %784 = vrot.lane.b32.xlu0 %v346, 24
        %v785 = vpop.permute.xlu0 %784
        %786 = vrot.lane.b32.xlu0 %v347, 24
        %v787 = vpop.permute.xlu0 %786
        %788 = vrot.lane.b32.xlu0 %v348, 24
        %v789 = vpop.permute.xlu0 %788
        %790 = vrot.lane.b32.xlu0 %v349, 24
        %v791 = vpop.permute.xlu0 %790
        %826 = vrot.lane.b32.xlu0 %v216, 32
        %v827 = vpop.permute.xlu0 %826
        %828 = vrot.lane.b32.xlu0 %v217, 32
        %v829 = vpop.permute.xlu0 %828
        %830 = vrot.lane.b32.xlu0 %v218, 32
        %v831 = vpop.permute.xlu0 %830
        %832 = vrot.lane.b32.xlu0 %v219, 32
        %v833 = vpop.permute.xlu0 %832
        %834 = vrot.lane.b32.xlu0 %v220, 32
        %v835 = vpop.permute.xlu0 %834
        %836 = vrot.lane.b32.xlu0 %v221, 32
        %v837 = vpop.permute.xlu0 %836
        %838 = vrot.lane.b32.xlu0 %v222, 32
        %v839 = vpop.permute.xlu0 %838
        %840 = vrot.lane.b32.xlu0 %v223, 32
        %v841 = vpop.permute.xlu0 %840
        %842 = vrot.lane.b32.xlu0 %v224, 32
        %v843 = vpop.permute.xlu0 %842
        %844 = vrot.lane.b32.xlu0 %v225, 32
        %v845 = vpop.permute.xlu0 %844
        %846 = vrot.lane.b32.xlu0 %v226, 32
        %v847 = vpop.permute.xlu0 %846
        %848 = vrot.lane.b32.xlu0 %v227, 32
        %v849 = vpop.permute.xlu0 %848
        %850 = vrot.lane.b32.xlu0 %v228, 32
        %v851 = vpop.permute.xlu0 %850
        %852 = vrot.lane.b32.xlu0 %v229, 32
        %v853 = vpop.permute.xlu0 %852
        %854 = vrot.lane.b32.xlu0 %v230, 32
        %v855 = vpop.permute.xlu0 %854
        %856 = vrot.lane.b32.xlu0 %v231, 32
        %v857 = vpop.permute.xlu0 %856
        %858 = vrot.lane.b32.xlu0 %v232, 32
        %v859 = vpop.permute.xlu0 %858
        %860 = vrot.lane.b32.xlu0 %v233, 32
        %v861 = vpop.permute.xlu0 %860
        %862 = vrot.lane.b32.xlu0 %v234, 32
        %v863 = vpop.permute.xlu0 %862
        %864 = vrot.lane.b32.xlu0 %v235, 32
        %v865 = vpop.permute.xlu0 %864
        %866 = vrot.lane.b32.xlu0 %v236, 32
        %v867 = vpop.permute.xlu0 %866
        %868 = vrot.lane.b32.xlu0 %v237, 32
        %v869 = vpop.permute.xlu0 %868
        %870 = vrot.lane.b32.xlu0 %v238, 32
        %v871 = vpop.permute.xlu0 %870
        %872 = vrot.lane.b32.xlu0 %v239, 32
        %v873 = vpop.permute.xlu0 %872
        %874 = vrot.lane.b32.xlu0 %v240, 32
        %v875 = vpop.permute.xlu0 %874
        %876 = vrot.lane.b32.xlu0 %v241, 32
        %v877 = vpop.permute.xlu0 %876
        %878 = vrot.lane.b32.xlu0 %v242, 32
        %v879 = vpop.permute.xlu0 %878
        %880 = vrot.lane.b32.xlu0 %v243, 32
        %v881 = vpop.permute.xlu0 %880
        %882 = vrot.lane.b32.xlu0 %v244, 32
        %v883 = vpop.permute.xlu0 %882
        %884 = vrot.lane.b32.xlu0 %v245, 32
        %v885 = vpop.permute.xlu0 %884
        %886 = vrot.lane.b32.xlu0 %v246, 32
        %v887 = vpop.permute.xlu0 %886
        %888 = vrot.lane.b32.xlu0 %v247, 32
        %v889 = vpop.permute.xlu0 %888
        %924 = vrot.lane.b32.xlu0 %v417, 40
        %v925 = vpop.permute.xlu0 %924
        %926 = vrot.lane.b32.xlu0 %v418, 40
        %v927 = vpop.permute.xlu0 %926
        %928 = vrot.lane.b32.xlu0 %v419, 40
        %v929 = vpop.permute.xlu0 %928
        %930 = vrot.lane.b32.xlu0 %v420, 40
        %v931 = vpop.permute.xlu0 %930
        %932 = vrot.lane.b32.xlu0 %v421, 40
        %v933 = vpop.permute.xlu0 %932
        %934 = vrot.lane.b32.xlu0 %v422, 40
        %v935 = vpop.permute.xlu0 %934
        %936 = vrot.lane.b32.xlu0 %v423, 40
        %v937 = vpop.permute.xlu0 %936
        %938 = vrot.lane.b32.xlu0 %v424, 40
        %v939 = vpop.permute.xlu0 %938
        %940 = vrot.lane.b32.xlu0 %v425, 40
        %v941 = vpop.permute.xlu0 %940
        %942 = vrot.lane.b32.xlu0 %v426, 40
        %v943 = vpop.permute.xlu0 %942
        %944 = vrot.lane.b32.xlu0 %v427, 40
        %v945 = vpop.permute.xlu0 %944
        %946 = vrot.lane.b32.xlu0 %v428, 40
        %v947 = vpop.permute.xlu0 %946
        %948 = vrot.lane.b32.xlu0 %v429, 40
        %v949 = vpop.permute.xlu0 %948
        %950 = vrot.lane.b32.xlu0 %v430, 40
        %v951 = vpop.permute.xlu0 %950
        %952 = vrot.lane.b32.xlu0 %v431, 40
        %v953 = vpop.permute.xlu0 %952
        %954 = vrot.lane.b32.xlu0 %v432, 40
        %v955 = vpop.permute.xlu0 %954
        %956 = vrot.lane.b32.xlu0 %v433, 40
        %v957 = vpop.permute.xlu0 %956
        %958 = vrot.lane.b32.xlu0 %v434, 40
        %v959 = vpop.permute.xlu0 %958
        %960 = vrot.lane.b32.xlu0 %v435, 40
        %v961 = vpop.permute.xlu0 %960
        %962 = vrot.lane.b32.xlu0 %v436, 40
        %v963 = vpop.permute.xlu0 %962
        %964 = vrot.lane.b32.xlu0 %v437, 40
        %v965 = vpop.permute.xlu0 %964
        %966 = vrot.lane.b32.xlu0 %v438, 40
        %v967 = vpop.permute.xlu0 %966
        %968 = vrot.lane.b32.xlu0 %v439, 40
        %v969 = vpop.permute.xlu0 %968
        %970 = vrot.lane.b32.xlu0 %v440, 40
        %v971 = vpop.permute.xlu0 %970
        %972 = vrot.lane.b32.xlu0 %v441, 40
        %v973 = vpop.permute.xlu0 %972
        %974 = vrot.lane.b32.xlu0 %v442, 40
        %v975 = vpop.permute.xlu0 %974
        %976 = vrot.lane.b32.xlu0 %v443, 40
        %v977 = vpop.permute.xlu0 %976
        %978 = vrot.lane.b32.xlu0 %v444, 40
        %v979 = vpop.permute.xlu0 %978
        %980 = vrot.lane.b32.xlu0 %v445, 40
        %v981 = vpop.permute.xlu0 %980
        %982 = vrot.lane.b32.xlu0 %v446, 40
        %v983 = vpop.permute.xlu0 %982
        %984 = vrot.lane.b32.xlu0 %v447, 40
        %v985 = vpop.permute.xlu0 %984
        %986 = vrot.lane.b32.xlu0 %v448, 40
        %v987 = vpop.permute.xlu0 %986
        %1020 = vrot.lane.b32.xlu0 %v320, 48
        %v1021 = vpop.permute.xlu0 %1020
        %1022 = vrot.lane.b32.xlu0 %v321, 48
        %v1023 = vpop.permute.xlu0 %1022
        %1024 = vrot.lane.b32.xlu0 %v322, 48
        %v1025 = vpop.permute.xlu0 %1024
        %1026 = vrot.lane.b32.xlu0 %v323, 48
        %v1027 = vpop.permute.xlu0 %1026
        %1028 = vrot.lane.b32.xlu0 %v324, 48
        %v1029 = vpop.permute.xlu0 %1028
        %1030 = vrot.lane.b32.xlu0 %v325, 48
        %v1031 = vpop.permute.xlu0 %1030
        %1032 = vrot.lane.b32.xlu0 %v326, 48
        %v1033 = vpop.permute.xlu0 %1032
        %1034 = vrot.lane.b32.xlu0 %v327, 48
        %v1035 = vpop.permute.xlu0 %1034
        %1036 = vrot.lane.b32.xlu0 %v328, 48
        %v1037 = vpop.permute.xlu0 %1036
        %1038 = vrot.lane.b32.xlu0 %v329, 48
        %v1039 = vpop.permute.xlu0 %1038
        %1040 = vrot.lane.b32.xlu0 %v330, 48
        %v1041 = vpop.permute.xlu0 %1040
        %1042 = vrot.lane.b32.xlu0 %v331, 48
        %v1043 = vpop.permute.xlu0 %1042
        %1044 = vrot.lane.b32.xlu0 %v332, 48
        %v1045 = vpop.permute.xlu0 %1044
        %1046 = vrot.lane.b32.xlu0 %v333, 48
        %v1047 = vpop.permute.xlu0 %1046
        %1048 = vrot.lane.b32.xlu0 %v334, 48
        %v1049 = vpop.permute.xlu0 %1048
        %1050 = vrot.lane.b32.xlu0 %v335, 48
        %v1051 = vpop.permute.xlu0 %1050
        %1052 = vrot.lane.b32.xlu0 %v336, 48
        %v1053 = vpop.permute.xlu0 %1052
        %1054 = vrot.lane.b32.xlu0 %v337, 48
        %v1055 = vpop.permute.xlu0 %1054
        %1056 = vrot.lane.b32.xlu0 %v338, 48
        %v1057 = vpop.permute.xlu0 %1056
        %1058 = vrot.lane.b32.xlu0 %v339, 48
        %v1059 = vpop.permute.xlu0 %1058
        %1060 = vrot.lane.b32.xlu0 %v340, 48
        %v1061 = vpop.permute.xlu0 %1060
        %1062 = vrot.lane.b32.xlu0 %v341, 48
        %v1063 = vpop.permute.xlu0 %1062
        %1064 = vrot.lane.b32.xlu0 %v342, 48
        %v1065 = vpop.permute.xlu0 %1064
        %1066 = vrot.lane.b32.xlu0 %v343, 48
        %v1067 = vpop.permute.xlu0 %1066
        %1068 = vrot.lane.b32.xlu0 %v344, 48
        %v1069 = vpop.permute.xlu0 %1068
        %1070 = vrot.lane.b32.xlu0 %v345, 48
        %v1071 = vpop.permute.xlu0 %1070
        %1072 = vrot.lane.b32.xlu0 %v346, 48
        %v1073 = vpop.permute.xlu0 %1072
        %1074 = vrot.lane.b32.xlu0 %v347, 48
        %v1075 = vpop.permute.xlu0 %1074
        %1076 = vrot.lane.b32.xlu0 %v348, 48
        %v1077 = vpop.permute.xlu0 %1076
        %1078 = vrot.lane.b32.xlu0 %v349, 48
        %v1079 = vpop.permute.xlu0 %1078
        %1080 = vrot.lane.b32.xlu0 0.0, 48
        %v1081 = vpop.permute.xlu0 %1080
        %1113 = vrot.lane.b32.xlu0 %v218, 56
        %v1114 = vpop.permute.xlu0 %1113
        %1115 = vrot.lane.b32.xlu0 %v219, 56
        %v1116 = vpop.permute.xlu0 %1115
        %1117 = vrot.lane.b32.xlu0 %v220, 56
        %v1118 = vpop.permute.xlu0 %1117
        %1119 = vrot.lane.b32.xlu0 %v221, 56
        %v1120 = vpop.permute.xlu0 %1119
        %1121 = vrot.lane.b32.xlu0 %v222, 56
        %v1122 = vpop.permute.xlu0 %1121
        %1123 = vrot.lane.b32.xlu0 %v223, 56
        %v1124 = vpop.permute.xlu0 %1123
        %1125 = vrot.lane.b32.xlu0 %v224, 56
        %v1126 = vpop.permute.xlu0 %1125
        %1127 = vrot.lane.b32.xlu0 %v225, 56
        %v1128 = vpop.permute.xlu0 %1127
        %1129 = vrot.lane.b32.xlu0 %v226, 56
        %v1130 = vpop.permute.xlu0 %1129
        %1131 = vrot.lane.b32.xlu0 %v227, 56
        %v1132 = vpop.permute.xlu0 %1131
        %1133 = vrot.lane.b32.xlu0 %v228, 56
        %v1134 = vpop.permute.xlu0 %1133
        %1135 = vrot.lane.b32.xlu0 %v229, 56
        %v1136 = vpop.permute.xlu0 %1135
        %1137 = vrot.lane.b32.xlu0 %v230, 56
        %v1138 = vpop.permute.xlu0 %1137
        %1139 = vrot.lane.b32.xlu0 %v231, 56
        %v1140 = vpop.permute.xlu0 %1139
        %1141 = vrot.lane.b32.xlu0 %v232, 56
        %v1142 = vpop.permute.xlu0 %1141
        %1143 = vrot.lane.b32.xlu0 %v233, 56
        %v1144 = vpop.permute.xlu0 %1143
        %1145 = vrot.lane.b32.xlu0 %v234, 56
        %v1146 = vpop.permute.xlu0 %1145
        %1147 = vrot.lane.b32.xlu0 %v235, 56
        %v1148 = vpop.permute.xlu0 %1147
        %1149 = vrot.lane.b32.xlu0 %v236, 56
        %v1150 = vpop.permute.xlu0 %1149
        %1151 = vrot.lane.b32.xlu0 %v237, 56
        %v1152 = vpop.permute.xlu0 %1151
        %1153 = vrot.lane.b32.xlu0 %v238, 56
        %v1154 = vpop.permute.xlu0 %1153
        %1155 = vrot.lane.b32.xlu0 %v239, 56
        %v1156 = vpop.permute.xlu0 %1155
        %1157 = vrot.lane.b32.xlu0 %v240, 56
        %v1158 = vpop.permute.xlu0 %1157
        %1159 = vrot.lane.b32.xlu0 %v241, 56
        %v1160 = vpop.permute.xlu0 %1159
        %1161 = vrot.lane.b32.xlu0 %v242, 56
        %v1162 = vpop.permute.xlu0 %1161
        %1163 = vrot.lane.b32.xlu0 %v243, 56
        %v1164 = vpop.permute.xlu0 %1163
        %1165 = vrot.lane.b32.xlu0 %v244, 56
        %v1166 = vpop.permute.xlu0 %1165
        %1167 = vrot.lane.b32.xlu0 %v245, 56
        %v1168 = vpop.permute.xlu0 %1167
        %1169 = vrot.lane.b32.xlu0 %v246, 56
        %v1170 = vpop.permute.xlu0 %1169
        %1171 = vrot.lane.b32.xlu0 %v247, 56
        %v1172 = vpop.permute.xlu0 %1171
        %1173 = vrot.lane.b32.xlu0 0.0, 56
        %v1174 = vpop.permute.xlu0 %1173
        %1206 = vrot.lane.b32.xlu0 %v419, 64
        %v1207 = vpop.permute.xlu0 %1206
        %1208 = vrot.lane.b32.xlu0 %v420, 64
        %v1209 = vpop.permute.xlu0 %1208
        %1210 = vrot.lane.b32.xlu0 %v421, 64
        %v1211 = vpop.permute.xlu0 %1210
        %1212 = vrot.lane.b32.xlu0 %v422, 64
        %v1213 = vpop.permute.xlu0 %1212
        %1214 = vrot.lane.b32.xlu0 %v423, 64
        %v1215 = vpop.permute.xlu0 %1214
        %1216 = vrot.lane.b32.xlu0 %v424, 64
        %v1217 = vpop.permute.xlu0 %1216
        %1218 = vrot.lane.b32.xlu0 %v425, 64
        %v1219 = vpop.permute.xlu0 %1218
        %1220 = vrot.lane.b32.xlu0 %v426, 64
        %v1221 = vpop.permute.xlu0 %1220
        %1222 = vrot.lane.b32.xlu0 %v427, 64
        %v1223 = vpop.permute.xlu0 %1222
        %1224 = vrot.lane.b32.xlu0 %v428, 64
        %v1225 = vpop.permute.xlu0 %1224
        %1226 = vrot.lane.b32.xlu0 %v429, 64
        %v1227 = vpop.permute.xlu0 %1226
        %1228 = vrot.lane.b32.xlu0 %v430, 64
        %v1229 = vpop.permute.xlu0 %1228
        %1230 = vrot.lane.b32.xlu0 %v431, 64
        %v1231 = vpop.permute.xlu0 %1230
        %1232 = vrot.lane.b32.xlu0 %v432, 64
        %v1233 = vpop.permute.xlu0 %1232
        %1234 = vrot.lane.b32.xlu0 %v433, 64
        %v1235 = vpop.permute.xlu0 %1234
        %1236 = vrot.lane.b32.xlu0 %v434, 64
        %v1237 = vpop.permute.xlu0 %1236
        %1238 = vrot.lane.b32.xlu0 %v435, 64
        %v1239 = vpop.permute.xlu0 %1238
        %1240 = vrot.lane.b32.xlu0 %v436, 64
        %v1241 = vpop.permute.xlu0 %1240
        %1242 = vrot.lane.b32.xlu0 %v437, 64
        %v1243 = vpop.permute.xlu0 %1242
        %1244 = vrot.lane.b32.xlu0 %v438, 64
        %v1245 = vpop.permute.xlu0 %1244
        %1246 = vrot.lane.b32.xlu0 %v439, 64
        %v1247 = vpop.permute.xlu0 %1246
        %1248 = vrot.lane.b32.xlu0 %v440, 64
        %v1249 = vpop.permute.xlu0 %1248
        %1250 = vrot.lane.b32.xlu0 %v441, 64
        %v1251 = vpop.permute.xlu0 %1250
        %1252 = vrot.lane.b32.xlu0 %v442, 64
        %v1253 = vpop.permute.xlu0 %1252
        %1254 = vrot.lane.b32.xlu0 %v443, 64
        %v1255 = vpop.permute.xlu0 %1254
        %1256 = vrot.lane.b32.xlu0 %v444, 64
        %v1257 = vpop.permute.xlu0 %1256
        %1258 = vrot.lane.b32.xlu0 %v445, 64
        %v1259 = vpop.permute.xlu0 %1258
        %1260 = vrot.lane.b32.xlu0 %v446, 64
        %v1261 = vpop.permute.xlu0 %1260
        %1262 = vrot.lane.b32.xlu0 %v447, 64
        %v1263 = vpop.permute.xlu0 %1262
        %1264 = vrot.lane.b32.xlu0 %v448, 64
        %v1265 = vpop.permute.xlu0 %1264
        %1266 = vrot.lane.b32.xlu0 0.0, 64
        %v1267 = vpop.permute.xlu0 %1266
        %vm1299 = vcmask 64512
        %v1300 = vsel %vm1299, 0.0, %v481
        %v1301 = vsel %vm1299, %v318, %v483
        %v1302 = vsel %vm1299, %v319, %v485
        %v1303 = vsel %vm1299, %v320, %v487
        %v1304 = vsel %vm1299, %v321, %v489
        %v1305 = vsel %vm1299, %v322, %v491
        %v1306 = vsel %vm1299, %v323, %v493
        %v1307 = vsel %vm1299, %v324, %v495
        %v1308 = vsel %vm1299, %v325, %v497
        %v1309 = vsel %vm1299, %v326, %v499
        %v1310 = vsel %vm1299, %v327, %v501
        %v1311 = vsel %vm1299, %v328, %v503
        %v1312 = vsel %vm1299, %v329, %v505
        %v1313 = vsel %vm1299, %v330, %v507
        %v1314 = vsel %vm1299, %v331, %v509
        %v1315 = vsel %vm1299, %v332, %v511
        %v1316 = vsel %vm1299, %v333, %v513
        %v1317 = vsel %vm1299, %v334, %v515
        %v1318 = vsel %vm1299, %v335, %v517
        %v1319 = vsel %vm1299, %v336, %v519
        %v1320 = vsel %vm1299, %v337, %v521
        %v1321 = vsel %vm1299, %v338, %v523
        %v1322 = vsel %vm1299, %v339, %v525
        %v1323 = vsel %vm1299, %v340, %v527
        %v1324 = vsel %vm1299, %v341, %v529
        %v1325 = vsel %vm1299, %v342, %v531
        %v1326 = vsel %vm1299, %v343, %v533
        %v1327 = vsel %vm1299, %v344, %v535
        %v1328 = vsel %vm1299, %v345, %v537
        %v1329 = vsel %vm1299, %v346, %v539
        %v1330 = vsel %vm1299, %v347, %v541
        %vm1331 = vcmask 130048
        %v1332 = vsel %vm1331, %v1300, %v604
        %v1333 = vsel %vm1331, %v1301, %v606
        %v1334 = vsel %vm1331, %v1302, %v608
        %v1335 = vsel %vm1331, %v1303, %v610
        %v1336 = vsel %vm1331, %v1304, %v612
        %v1337 = vsel %vm1331, %v1305, %v614
        %v1338 = vsel %vm1331, %v1306, %v616
        %v1339 = vsel %vm1331, %v1307, %v618
        %v1340 = vsel %vm1331, %v1308, %v620
        %v1341 = vsel %vm1331, %v1309, %v622
        %v1342 = vsel %vm1331, %v1310, %v624
        %v1343 = vsel %vm1331, %v1311, %v626
        %v1344 = vsel %vm1331, %v1312, %v628
        %v1345 = vsel %vm1331, %v1313, %v630
        %v1346 = vsel %vm1331, %v1314, %v632
        %v1347 = vsel %vm1331, %v1315, %v634
        %v1348 = vsel %vm1331, %v1316, %v636
        %v1349 = vsel %vm1331, %v1317, %v638
        %v1350 = vsel %vm1331, %v1318, %v640
        %v1351 = vsel %vm1331, %v1319, %v642
        %v1352 = vsel %vm1331, %v1320, %v644
        %v1353 = vsel %vm1331, %v1321, %v646
        %v1354 = vsel %vm1331, %v1322, %v648
        %v1355 = vsel %vm1331, %v1323, %v650
        %v1356 = vsel %vm1331, %v1324, %v652
        %v1357 = vsel %vm1331, %v1325, %v654
        %v1358 = vsel %vm1331, %v1326, %v656
        %v1359 = vsel %vm1331, %v1327, %v658
        %v1360 = vsel %vm1331, %v1328, %v660
        %v1361 = vsel %vm1331, %v1329, %v662
        %v1362 = vsel %vm1331, %v1330, %v664
        %vm1363 = vcmask 195584
        %v1364 = vsel %vm1363, %v1332, %v729
        %v1365 = vsel %vm1363, %v1332, %v731
        %v1366 = vsel %vm1363, %v1333, %v733
        %v1367 = vsel %vm1363, %v1334, %v735
        %v1368 = vsel %vm1363, %v1335, %v737
        %v1369 = vsel %vm1363, %v1336, %v739
        %v1370 = vsel %vm1363, %v1337, %v741
        %v1371 = vsel %vm1363, %v1338, %v743
        %v1372 = vsel %vm1363, %v1339, %v745
        %v1373 = vsel %vm1363, %v1340, %v747
        %v1374 = vsel %vm1363, %v1341, %v749
        %v1375 = vsel %vm1363, %v1342, %v751
        %v1376 = vsel %vm1363, %v1343, %v753
        %v1377 = vsel %vm1363, %v1344, %v755
        %v1378 = vsel %vm1363, %v1345, %v757
        %v1379 = vsel %vm1363, %v1346, %v759
        %v1380 = vsel %vm1363, %v1347, %v761
        %v1381 = vsel %vm1363, %v1348, %v763
        %v1382 = vsel %vm1363, %v1349, %v765
        %v1383 = vsel %vm1363, %v1350, %v767
        %v1384 = vsel %vm1363, %v1351, %v769
        %v1385 = vsel %vm1363, %v1352, %v771
        %v1386 = vsel %vm1363, %v1353, %v773
        %v1387 = vsel %vm1363, %v1354, %v775
        %v1388 = vsel %vm1363, %v1355, %v777
        %v1389 = vsel %vm1363, %v1356, %v779
        %v1390 = vsel %vm1363, %v1357, %v781
        %v1391 = vsel %vm1363, %v1358, %v783
        %v1392 = vsel %vm1363, %v1359, %v785
        %v1393 = vsel %vm1363, %v1360, %v787
        %v1394 = vsel %vm1363, %v1361, %v789
        %v1395 = vsel %vm1363, %v1362, %v791
        %vm1396 = vcmask 261120
        %v1397 = vsel %vm1396, %v1364, %v827
        %v1398 = vsel %vm1396, %v1365, %v829
        %v1399 = vsel %vm1396, %v1366, %v831
        %v1400 = vsel %vm1396, %v1367, %v833
        %v1401 = vsel %vm1396, %v1368, %v835
        %v1402 = vsel %vm1396, %v1369, %v837
        %v1403 = vsel %vm1396, %v1370, %v839
        %v1404 = vsel %vm1396, %v1371, %v841
        %v1405 = vsel %vm1396, %v1372, %v843
        %v1406 = vsel %vm1396, %v1373, %v845
        %v1407 = vsel %vm1396, %v1374, %v847
        %v1408 = vsel %vm1396, %v1375, %v849
        %v1409 = vsel %vm1396, %v1376, %v851
        %v1410 = vsel %vm1396, %v1377, %v853
        %v1411 = vsel %vm1396, %v1378, %v855
        %v1412 = vsel %vm1396, %v1379, %v857
        %v1413 = vsel %vm1396, %v1380, %v859
        %v1414 = vsel %vm1396, %v1381, %v861
        %v1415 = vsel %vm1396, %v1382, %v863
        %v1416 = vsel %vm1396, %v1383, %v865
        %v1417 = vsel %vm1396, %v1384, %v867
        %v1418 = vsel %vm1396, %v1385, %v869
        %v1419 = vsel %vm1396, %v1386, %v871
        %v1420 = vsel %vm1396, %v1387, %v873
        %v1421 = vsel %vm1396, %v1388, %v875
        %v1422 = vsel %vm1396, %v1389, %v877
        %v1423 = vsel %vm1396, %v1390, %v879
        %v1424 = vsel %vm1396, %v1391, %v881
        %v1425 = vsel %vm1396, %v1392, %v883
        %v1426 = vsel %vm1396, %v1393, %v885
        %v1427 = vsel %vm1396, %v1394, %v887
        %v1428 = vsel %vm1396, %v1395, %v889
        %vm1429 = vcmask 326656
        %v1430 = vsel %vm1429, %v1397, %v925
        %v1431 = vsel %vm1429, %v1398, %v927
        %v1432 = vsel %vm1429, %v1399, %v929
        %v1433 = vsel %vm1429, %v1400, %v931
        %v1434 = vsel %vm1429, %v1401, %v933
        %v1435 = vsel %vm1429, %v1402, %v935
        %v1436 = vsel %vm1429, %v1403, %v937
        %v1437 = vsel %vm1429, %v1404, %v939
        %v1438 = vsel %vm1429, %v1405, %v941
        %v1439 = vsel %vm1429, %v1406, %v943
        %v1440 = vsel %vm1429, %v1407, %v945
        %v1441 = vsel %vm1429, %v1408, %v947
        %v1442 = vsel %vm1429, %v1409, %v949
        %v1443 = vsel %vm1429, %v1410, %v951
        %v1444 = vsel %vm1429, %v1411, %v953
        %v1445 = vsel %vm1429, %v1412, %v955
        %v1446 = vsel %vm1429, %v1413, %v957
        %v1447 = vsel %vm1429, %v1414, %v959
        %v1448 = vsel %vm1429, %v1415, %v961
        %v1449 = vsel %vm1429, %v1416, %v963
        %v1450 = vsel %vm1429, %v1417, %v965
        %v1451 = vsel %vm1429, %v1418, %v967
        %v1452 = vsel %vm1429, %v1419, %v969
        %v1453 = vsel %vm1429, %v1420, %v971
        %v1454 = vsel %vm1429, %v1421, %v973
        %v1455 = vsel %vm1429, %v1422, %v975
        %v1456 = vsel %vm1429, %v1423, %v977
        %v1457 = vsel %vm1429, %v1424, %v979
        %v1458 = vsel %vm1429, %v1425, %v981
        %v1459 = vsel %vm1429, %v1426, %v983
        %v1460 = vsel %vm1429, %v1427, %v985
        %v1461 = vsel %vm1429, %v1428, %v987
        %vm1462 = vcmask 392192
        %v1463 = vsel %vm1462, %v1430, %v1021
        %v1464 = vsel %vm1462, %v1431, %v1023
        %v1465 = vsel %vm1462, %v1432, %v1025
        %v1466 = vsel %vm1462, %v1433, %v1027
        %v1467 = vsel %vm1462, %v1434, %v1029
        %v1468 = vsel %vm1462, %v1435, %v1031
        %v1469 = vsel %vm1462, %v1436, %v1033
        %v1470 = vsel %vm1462, %v1437, %v1035
        %v1471 = vsel %vm1462, %v1438, %v1037
        %v1472 = vsel %vm1462, %v1439, %v1039
        %v1473 = vsel %vm1462, %v1440, %v1041
        %v1474 = vsel %vm1462, %v1441, %v1043
        %v1475 = vsel %vm1462, %v1442, %v1045
        %v1476 = vsel %vm1462, %v1443, %v1047
        %v1477 = vsel %vm1462, %v1444, %v1049
        %v1478 = vsel %vm1462, %v1445, %v1051
        %v1479 = vsel %vm1462, %v1446, %v1053
        %v1480 = vsel %vm1462, %v1447, %v1055
        %v1481 = vsel %vm1462, %v1448, %v1057
        %v1482 = vsel %vm1462, %v1449, %v1059
        %v1483 = vsel %vm1462, %v1450, %v1061
        %v1484 = vsel %vm1462, %v1451, %v1063
        %v1485 = vsel %vm1462, %v1452, %v1065
        %v1486 = vsel %vm1462, %v1453, %v1067
        %v1487 = vsel %vm1462, %v1454, %v1069
        %v1488 = vsel %vm1462, %v1455, %v1071
        %v1489 = vsel %vm1462, %v1456, %v1073
        %v1490 = vsel %vm1462, %v1457, %v1075
        %v1491 = vsel %vm1462, %v1458, %v1077
        %v1492 = vsel %vm1462, %v1459, %v1079
        %v1493 = vsel %vm1462, %v1460, %v1081
        %v1494 = vsel %vm1462, %v1461, %v1081
        %vm1495 = vcmask 457728
        %v1496 = vsel %vm1495, %v1463, %v1114
        %v1497 = vsel %vm1495, %v1464, %v1116
        %v1498 = vsel %vm1495, %v1465, %v1118
        %v1499 = vsel %vm1495, %v1466, %v1120
        %v1500 = vsel %vm1495, %v1467, %v1122
        %v1501 = vsel %vm1495, %v1468, %v1124
        %v1502 = vsel %vm1495, %v1469, %v1126
        %v1503 = vsel %vm1495, %v1470, %v1128
        %v1504 = vsel %vm1495, %v1471, %v1130
        %v1505 = vsel %vm1495, %v1472, %v1132
        %v1506 = vsel %vm1495, %v1473, %v1134
        %v1507 = vsel %vm1495, %v1474, %v1136
        %v1508 = vsel %vm1495, %v1475, %v1138
        %v1509 = vsel %vm1495, %v1476, %v1140
        %v1510 = vsel %vm1495, %v1477, %v1142
        %v1511 = vsel %vm1495, %v1478, %v1144
        %v1512 = vsel %vm1495, %v1479, %v1146
        %v1513 = vsel %vm1495, %v1480, %v1148
        %v1514 = vsel %vm1495, %v1481, %v1150
        %v1515 = vsel %vm1495, %v1482, %v1152
        %v1516 = vsel %vm1495, %v1483, %v1154
        %v1517 = vsel %vm1495, %v1484, %v1156
        %v1518 = vsel %vm1495, %v1485, %v1158
        %v1519 = vsel %vm1495, %v1486, %v1160
        %v1520 = vsel %vm1495, %v1487, %v1162
        %v1521 = vsel %vm1495, %v1488, %v1164
        %v1522 = vsel %vm1495, %v1489, %v1166
        %v1523 = vsel %vm1495, %v1490, %v1168
        %v1524 = vsel %vm1495, %v1491, %v1170
        %v1525 = vsel %vm1495, %v1492, %v1172
        %v1526 = vsel %vm1495, %v1493, %v1174
        %v1527 = vsel %vm1495, %v1494, %v1174
        %vm1528 = vcmask 523264
        %v1529 = vsel %vm1528, %v1496, %v1207
        %v1530 = vsel %vm1528, %v1497, %v1209
        %v1531 = vsel %vm1528, %v1498, %v1211
        %v1532 = vsel %vm1528, %v1499, %v1213
        %v1533 = vsel %vm1528, %v1500, %v1215
        %v1534 = vsel %vm1528, %v1501, %v1217
        %v1535 = vsel %vm1528, %v1502, %v1219
        %v1536 = vsel %vm1528, %v1503, %v1221
        %v1537 = vsel %vm1528, %v1504, %v1223
        %v1538 = vsel %vm1528, %v1505, %v1225
        %v1539 = vsel %vm1528, %v1506, %v1227
        %v1540 = vsel %vm1528, %v1507, %v1229
        %v1541 = vsel %vm1528, %v1508, %v1231
        %v1542 = vsel %vm1528, %v1509, %v1233
        %v1543 = vsel %vm1528, %v1510, %v1235
        %v1544 = vsel %vm1528, %v1511, %v1237
        %v1545 = vsel %vm1528, %v1512, %v1239
        %v1546 = vsel %vm1528, %v1513, %v1241
        %v1547 = vsel %vm1528, %v1514, %v1243
        %v1548 = vsel %vm1528, %v1515, %v1245
        %v1549 = vsel %vm1528, %v1516, %v1247
        %v1550 = vsel %vm1528, %v1517, %v1249
        %v1551 = vsel %vm1528, %v1518, %v1251
        %v1552 = vsel %vm1528, %v1519, %v1253
        %v1553 = vsel %vm1528, %v1520, %v1255
        %v1554 = vsel %vm1528, %v1521, %v1257
        %v1555 = vsel %vm1528, %v1522, %v1259
        %v1556 = vsel %vm1528, %v1523, %v1261
        %v1557 = vsel %vm1528, %v1524, %v1263
        %v1558 = vsel %vm1528, %v1525, %v1265
        %v1559 = vsel %vm1528, %v1526, %v1267
        %v1560 = vsel %vm1528, %v1527, %v1267
        %v1561 = vpack.c.bf16 %v1530, %v1529
        %v1562 = vpack.c.bf16 %v1532, %v1531
        %v1563 = vpack.c.bf16 %v1534, %v1533
        %v1564 = vpack.c.bf16 %v1536, %v1535
        %v1565 = vpack.c.bf16 %v1538, %v1537
        %v1566 = vpack.c.bf16 %v1540, %v1539
        %v1567 = vpack.c.bf16 %v1542, %v1541
        %v1568 = vpack.c.bf16 %v1544, %v1543
        %v1569 = vpack.c.bf16 %v1546, %v1545
        %v1570 = vpack.c.bf16 %v1548, %v1547
        %v1571 = vpack.c.bf16 %v1550, %v1549
        %v1572 = vpack.c.bf16 %v1552, %v1551
        %v1573 = vpack.c.bf16 %v1554, %v1553
        %v1574 = vpack.c.bf16 %v1556, %v1555
        %v1575 = vpack.c.bf16 %v1558, %v1557
        %v1576 = vpack.c.bf16 %v1560, %v1559
        %v1577 = vld [vmem:[#allocation5] sm:$0xf]
        %v1578 = vld [vmem:[#allocation5 + $0x4] sm:$0xf]
        %v1579 = vld [vmem:[#allocation5 + $0x8] sm:$0xf]
        %v1580 = vld [vmem:[#allocation5 + $0xc] sm:$0xf]
        %v1581 = vld [vmem:[#allocation5 + $0x10] sm:$0xf]
        %v1582 = vld [vmem:[#allocation5 + $0x14] sm:$0xf]
        %v1583 = vld [vmem:[#allocation5 + $0x18] sm:$0xf]
        %v1584 = vld [vmem:[#allocation5 + $0x1c] sm:$0xf]
        %v1585 = vld [vmem:[#allocation5 + $0x20] sm:$0xf]
        %v1595 = vunpack.c.l.b16 %v1577
        %v1596 = vunpack.c.l.b16 %v1578
        %v1597 = vunpack.c.l.b16 %v1579
        %v1598 = vunpack.c.l.b16 %v1580
        %v1599 = vunpack.c.l.b16 %v1581
        %v1600 = vunpack.c.l.b16 %v1582
        %v1601 = vunpack.c.l.b16 %v1583
        %v1602 = vunpack.c.l.b16 %v1584
        %v1603 = vunpack.c.l.b16 %v1585
        %v1604 = vpack.c.b16 %v1596, %v1595
        %v1605 = vpack.c.b16 %v1598, %v1597
        %v1606 = vpack.c.b16 %v1600, %v1599
        %v1607 = vpack.c.b16 %v1602, %v1601
        %v1608 = vpack.c.b16 %v1603, %v1603
        %vm1613 = vcmask 588800
        %v1615 = vsel %vm1613, %v1561, 0
        %v1618 = vsel %vm1613, %v1562, 0
        %v1621 = vsel %vm1613, %v1563, 0
        %v1624 = vsel %vm1613, %v1564, 0
        %v1627 = vsel %vm1613, %v1565, 0
        %v1630 = vsel %vm1613, %v1566, 0
        %v1633 = vsel %vm1613, %v1567, 0
        %v1636 = vsel %vm1613, %v1568, 0
        %v1639 = vsel %vm1613, %v1569, 0
        %v1642 = vsel %vm1613, %v1570, 0
        %v1645 = vsel %vm1613, %v1571, 0
        %v1648 = vsel %vm1613, %v1572, 0
        %v1651 = vsel %vm1613, %v1573, 0
        %v1654 = vsel %vm1613, %v1574, 0
        %v1657 = vsel %vm1613, %v1575, 0
        %v1660 = vsel %vm1613, %v1576, 0
        %vm1662 = vcmask 1043456
        %v1664 = vsel %vm1662, %v1608, 0
        %1666 = vmatprep.subr.bf16.mxu0 0
        %1667 = vmatpush1.bf16.msra.mxu0 %v1604
        %1668 = vmatprep.subr.bf16.mxu0 0
        %1669 = vmatpush1.bf16.msra.mxu0 %v1605
        %1670 = vmatprep.subr.bf16.mxu0 0
        %1671 = vmatpush1.bf16.msra.mxu0 %v1606
        %1672 = vmatprep.subr.bf16.mxu0 0
        %1673 = vmatpush1.bf16.msra.mxu0 %v1607
        %1674 = vmatprep.subr.bf16.mxu0 0
        %1675 = vmatpush1.bf16.msra.mxu0 %v1664
        %1676 = vmatprep.subr.bf16.mxu0 0
        %1677 = vmatpush1.bf16.msra.mxu0 0
        %1678 = vmatprep.subr.bf16.mxu0 0
        %1679 = vmatpush1.bf16.msra.mxu0 0
        %1680 = vmatprep.subr.bf16.mxu0 0
        %1681 = vmatpush1.bf16.msra.mxu0 0
        %1682 = vmatprep.subr.bf16.mxu0 0
        %1683 = vmatpush1.bf16.msra.mxu0 0
        %1684 = vmatprep.subr.bf16.mxu0 0
        %1685 = vmatpush1.bf16.msra.mxu0 0
        %1686 = vmatprep.subr.bf16.mxu0 0
        %1687 = vmatpush1.bf16.msra.mxu0 0
        %1688 = vmatprep.subr.bf16.mxu0 0
        %1689 = vmatpush1.bf16.msra.mxu0 0
        %1690 = vmatprep.subr.bf16.mxu0 0
        %1691 = vmatpush1.bf16.msra.mxu0 0
        %1692 = vmatprep.subr.bf16.mxu0 0
        %1693 = vmatpush1.bf16.msra.mxu0 0
        %1694 = vmatprep.subr.bf16.mxu0 0
        %1695 = vmatpush1.bf16.msra.mxu0 0
        %1696 = vmatprep.subr.bf16.mxu0 0
        %1697 = vmatpush1.bf16.msra.mxu0 0
        %1698 = vmatprep.mubr.bf16.mxu0 0
        %1699 = vmatmul.mubr.bf16.gmra.mrb[0].mxu0 %v1615
        %v1700 = vpop.f32.mrb[0].mxu0
        %v1701 = vadd.f32 0.0, %v1700
        %v1702 = vpop.f32.mrb[0].mxu0
        %v1703 = vpop.f32.mrb[0].mxu0
        %v1704 = vadd.f32 0.0, %v1703
        %v1705 = vpop.f32.mrb[0].mxu0
        %1706 = vmatprep.mubr.bf16.mxu0 0
        %1707 = vmatmul.mubr.bf16.gmra.mrb[0].mxu0 %v1618
        %v1708 = vpop.f32.mrb[0].mxu0
        %v1709 = vadd.f32 0.0, %v1708
        %v1710 = vpop.f32.mrb[0].mxu0
        %v1711 = vpop.f32.mrb[0].mxu0
        %v1712 = vadd.f32 0.0, %v1711
        %v1713 = vpop.f32.mrb[0].mxu0
        %1714 = vmatprep.mubr.bf16.mxu0 0
        %1715 = vmatmul.mubr.bf16.gmra.mrb[0].mxu0 %v1621
        %v1716 = vpop.f32.mrb[0].mxu0
        %v1717 = vadd.f32 0.0, %v1716
        %v1718 = vpop.f32.mrb[0].mxu0
        %v1719 = vpop.f32.mrb[0].mxu0
        %v1720 = vadd.f32 0.0, %v1719
        %v1721 = vpop.f32.mrb[0].mxu0
        %1722 = vmatprep.mubr.bf16.mxu0 0
        %1723 = vmatmul.mubr.bf16.gmra.mrb[0].mxu0 %v1624
        %v1724 = vpop.f32.mrb[0].mxu0
        %v1725 = vadd.f32 0.0, %v1724
        %v1726 = vpop.f32.mrb[0].mxu0
        %v1727 = vpop.f32.mrb[0].mxu0
        %v1728 = vadd.f32 0.0, %v1727
        %v1729 = vpop.f32.mrb[0].mxu0
        %1730 = vmatprep.mubr.bf16.mxu0 0
        %1731 = vmatmul.mubr.bf16.gmra.mrb[0].mxu0 %v1627
        %v1732 = vpop.f32.mrb[0].mxu0
        %v1733 = vadd.f32 0.0, %v1732
        %v1734 = vpop.f32.mrb[0].mxu0
        %v1735 = vpop.f32.mrb[0].mxu0
        %v1736 = vadd.f32 0.0, %v1735
        %v1737 = vpop.f32.mrb[0].mxu0
        %1738 = vmatprep.mubr.bf16.mxu0 0
        %1739 = vmatmul.mubr.bf16.gmra.mrb[0].mxu0 %v1630
        %v1740 = vpop.f32.mrb[0].mxu0
        %v1741 = vadd.f32 0.0, %v1740
        %v1742 = vpop.f32.mrb[0].mxu0
        %v1743 = vpop.f32.mrb[0].mxu0
        %v1744 = vadd.f32 0.0, %v1743
        %v1745 = vpop.f32.mrb[0].mxu0
        %1746 = vmatprep.mubr.bf16.mxu0 0
        %1747 = vmatmul.mubr.bf16.gmra.mrb[0].mxu0 %v1633
        %v1748 = vpop.f32.mrb[0].mxu0
        %v1749 = vadd.f32 0.0, %v1748
        %v1750 = vpop.f32.mrb[0].mxu0
        %v1751 = vpop.f32.mrb[0].mxu0
        %v1752 = vadd.f32 0.0, %v1751
        %v1753 = vpop.f32.mrb[0].mxu0
        %1754 = vmatprep.mubr.bf16.mxu0 0
        %1755 = vmatmul.mubr.bf16.gmra.mrb[0].mxu0 %v1636
        %v1756 = vpop.f32.mrb[0].mxu0
        %v1757 = vadd.f32 0.0, %v1756
        %v1758 = vpop.f32.mrb[0].mxu0
        %v1759 = vpop.f32.mrb[0].mxu0
        %v1760 = vadd.f32 0.0, %v1759
        %v1761 = vpop.f32.mrb[0].mxu0
        %1762 = vmatprep.mubr.bf16.mxu0 0
        %1763 = vmatmul.mubr.bf16.gmra.mrb[0].mxu0 %v1639
        %v1764 = vpop.f32.mrb[0].mxu0
        %v1765 = vadd.f32 0.0, %v1764
        %v1766 = vpop.f32.mrb[0].mxu0
        %v1767 = vpop.f32.mrb[0].mxu0
        %v1768 = vadd.f32 0.0, %v1767
        %v1769 = vpop.f32.mrb[0].mxu0
        %1770 = vmatprep.mubr.bf16.mxu0 0
        %1771 = vmatmul.mubr.bf16.gmra.mrb[0].mxu0 %v1642
        %v1772 = vpop.f32.mrb[0].mxu0
        %v1773 = vadd.f32 0.0, %v1772
        %v1774 = vpop.f32.mrb[0].mxu0
        %v1775 = vpop.f32.mrb[0].mxu0
        %v1776 = vadd.f32 0.0, %v1775
        %v1777 = vpop.f32.mrb[0].mxu0
        %1778 = vmatprep.mubr.bf16.mxu0 0
        %1779 = vmatmul.mubr.bf16.gmra.mrb[0].mxu0 %v1645
        %v1780 = vpop.f32.mrb[0].mxu0
        %v1781 = vadd.f32 0.0, %v1780
        %v1782 = vpop.f32.mrb[0].mxu0
        %v1783 = vpop.f32.mrb[0].mxu0
        %v1784 = vadd.f32 0.0, %v1783
        %v1785 = vpop.f32.mrb[0].mxu0
        %1786 = vmatprep.mubr.bf16.mxu0 0
        %1787 = vmatmul.mubr.bf16.gmra.mrb[0].mxu0 %v1648
        %v1788 = vpop.f32.mrb[0].mxu0
        %v1789 = vadd.f32 0.0, %v1788
        %v1790 = vpop.f32.mrb[0].mxu0
        %v1791 = vpop.f32.mrb[0].mxu0
        %v1792 = vadd.f32 0.0, %v1791
        %v1793 = vpop.f32.mrb[0].mxu0
        %1794 = vmatprep.mubr.bf16.mxu0 0
        %1795 = vmatmul.mubr.bf16.gmra.mrb[0].mxu0 %v1651
        %v1796 = vpop.f32.mrb[0].mxu0
        %v1797 = vadd.f32 0.0, %v1796
        %v1798 = vpop.f32.mrb[0].mxu0
        %v1799 = vpop.f32.mrb[0].mxu0
        %v1800 = vadd.f32 0.0, %v1799
        %v1801 = vpop.f32.mrb[0].mxu0
        %1802 = vmatprep.mubr.bf16.mxu0 0
        %1803 = vmatmul.mubr.bf16.gmra.mrb[0].mxu0 %v1654
        %v1804 = vpop.f32.mrb[0].mxu0
        %v1805 = vadd.f32 0.0, %v1804
        %v1806 = vpop.f32.mrb[0].mxu0
        %v1807 = vpop.f32.mrb[0].mxu0
        %v1808 = vadd.f32 0.0, %v1807
        %v1809 = vpop.f32.mrb[0].mxu0
        %1810 = vmatprep.mubr.bf16.mxu0 0
        %1811 = vmatmul.mubr.bf16.gmra.mrb[0].mxu0 %v1657
        %v1812 = vpop.f32.mrb[0].mxu0
        %v1813 = vadd.f32 0.0, %v1812
        %v1814 = vpop.f32.mrb[0].mxu0
        %v1815 = vpop.f32.mrb[0].mxu0
        %v1816 = vadd.f32 0.0, %v1815
        %v1817 = vpop.f32.mrb[0].mxu0
        %1818 = vmatprep.mubr.bf16.mxu0 0
        %1819 = vmatmul.mubr.bf16.gmra.mrb[0].mxu0 %v1660
        %v1820 = vpop.f32.mrb[0].mxu0
        %v1821 = vadd.f32 0.0, %v1820
        %v1822 = vpop.f32.mrb[0].mxu0
        %v1823 = vpop.f32.mrb[0].mxu0
        %v1824 = vadd.f32 0.0, %v1823
        %v1825 = vpop.f32.mrb[0].mxu0
        %1826 = vdwg.mxu0
        %1827 = vst.msk [vmem:[%s207] sm:$0xff] %vm1299, %v1701
        %1828 = vst.msk [vmem:[%s207 + $0x8] sm:$0xff] %vm1299, %v1704
        %1829 = vst.msk [vmem:[%s207 + $0x10] sm:$0xff] %vm1299, %v1709
        %1830 = vst.msk [vmem:[%s207 + $0x18] sm:$0xff] %vm1299, %v1712
        %1831 = vst.msk [vmem:[%s207 + $0x20] sm:$0xff] %vm1299, %v1717
        %1832 = vst.msk [vmem:[%s207 + $0x28] sm:$0xff] %vm1299, %v1720
        %1833 = vst.msk [vmem:[%s207 + $0x30] sm:$0xff] %vm1299, %v1725
        %1834 = vst.msk [vmem:[%s207 + $0x38] sm:$0xff] %vm1299, %v1728
        %1835 = vst.msk [vmem:[%s207 + $0x40] sm:$0xff] %vm1299, %v1733
        %1836 = vst.msk [vmem:[%s207 + $0x48] sm:$0xff] %vm1299, %v1736
        %1837 = vst.msk [vmem:[%s207 + $0x50] sm:$0xff] %vm1299, %v1741
        %1838 = vst.msk [vmem:[%s207 + $0x58] sm:$0xff] %vm1299, %v1744
        %1839 = vst.msk [vmem:[%s207 + $0x60] sm:$0xff] %vm1299, %v1749
        %1840 = vst.msk [vmem:[%s207 + $0x68] sm:$0xff] %vm1299, %v1752
        %1841 = vst.msk [vmem:[%s207 + $0x70] sm:$0xff] %vm1299, %v1757
        %1842 = vst.msk [vmem:[%s207 + $0x78] sm:$0xff] %vm1299, %v1760
        %1843 = vst.msk [vmem:[%s207 + $0x80] sm:$0xff] %vm1299, %v1765
        %1844 = vst.msk [vmem:[%s207 + $0x88] sm:$0xff] %vm1299, %v1768
        %1845 = vst.msk [vmem:[%s207 + $0x90] sm:$0xff] %vm1299, %v1773
        %1846 = vst.msk [vmem:[%s207 + $0x98] sm:$0xff] %vm1299, %v1776
        %1847 = vst.msk [vmem:[%s207 + $0xa0] sm:$0xff] %vm1299, %v1781
        %1848 = vst.msk [vmem:[%s207 + $0xa8] sm:$0xff] %vm1299, %v1784
        %1849 = vst.msk [vmem:[%s207 + $0xb0] sm:$0xff] %vm1299, %v1789
        %1850 = vst.msk [vmem:[%s207 + $0xb8] sm:$0xff] %vm1299, %v1792
        %1851 = vst.msk [vmem:[%s207 + $0xc0] sm:$0xff] %vm1299, %v1797
        %1852 = vst.msk [vmem:[%s207 + $0xc8] sm:$0xff] %vm1299, %v1800
        %1853 = vst.msk [vmem:[%s207 + $0xd0] sm:$0xff] %vm1299, %v1805
        %1854 = vst.msk [vmem:[%s207 + $0xd8] sm:$0xff] %vm1299, %v1808
        %1855 = vst.msk [vmem:[%s207 + $0xe0] sm:$0xff] %vm1299, %v1813
        %1856 = vst.msk [vmem:[%s207 + $0xe8] sm:$0xff] %vm1299, %v1816
        %1857 = vst.msk [vmem:[%s207 + $0xf0] sm:$0xff] %vm1299, %v1821
        %1858 = vst.msk [vmem:[%s207 + $0xf8] sm:$0xff] %vm1299, %v1824
        %v1859 = vsel %vm1299, %v1701, 0.0
        %v1860 = vsel %vm1299, %v1704, 0.0
        %v1861 = vadd.f32 %v1859, %v1860
        %v1862 = vsel %vm1299, %v1709, 0.0
        %v1863 = vadd.f32 %v1861, %v1862
        %v1864 = vsel %vm1299, %v1712, 0.0
        %v1865 = vadd.f32 %v1863, %v1864
        %v1866 = vsel %vm1299, %v1717, 0.0
        %v1867 = vadd.f32 %v1865, %v1866
        %v1868 = vsel %vm1299, %v1720, 0.0
        %v1869 = vadd.f32 %v1867, %v1868
        %v1870 = vsel %vm1299, %v1725, 0.0
        %v1871 = vadd.f32 %v1869, %v1870
        %v1872 = vsel %vm1299, %v1728, 0.0
        %v1873 = vadd.f32 %v1871, %v1872
        %v1874 = vsel %vm1299, %v1733, 0.0
        %v1875 = vadd.f32 %v1873, %v1874
        %v1876 = vsel %vm1299, %v1736, 0.0
        %v1877 = vadd.f32 %v1875, %v1876
        %v1878 = vsel %vm1299, %v1741, 0.0
        %v1879 = vadd.f32 %v1877, %v1878
        %v1880 = vsel %vm1299, %v1744, 0.0
        %v1881 = vadd.f32 %v1879, %v1880
        %v1882 = vsel %vm1299, %v1749, 0.0
        %v1883 = vadd.f32 %v1881, %v1882
        %v1884 = vsel %vm1299, %v1752, 0.0
        %v1885 = vadd.f32 %v1883, %v1884
        %v1886 = vsel %vm1299, %v1757, 0.0
        %v1887 = vadd.f32 %v1885, %v1886
        %v1888 = vsel %vm1299, %v1760, 0.0
        %v1889 = vadd.f32 %v1887, %v1888
        %v1890 = vsel %vm1299, %v1765, 0.0
        %v1891 = vadd.f32 %v1889, %v1890
        %v1892 = vsel %vm1299, %v1768, 0.0
        %v1893 = vadd.f32 %v1891, %v1892
        %v1894 = vsel %vm1299, %v1773, 0.0
        %v1895 = vadd.f32 %v1893, %v1894
        %v1896 = vsel %vm1299, %v1776, 0.0
        %v1897 = vadd.f32 %v1895, %v1896
        %v1898 = vsel %vm1299, %v1781, 0.0
        %v1899 = vadd.f32 %v1897, %v1898
        %v1900 = vsel %vm1299, %v1784, 0.0
        %v1901 = vadd.f32 %v1899, %v1900
        %v1902 = vsel %vm1299, %v1789, 0.0
        %v1903 = vadd.f32 %v1901, %v1902
        %v1904 = vsel %vm1299, %v1792, 0.0
        %v1905 = vadd.f32 %v1903, %v1904
        %v1906 = vsel %vm1299, %v1797, 0.0
        %v1907 = vadd.f32 %v1905, %v1906
        %v1908 = vsel %vm1299, %v1800, 0.0
        %v1909 = vadd.f32 %v1907, %v1908
        %v1910 = vsel %vm1299, %v1805, 0.0
        %v1911 = vadd.f32 %v1909, %v1910
        %v1912 = vsel %vm1299, %v1808, 0.0
        %v1913 = vadd.f32 %v1911, %v1912
        %v1914 = vsel %vm1299, %v1813, 0.0
        %v1915 = vadd.f32 %v1913, %v1914
        %v1916 = vsel %vm1299, %v1816, 0.0
        %v1917 = vadd.f32 %v1915, %v1916
        %v1918 = vsel %vm1299, %v1821, 0.0
        %v1919 = vadd.f32 %v1917, %v1918
        %v1920 = vsel %vm1299, %v1824, 0.0
        %v1921 = vadd.f32 %v1919, %v1920
        %v1922 = vrot.slane %v1921, 4
        %v1923 = vadd.f32 %v1921, %v1922
        %v1924 = vrot.slane %v1923, 2
        %v1925 = vadd.f32 %v1923, %v1924
        %v1926 = vrot.slane %v1925, 1
        %v1927 = vadd.f32 %v1925, %v1926
        %v1928 = vmul.f32 %v1701, %v1701
        %v1929 = vmul.f32 %v1704, %v1704
        %v1930 = vmul.f32 %v1709, %v1709
        %v1931 = vmul.f32 %v1712, %v1712
        %v1932 = vmul.f32 %v1717, %v1717
        %v1933 = vmul.f32 %v1720, %v1720
        %v1934 = vmul.f32 %v1725, %v1725
        %v1935 = vmul.f32 %v1728, %v1728
        %v1936 = vmul.f32 %v1733, %v1733
        %v1937 = vmul.f32 %v1736, %v1736
        %v1938 = vmul.f32 %v1741, %v1741
        %v1939 = vmul.f32 %v1744, %v1744
        %v1940 = vmul.f32 %v1749, %v1749
        %v1941 = vmul.f32 %v1752, %v1752
        %v1942 = vmul.f32 %v1757, %v1757
        %v1943 = vmul.f32 %v1760, %v1760
        %v1944 = vmul.f32 %v1765, %v1765
        %v1945 = vmul.f32 %v1768, %v1768
        %v1946 = vmul.f32 %v1773, %v1773
        %v1947 = vmul.f32 %v1776, %v1776
        %v1948 = vmul.f32 %v1781, %v1781
        %v1949 = vmul.f32 %v1784, %v1784
        %v1950 = vmul.f32 %v1789, %v1789
        %v1951 = vmul.f32 %v1792, %v1792
        %v1952 = vmul.f32 %v1797, %v1797
        %v1953 = vmul.f32 %v1800, %v1800
        %v1954 = vmul.f32 %v1805, %v1805
        %v1955 = vmul.f32 %v1808, %v1808
        %v1956 = vmul.f32 %v1813, %v1813
        %v1957 = vmul.f32 %v1816, %v1816
        %v1958 = vmul.f32 %v1821, %v1821
        %v1959 = vmul.f32 %v1824, %v1824
        %v1960 = vsel %vm1299, %v1928, 0.0
        %v1961 = vsel %vm1299, %v1929, 0.0
        %v1962 = vadd.f32 %v1960, %v1961
        %v1963 = vsel %vm1299, %v1930, 0.0
        %v1964 = vadd.f32 %v1962, %v1963
        %v1965 = vsel %vm1299, %v1931, 0.0
        %v1966 = vadd.f32 %v1964, %v1965
        %v1967 = vsel %vm1299, %v1932, 0.0
        %v1968 = vadd.f32 %v1966, %v1967
        %v1969 = vsel %vm1299, %v1933, 0.0
        %v1970 = vadd.f32 %v1968, %v1969
        %v1971 = vsel %vm1299, %v1934, 0.0
        %v1972 = vadd.f32 %v1970, %v1971
        %v1973 = vsel %vm1299, %v1935, 0.0
        %v1974 = vadd.f32 %v1972, %v1973
        %v1975 = vsel %vm1299, %v1936, 0.0
        %v1976 = vadd.f32 %v1974, %v1975
        %v1977 = vsel %vm1299, %v1937, 0.0
        %v1978 = vadd.f32 %v1976, %v1977
        %v1979 = vsel %vm1299, %v1938, 0.0
        %v1980 = vadd.f32 %v1978, %v1979
        %v1981 = vsel %vm1299, %v1939, 0.0
        %v1982 = vadd.f32 %v1980, %v1981
        %v1983 = vsel %vm1299, %v1940, 0.0
        %v1984 = vadd.f32 %v1982, %v1983
        %v1985 = vsel %vm1299, %v1941, 0.0
        %v1986 = vadd.f32 %v1984, %v1985
        %v1987 = vsel %vm1299, %v1942, 0.0
        %v1988 = vadd.f32 %v1986, %v1987
        %v1989 = vsel %vm1299, %v1943, 0.0
        %v1990 = vadd.f32 %v1988, %v1989
        %v1991 = vsel %vm1299, %v1944, 0.0
        %v1992 = vadd.f32 %v1990, %v1991
        %v1993 = vsel %vm1299, %v1945, 0.0
        %v1994 = vadd.f32 %v1992, %v1993
        %v1995 = vsel %vm1299, %v1946, 0.0
        %v1996 = vadd.f32 %v1994, %v1995
        %v1997 = vsel %vm1299, %v1947, 0.0
        %v1998 = vadd.f32 %v1996, %v1997
        %v1999 = vsel %vm1299, %v1948, 0.0
        %v2000 = vadd.f32 %v1998, %v1999
        %v2001 = vsel %vm1299, %v1949, 0.0
        %v2002 = vadd.f32 %v2000, %v2001
        %v2003 = vsel %vm1299, %v1950, 0.0
        %v2004 = vadd.f32 %v2002, %v2003
        %v2005 = vsel %vm1299, %v1951, 0.0
        %v2006 = vadd.f32 %v2004, %v2005
        %v2007 = vsel %vm1299, %v1952, 0.0
        %v2008 = vadd.f32 %v2006, %v2007
        %v2009 = vsel %vm1299, %v1953, 0.0
        %v2010 = vadd.f32 %v2008, %v2009
        %v2011 = vsel %vm1299, %v1954, 0.0
        %v2012 = vadd.f32 %v2010, %v2011
        %v2013 = vsel %vm1299, %v1955, 0.0
        %v2014 = vadd.f32 %v2012, %v2013
        %v2015 = vsel %vm1299, %v1956, 0.0
        %v2016 = vadd.f32 %v2014, %v2015
        %v2017 = vsel %vm1299, %v1957, 0.0
        %v2018 = vadd.f32 %v2016, %v2017
        %v2019 = vsel %vm1299, %v1958, 0.0
        %v2020 = vadd.f32 %v2018, %v2019
        %v2021 = vsel %vm1299, %v1959, 0.0
        %v2022 = vadd.f32 %v2020, %v2021
        %v2023 = vrot.slane %v2022, 4
        %v2024 = vadd.f32 %v2022, %v2023
        %v2025 = vrot.slane %v2024, 2
        %v2026 = vadd.f32 %v2024, %v2025
        %v2027 = vrot.slane %v2026, 1
        %v2028 = vadd.f32 %v2026, %v2027
        %vm2029 = vcmask 1040384
        %v2030 = vsel %vm2029, %v1927, %v2028
        %vm2031 = vcmask 58368
        %2032 = vst.msk [vmem:[%s214] sm:$0x3] %vm2031, %v2030
        %s2033 = sand.u32 %s80, 1
        %s2034 = scalar_lea.sflag [#allocation4], %s2033
        %s2035 = sand.u32 %s80, 1
        %s2036 = smul.addr %s2035, 256
        %s2037 = scalar_lea.vmem [#allocation7], %s2036
        %s2038 = sand.u32 %s106, 1
        %s2039 = scalar_lea.sflag [#allocation9], %s2038
        %s2040 = sand.u32 %s106, 1
        %s2041 = smul.addr %s2040, 2
        %s2042 = scalar_lea.vmem [#allocation8], %s2041
        // Predicated region
        $region37: #{residual_block.3} parent=27 // pred_check
          %p2043 = pneg %p90
        $region38: #{residual_block.3} parent=27 // pred_check_branch
          %2045 = sbr.rel (%p2043) target = $region40
        $region39: #{residual_block.3} parent=27 // pred_region
          %s2047 = ssub.s32 4096, 4096
          %2048 = vsyncadd %s2034, %s2047
          %s2049 = smul.addr %s25, 32
          %s2050 = smul.addr %s2049, 128
          %s2051 = scalar_lea.hbm %s2, %s2050
          %s2052 = sshll.u32 %s2037, 4
          %s2053 = int_to_ptr.vmem [resolvable:$true] %s2052
          %2058 = dma.vmem_to_hbm [thread:$0]  %s2053, 4096, %s2051, %s2034, 128, 128, 8
        $region40: #{residual_block.3} parent=27 // pred_fallthru
          _
        // Predicated region
        $region41: #{residual_block.3} parent=27 // pred_check
          %p2059 = pneg %p116
        $region42: #{residual_block.3} parent=27 // pred_check_branch
          %2061 = sbr.rel (%p2059) target = $region44
        $region43: #{residual_block.3} parent=27 // pred_region
          %s2063 = ssub.s32 32, 32
          %2064 = vsyncadd %s2039, %s2063
          %s2065 = smul.addr %s25, 32
          %s2066 = scalar_lea.hbm %s3, %s2065
          %s2068 = sshll.u32 %s2042, 4
          %s2069 = int_to_ptr.vmem [resolvable:$true] %s2068
          %2071 = dma.vmem_to_hbm [thread:$0]  %s2069, 32, %s2066, %s2039
        $region44: #{residual_block.3} parent=27 // pred_fallthru
          _
      $region28: #{residual_block.3} parent=5 // pred_fallthru
        _
      %p2072 = scmp.le.s32.totalorder 2, %s20
      // Predicated region
      $region45: #{residual_block.3} parent=5 // pred_check
        %p2073 = pneg %p2072
      $region46: #{residual_block.3} parent=5 // pred_check_branch
        %2075 = sbr.rel (%p2073) target = $region48
      $region47: #{residual_block.3} parent=5 // pred_region
        %s2076 = ssub.s32 %s20, 2
        // Predicated region
        $region49: #{residual_block.3} parent=47 // pred_check
          %p2077 = pneg %p96
        $region50: #{residual_block.3} parent=47 // pred_check_branch
          %2079 = sbr.rel (%p2077) target = $region52
        $region51: #{residual_block.3} parent=47 // pred_region
          %s2080 = sand.u32 %s81, 1
          %s2081 = scalar_lea.sflag [#allocation4], %s2080
          %s2082 = sand.u32 %s81, 1
          %s2083 = smul.addr %s2082, 256
          %s2084 = scalar_lea.vmem [#allocation7], %s2083
          %2085 = dma.done %s2081, 4096
        $region52: #{residual_block.3} parent=47 // pred_fallthru
          _
        // Predicated region
        $region53: #{residual_block.3} parent=47 // pred_check
          %p2086 = pneg %p122
        $region54: #{residual_block.3} parent=47 // pred_check_branch
          %2088 = sbr.rel (%p2086) target = $region56
        $region55: #{residual_block.3} parent=47 // pred_region
          %s2089 = sand.u32 %s107, 1
          %s2090 = scalar_lea.sflag [#allocation9], %s2089
          %s2091 = sand.u32 %s107, 1
          %s2092 = smul.addr %s2091, 2
          %s2093 = scalar_lea.vmem [#allocation8], %s2092
          %2094 = dma.done %s2090, 32
        $region56: #{residual_block.3} parent=47 // pred_fallthru
          _
      $region48: #{residual_block.3} parent=5 // pred_fallthru
        _
    $region6: #{residual_block.3} parent=1 // loop_footer
      %s24 = sadd.s32 1, %s20
    $region7: #{residual_block.3} parent=1 // loop_footer_branch
      %19 = sbr.rel target = $region3
    $region8: #{residual_block.3} parent=1 // loop_exit
      _
    %2095 = vsyncpa [#allocation3], 1
    %s2096 = scalar_lea.sflag [#allocation3], 1
    %2097 = vsyncpa %s2096, 1
    %2098 = vsyncpa [#allocation6], 1
    %2099 = vsyncpa [#allocation4], 1
    %s2100 = scalar_lea.sflag [#allocation4], 1
    %2101 = vsyncpa %s2100, 1
    %2102 = vsyncpa [#allocation9], 1
    %s2103 = scalar_lea.sflag [#allocation9], 1
    %2104 = vsyncpa %s2103, 1

</llo_original>
